<compile_context>
chip_gen: v5e
topology: v5e:2x2
jax: 0.10.0
libtpu: 0.0.40
codegen_flags: <defaults>
</compile_context>

<pallas_src>
import functools

import jax
import jax.numpy as jnp
from jax.experimental import pallas as pl
from jax.experimental.pallas import tpu as pltpu

_LN_EPS = 1e-5
_NEG = -1e30            # large-but-safe additive mask fill (stays in f32)
_BF16 = jnp.bfloat16
# Grid-invariant blocks (weights / rotary tables / gammas): single-buffered.
_SINGLE = pl.Buffered(1)


# ---------------------------------------------------------------------------
# In-kernel helpers (pure jnp, composed inside kernels)
# ---------------------------------------------------------------------------
def _ln(x, gamma):
    # F.layer_norm(x, (dim,), gamma, beta=0), eps=1e-5, biased variance (f32)
    mu = jnp.mean(x, axis=-1, keepdims=True)
    var = jnp.mean((x - mu) ** 2, axis=-1, keepdims=True)
    return (x - mu) * jax.lax.rsqrt(var + _LN_EPS) * gamma


def _rope(t, cos, sin):
    # apply_rotary_pos_emb: t*cos + rotate_half(t)*sin (f32 in / f32 out).
    # rotate_half kept as slice+concat (proven lowering); pltpu.roll + sign
    # vector is an XLU-slot alternative at production dim_head.
    half = t.shape[-1] // 2
    t1 = t[:, :half]
    t2 = t[:, half:]
    rot = jnp.concatenate([-t2, t1], axis=-1)
    return t * cos + rot * sin


def _softmax_rows(sim):
    sim = sim - jnp.max(sim, axis=-1, keepdims=True)
    p = jnp.exp(sim)
    # EUP approximate reciprocal: divide moves off the VALU slot.
    return p * pl.reciprocal(jnp.sum(p, axis=-1, keepdims=True), approx=True)


def _attention(xb, k, v, w_q, w_out, heads, dim_head, cos=None, sin=None, neg=None):
    """Multi-query attention with all heads batched into single MXU ops.

    xb : (n, dim)  bf16  pre-normalized input
    k,v: (nk, dh)  f32   shared across heads
    neg: (n, nk)   f32   additive mask (0 / -1e30) or None
    The q scale (dh**-0.5) is folded into w_q on the host.
    """
    n = xb.shape[0]
    q_all = jnp.dot(xb, w_q, preferred_element_type=jnp.float32)          # (n, h*dh)
    # head-major flatten into rows -> one score matmul / softmax / PV matmul
    q = jnp.concatenate(
        [q_all[:, h * dim_head:(h + 1) * dim_head] for h in range(heads)], axis=0)
    if cos is not None:
        q = _rope(q, jnp.tile(cos, (heads, 1)), jnp.tile(sin, (heads, 1)))
    sim = jax.lax.dot_general(q.astype(_BF16), k.astype(_BF16),
                              (((1,), (1,)), ((), ())),
                              preferred_element_type=jnp.float32)         # (h*n, nk)
    if neg is not None:
        sim = sim + jnp.tile(neg, (heads, 1))
    p = _softmax_rows(sim)                                                # f32
    out = jnp.dot(p.astype(_BF16), v.astype(_BF16),
                  preferred_element_type=jnp.float32)                     # (h*n, dh)
    out_all = jnp.concatenate(
        [out[h * n:(h + 1) * n, :] for h in range(heads)], axis=-1)       # (n, h*dh)
    return jnp.dot(out_all.astype(_BF16), w_out,
                   preferred_element_type=jnp.float32)


def _ptb_block(x, kpad, cos, sin, gamma, w_q, w_k, w_v, w_ffx, w_ffg, w_ao, w_fo,
               heads, dim_head):
    # ParallelTransformerBlock + residual
    n = x.shape[0]
    xn = _ln(x, gamma)                       # f32
    xb = xn.astype(_BF16)                    # cast once at the matmul boundary

    k = _rope(jnp.dot(xb, w_k, preferred_element_type=jnp.float32), cos, sin)
    v = jnp.dot(xb, w_v, preferred_element_type=jnp.float32)

    # causal (+ optional pad) mask built in-kernel (no O(n^2) HBM mask traffic)
    row = jax.lax.broadcasted_iota(jnp.int32, (n, n), 0)
    col = jax.lax.broadcasted_iota(jnp.int32, (n, n), 1)
    keep = col <= row
    if kpad is not None:
        # original attn_mask: rows 0..n-2 all True, last (cls) row = key pad mask
        not_last = row < (n - 1)
        keep = jnp.logical_and(keep, jnp.logical_or(not_last, kpad > 0.5))
    neg = jnp.where(keep, 0.0, _NEG).astype(jnp.float32)   # (n, n) additive mask

    attn_out = _attention(xb, k, v, w_q, w_ao, heads, dim_head,
                          cos=cos, sin=sin, neg=neg)

    # parallel feed-forward (SwiGLU)
    xp = jnp.dot(xb, w_ffx, preferred_element_type=jnp.float32)
    gate = jnp.dot(xb, w_ffg, preferred_element_type=jnp.float32)
    ff = (jax.nn.silu(gate) * xp).astype(_BF16)
    ff_out = jnp.dot(ff, w_fo, preferred_element_type=jnp.float32)

    return x + attn_out + ff_out


def _cross_block(x, ctx, gamma_x, gamma_ctx, w_q, w_k, w_v, w_out,
                 w_ffx, w_ffg, w_ffo, heads, dim_head, residual):
    xn = _ln(x, gamma_x)
    xb = xn.astype(_BF16)
    cn = _ln(ctx, gamma_ctx) if gamma_ctx is not None else ctx
    cb = cn.astype(_BF16)

    k = jnp.dot(cb, w_k, preferred_element_type=jnp.float32)
    v = jnp.dot(cb, w_v, preferred_element_type=jnp.float32)

    out = _attention(xb, k, v, w_q, w_out, heads, dim_head)

    if w_ffx is not None:
        xp = jnp.dot(xb, w_ffx, preferred_element_type=jnp.float32)
        gate = jnp.dot(xb, w_ffg, preferred_element_type=jnp.float32)
        ff = (jax.nn.silu(gate) * xp).astype(_BF16)
        out = out + jnp.dot(ff, w_ffo, preferred_element_type=jnp.float32)
    if residual:
        out = out + x
    return out


# ---------------------------------------------------------------------------
# Kernels
# ---------------------------------------------------------------------------
def unimodal_kernel(x_ref, kpad_ref, cos_ref, sin_ref, g_ref, wq_ref, wk_ref, wv_ref,
                    wffx_ref, wffg_ref, wao_ref, wfo_ref, o_ref,
                    *, heads, dim_head):
    o_ref[0] = _ptb_block(x_ref[0], kpad_ref[0], cos_ref[...], sin_ref[...],
                          g_ref[...], wq_ref[...], wk_ref[...], wv_ref[...],
                          wffx_ref[...], wffg_ref[...], wao_ref[...], wfo_ref[...],
                          heads, dim_head)


def multimodal_kernel(x_ref, ctx_ref, cos_ref, sin_ref,
                      pg_ref, pwq_ref, pwk_ref, pwv_ref, pwffx_ref, pwffg_ref,
                      pwao_ref, pwfo_ref,
                      cg_ref, cwq_ref, cwk_ref, cwv_ref, cwo_ref,
                      cwffx_ref, cwffg_ref, cwffo_ref,
                      o_ref, *, heads, dim_head):
    # Fused: PTB (+res) followed by CrossAttention (+FF, +res), no HBM round trip.
    y = _ptb_block(x_ref[0], None, cos_ref[...], sin_ref[...],
                   pg_ref[...], pwq_ref[...], pwk_ref[...], pwv_ref[...],
                   pwffx_ref[...], pwffg_ref[...], pwao_ref[...], pwfo_ref[...],
                   heads, dim_head)
    o_ref[0] = _cross_block(y, ctx_ref[0], cg_ref[...], None,
                            cwq_ref[...], cwk_ref[...], cwv_ref[...], cwo_ref[...],
                            cwffx_ref[...], cwffg_ref[...], cwffo_ref[...],
                            heads, dim_head, residual=True)


def img_pool_kernel(q_ref, ctx_ref, gx_ref, gc_ref, wq_ref, wk_ref, wv_ref, wo_ref,
                    gpool_ref, o_ref, *, heads, dim_head):
    out = _cross_block(q_ref[0], ctx_ref[0], gx_ref[...], gc_ref[...],
                       wq_ref[...], wk_ref[...], wv_ref[...], wo_ref[...],
                       None, None, None, heads, dim_head, residual=False)
    o_ref[0] = _ln(out, gpool_ref[...])          # fused img_attn_pool_norm


def logits_kernel(x_ref, g_ref, emb_ref, o_ref, xn_ref):
    # LayerNorm of x is computed ONCE per batch row (hoisted out of the vocab loop).
    @pl.when(pl.program_id(1) == 0)
    def _():
        xn_ref[...] = _ln(x_ref[0], g_ref[...])
    # tied-embedding logits: contract on feature axis of token_emb (no transpose copy)
    o_ref[0] = jax.lax.dot_general(xn_ref[...].astype(_BF16), emb_ref[...],
                                   (((1,), (1,)), ((), ())),
                                   preferred_element_type=jnp.float32)


# ---------------------------------------------------------------------------
# pallas_call wrappers
# ---------------------------------------------------------------------------
def run_unimodal(x, kpad, cos, sin, p, cfg):
    B, n, dim = x.shape
    h, dh = cfg["heads"], cfg["dim_head"]
    ffi = cfg["ff_mult"] * dim
    kernel = functools.partial(unimodal_kernel, heads=h, dim_head=dh)
    f = pl.pallas_call(
        kernel,
        out_shape=jax.ShapeDtypeStruct((B, n, dim), jnp.float32),
        grid=(B,),
        in_specs=[
            pl.BlockSpec((1, n, dim), lambda b: (b, 0, 0)),
            pl.BlockSpec((1, 1, n), lambda b: (b, 0, 0)),
            pl.BlockSpec((n, dh), lambda b: (0, 0), pipeline_mode=_SINGLE),
            pl.BlockSpec((n, dh), lambda b: (0, 0), pipeline_mode=_SINGLE),
            pl.BlockSpec((1, dim), lambda b: (0, 0), pipeline_mode=_SINGLE),
            pl.BlockSpec((dim, h * dh), lambda b: (0, 0), pipeline_mode=_SINGLE),
            pl.BlockSpec((dim, dh), lambda b: (0, 0), pipeline_mode=_SINGLE),
            pl.BlockSpec((dim, dh), lambda b: (0, 0), pipeline_mode=_SINGLE),
            pl.BlockSpec((dim, ffi), lambda b: (0, 0), pipeline_mode=_SINGLE),
            pl.BlockSpec((dim, ffi), lambda b: (0, 0), pipeline_mode=_SINGLE),
            pl.BlockSpec((h * dh, dim), lambda b: (0, 0), pipeline_mode=_SINGLE),
            pl.BlockSpec((ffi, dim), lambda b: (0, 0), pipeline_mode=_SINGLE),
        ],
        out_specs=pl.BlockSpec((1, n, dim), lambda b: (b, 0, 0)),
        compiler_params=pltpu.CompilerParams(dimension_semantics=("parallel",)),
    )
    # TODO(synk): cross-call prefetch of the next layer's weights (DMA + semaphore
    # outputs) would hide the per-layer weight-DMA prologue at production dims.
    return f(x, kpad, cos, sin, p["gamma"], p["w_q"], p["w_k"], p["w_v"],
             p["w_ff_x"], p["w_ff_gate"], p["w_attn_out"], p["w_ff_out"])


def run_multimodal(x, ctx, cos, sin, pp, cp, cfg):
    B, n, dim = x.shape
    m = ctx.shape[1]
    h, dh = cfg["heads"], cfg["dim_head"]
    ffi = cfg["ff_mult"] * dim
    kernel = functools.partial(multimodal_kernel, heads=h, dim_head=dh)
    f = pl.pallas_call(
        kernel,
        out_shape=jax.ShapeDtypeStruct((B, n, dim), jnp.float32),
        grid=(B,),
        in_specs=[
            pl.BlockSpec((1, n, dim), lambda b: (b, 0, 0)),
            pl.BlockSpec((1, m, dim), lambda b: (b, 0, 0)),
            pl.BlockSpec((n, dh), lambda b: (0, 0), pipeline_mode=_SINGLE),
            pl.BlockSpec((n, dh), lambda b: (0, 0), pipeline_mode=_SINGLE),
            # ParallelTransformerBlock weights (bf16, single-buffered)
            pl.BlockSpec((1, dim), lambda b: (0, 0), pipeline_mode=_SINGLE),
            pl.BlockSpec((dim, h * dh), lambda b: (0, 0), pipeline_mode=_SINGLE),
            pl.BlockSpec((dim, dh), lambda b: (0, 0), pipeline_mode=_SINGLE),
            pl.BlockSpec((dim, dh), lambda b: (0, 0), pipeline_mode=_SINGLE),
            pl.BlockSpec((dim, ffi), lambda b: (0, 0), pipeline_mode=_SINGLE),
            pl.BlockSpec((dim, ffi), lambda b: (0, 0), pipeline_mode=_SINGLE),
            pl.BlockSpec((h * dh, dim), lambda b: (0, 0), pipeline_mode=_SINGLE),
            pl.BlockSpec((ffi, dim), lambda b: (0, 0), pipeline_mode=_SINGLE),
            # CrossAttention weights (bf16, single-buffered)
            pl.BlockSpec((1, dim), lambda b: (0, 0), pipeline_mode=_SINGLE),
            pl.BlockSpec((dim, h * dh), lambda b: (0, 0), pipeline_mode=_SINGLE),
            pl.BlockSpec((dim, dh), lambda b: (0, 0), pipeline_mode=_SINGLE),
            pl.BlockSpec((dim, dh), lambda b: (0, 0), pipeline_mode=_SINGLE),
            pl.BlockSpec((h * dh, dim), lambda b: (0, 0), pipeline_mode=_SINGLE),
            pl.BlockSpec((dim, ffi), lambda b: (0, 0), pipeline_mode=_SINGLE),
            pl.BlockSpec((dim, ffi), lambda b: (0, 0), pipeline_mode=_SINGLE),
            pl.BlockSpec((ffi, dim), lambda b: (0, 0), pipeline_mode=_SINGLE),
        ],
        out_specs=pl.BlockSpec((1, n, dim), lambda b: (b, 0, 0)),
        compiler_params=pltpu.CompilerParams(dimension_semantics=("parallel",)),
    )
    return f(x, ctx, cos, sin,
             pp["gamma"], pp["w_q"], pp["w_k"], pp["w_v"],
             pp["w_ff_x"], pp["w_ff_gate"], pp["w_attn_out"], pp["w_ff_out"],
             cp["gamma_x"], cp["w_q"], cp["w_k"], cp["w_v"], cp["w_out"],
             cp["w_ff_x"], cp["w_ff_gate"], cp["w_ff_out"])


def run_img_pool(q, ctx, p, pool_gamma, cfg):
    B, nq1, dim = q.shape
    m, cdim = ctx.shape[1], ctx.shape[2]
    h, dh = cfg["heads"], cfg["dim_head"]
    kernel = functools.partial(img_pool_kernel, heads=h, dim_head=dh)
    f = pl.pallas_call(
        kernel,
        out_shape=jax.ShapeDtypeStruct((B, nq1, dim), jnp.float32),
        grid=(B,),
        in_specs=[
            pl.BlockSpec((1, nq1, dim), lambda b: (b, 0, 0)),
            pl.BlockSpec((1, m, cdim), lambda b: (b, 0, 0)),
            pl.BlockSpec((1, dim), lambda b: (0, 0), pipeline_mode=_SINGLE),
            pl.BlockSpec((1, cdim), lambda b: (0, 0), pipeline_mode=_SINGLE),
            pl.BlockSpec((dim, h * dh), lambda b: (0, 0), pipeline_mode=_SINGLE),
            pl.BlockSpec((cdim, dh), lambda b: (0, 0), pipeline_mode=_SINGLE),
            pl.BlockSpec((cdim, dh), lambda b: (0, 0), pipeline_mode=_SINGLE),
            pl.BlockSpec((h * dh, dim), lambda b: (0, 0), pipeline_mode=_SINGLE),
            pl.BlockSpec((1, dim), lambda b: (0, 0), pipeline_mode=_SINGLE),
        ],
        out_specs=pl.BlockSpec((1, nq1, dim), lambda b: (b, 0, 0)),
        compiler_params=pltpu.CompilerParams(dimension_semantics=("parallel",)),
    )
    return f(q, ctx, p["gamma_x"], p["gamma_ctx"], p["w_q"], p["w_k"], p["w_v"],
             p["w_out"], pool_gamma)


def _vocab_tile(V, target=2048):
    # lane-dense vocab tile (multiple of 128) that evenly divides V; else full V.
    # On v6e/v5e (128 MiB VMEM) a larger `target` (4096-8192) further amortizes
    # per-grid-step overhead; 2048 is a chip-agnostic default.
    if V <= target or V % 128 != 0:
        return V
    t = (min(target, V) // 128) * 128
    while V % t != 0:
        t -= 128
    return max(t, 128)


def run_logits(x, gamma, emb):
    B, n, dim = x.shape
    V = emb.shape[0]
    TV = _vocab_tile(V)
    f = pl.pallas_call(
        logits_kernel,
        out_shape=jax.ShapeDtypeStruct((B, n, V), jnp.float32),
        grid=(B, V // TV),
        in_specs=[pl.BlockSpec((1, n, dim), lambda b, v: (b, 0, 0)),
                  pl.BlockSpec((1, dim), lambda b, v: (0, 0), pipeline_mode=_SINGLE),
                  pl.BlockSpec((TV, dim), lambda b, v: (v, 0))],
        out_specs=pl.BlockSpec((1, n, TV), lambda b, v: (b, 0, v)),
        scratch_shapes=[pltpu.VMEM((n, dim), jnp.float32)],
        compiler_params=pltpu.CompilerParams(
            dimension_semantics=("parallel", "arbitrary")),
    )
    return f(x, gamma, emb)


# ---------------------------------------------------------------------------
# Parameters (deterministic init; matmul weights stored transposed (in, out)
# in bfloat16; LN gammas and "activation-like" params stay f32)
# ---------------------------------------------------------------------------
def init_params(key, cfg):
    dim, dh, h = cfg["dim"], cfg["dim_head"], cfg["heads"]
    ffi = cfg["ff_mult"] * dim
    V = cfg["num_tokens"]
    idim = cfg["image_dim"]
    nq = cfg["num_img_queries"]
    scale = dh ** -0.5

    keys = iter(jax.random.split(key, 256))

    def nrm(shape, std):
        return jax.random.normal(next(keys), shape, jnp.float32) * std

    def lin(in_dim, out_dim, gain=1.0):
        # bf16 weight (MXU bf16-native path); q-scale can be folded via `gain`
        return (nrm((in_dim, out_dim), std=in_dim ** -0.5) * gain).astype(_BF16)

    def ptb_params():
        return dict(
            gamma=jnp.ones((1, dim), jnp.float32),
            w_q=lin(dim, h * dh, gain=scale),      # q scale folded into the weight
            w_k=lin(dim, dh),
            w_v=lin(dim, dh),
            w_ff_x=lin(dim, ffi),
            w_ff_gate=lin(dim, ffi),
            w_attn_out=lin(h * dh, dim),
            w_ff_out=lin(ffi, dim),
        )

    def cross_params(ctx_dim, norm_context, has_ff):
        p = dict(
            gamma_x=jnp.ones((1, dim), jnp.float32),
            w_q=lin(dim, h * dh, gain=scale),      # q scale folded into the weight
            w_k=lin(ctx_dim, dh),
            w_v=lin(ctx_dim, dh),
            w_out=lin(h * dh, dim),
        )
        if norm_context:
            p["gamma_ctx"] = jnp.ones((1, ctx_dim), jnp.float32)
        if has_ff:
            p["w_ff_x"] = lin(dim, ffi)
            p["w_ff_gate"] = lin(dim, ffi)
            p["w_ff_out"] = lin(ffi, dim)
        return p

    return dict(
        token_emb=nrm((V, dim), std=0.02).astype(_BF16),   # tied embedding, bf16
        text_cls_token=nrm((dim,), std=1.0),
        img_queries=nrm((nq + 1, dim), std=1.0),
        img_attn_pool=cross_params(idim, True, False),
        img_attn_pool_norm_gamma=jnp.ones((1, dim), jnp.float32),
        text_cls_norm_gamma=jnp.ones((1, dim), jnp.float32),
        logit_norm_gamma=jnp.ones((1, dim), jnp.float32),
        unimodal=[ptb_params() for _ in range(cfg["unimodal_depth"])],
        multimodal=[dict(ptb=ptb_params(), cross=cross_params(dim, False, True))
                    for _ in range(cfg["multimodal_depth"])],
    )


# ---------------------------------------------------------------------------
# Full CoCa forward (return_loss=False path: returns logits + embeddings)
# ---------------------------------------------------------------------------
def coca_forward(params, text, image_tokens, cfg):
    B, seq = text.shape
    dim = cfg["dim"]
    dh = cfg["dim_head"]
    n = seq + 1
    # NOTE: at production sizes pick seq so that n (=seq+1) is a multiple of 8
    # (sublane tile) -- alignment is free at model-definition time.

    # ----- embed_text (embedding gather + cls concat: glue) -----
    tok = jnp.take(params["token_emb"], text, axis=0).astype(jnp.float32)  # (B, seq, dim)
    cls = jnp.broadcast_to(params["text_cls_token"][None, None, :], (B, 1, dim))
    tt = jnp.concatenate([tok, cls], axis=1)                               # (B, n, dim)

    # key pad-keep vector (only restricts the final cls query row), (B, 1, n)
    kpad = jnp.concatenate([(text != cfg["pad_id"]).astype(jnp.float32),
                            jnp.ones((B, 1), jnp.float32)], axis=-1)[:, None, :]

    # rotary tables: computed once, shared by every layer; multimodal uses a slice
    inv_freq = 1.0 / (10000.0 ** (jnp.arange(0, dh, 2, dtype=jnp.float32) / dh))
    t = jnp.arange(n, dtype=jnp.float32)
    freqs = t[:, None] * inv_freq[None, :]
    pos = jnp.concatenate([freqs, freqs], axis=-1)                         # (n, dh)
    cos_u, sin_u = jnp.cos(pos), jnp.sin(pos)
    cos_m, sin_m = cos_u[:seq], sin_u[:seq]

    for lp in params["unimodal"]:
        tt = run_unimodal(tt, kpad, cos_u, sin_u, lp, cfg)

    text_cls = tt[:, -1]                                                   # (B, dim)
    tt = tt[:, :-1]                                                        # (B, seq, dim)
    # tiny (B, dim) LayerNorm: plain jnp, XLA fuses it under jit
    text_embeds = _ln(text_cls, params["text_cls_norm_gamma"])

    # ----- embed_image (image_tokens supplied; img_encoder is None) -----
    nq1 = params["img_queries"].shape[0]
    img_q = jnp.broadcast_to(params["img_queries"][None], (B, nq1, dim))
    img_q = run_img_pool(img_q, image_tokens, params["img_attn_pool"],
                         params["img_attn_pool_norm_gamma"], cfg)
    image_embeds = img_q[:, 0]                                             # (B, dim)
    img_ctx = img_q[:, 1:]                                                 # (B, nq, dim)

    # ----- multimodal layers (fused PTB + cross per layer, causal-only mask) -----
    for lp in params["multimodal"]:
        tt = run_multimodal(tt, img_ctx, cos_m, sin_m, lp["ptb"], lp["cross"], cfg)

    # ----- to_logits (LN hoisted out of vocab loop + tied-embedding matmul) -----
    logits = run_logits(tt, params["logit_norm_gamma"], params["token_emb"])
    # TODO(synk): loss path (caption cross-entropy + contrastive, EmbedToLatents,
    # temperature) not implemented; forward returns logits (return_loss=False).
    return logits, text_embeds, image_embeds


if __name__ == "__main__":
    cfg = dict(dim=32, num_tokens=64, dim_head=16, heads=2, ff_mult=4,
               image_dim=48, num_img_queries=7, pad_id=0,
               unimodal_depth=1, multimodal_depth=1)

    key = jax.random.PRNGKey(0)
    kp, kt, ki = jax.random.split(key, 3)
    params = init_params(kp, cfg)

    B, SEQ, M = 2, 8, 8
    text = jax.random.randint(kt, (B, SEQ), 0, cfg["num_tokens"], dtype=jnp.int32)
    image_tokens = jax.random.normal(ki, (B, M, cfg["image_dim"]), jnp.float32)

    @jax.jit
    def fwd(params, text, image_tokens):
        return coca_forward(params, text, image_tokens, cfg)

    logits, text_embeds, image_embeds = fwd(params, text, image_tokens)
    logits = jax.block_until_ready(logits)
    jax.block_until_ready(text_embeds)
    jax.block_until_ready(image_embeds)

    assert logits.shape == (B, SEQ, cfg["num_tokens"])
    assert text_embeds.shape == (B, cfg["dim"])
    assert image_embeds.shape == (B, cfg["dim"])
    assert bool(jnp.all(jnp.isfinite(logits)))
    print("KERNEL_OK")
</pallas_src>

<mosaic_0001>
module attributes {stable_mosaic.version = 11 : i64} {
  func.func @unimodal_kernel(%arg0: i32, %arg1: memref<1x9x32xf32, #tpu.memory_space<vmem>>, %arg2: memref<1x1x9xf32, #tpu.memory_space<vmem>>, %arg3: memref<9x16xf32, #tpu.memory_space<vmem>>, %arg4: memref<9x16xf32, #tpu.memory_space<vmem>>, %arg5: memref<1x32xf32, #tpu.memory_space<vmem>>, %arg6: memref<32x32xbf16, #tpu.memory_space<vmem>>, %arg7: memref<32x16xbf16, #tpu.memory_space<vmem>>, %arg8: memref<32x16xbf16, #tpu.memory_space<vmem>>, %arg9: memref<32x128xbf16, #tpu.memory_space<vmem>>, %arg10: memref<32x128xbf16, #tpu.memory_space<vmem>>, %arg11: memref<32x32xbf16, #tpu.memory_space<vmem>>, %arg12: memref<128x32xbf16, #tpu.memory_space<vmem>>, %arg13: memref<1x9x32xf32, #tpu.memory_space<vmem>>) attributes {dimension_semantics = [#tpu.dimension_semantics<parallel>], iteration_bounds = array<i64: 2>, scalar_prefetch = 0 : i64, scratch_operands = 0 : i64, tpu.core_type = #tpu.core_type<tc>, window_params = [{transform_indices = @transform_0, window_bounds = array<i64: 1, 9, 32>}, {transform_indices = @transform_1, window_bounds = array<i64: 1, 1, 9>}, {pipeline_mode = #tpu.pipeline_mode<synchronous>, transform_indices = @transform_2, window_bounds = array<i64: 9, 16>}, {pipeline_mode = #tpu.pipeline_mode<synchronous>, transform_indices = @transform_3, window_bounds = array<i64: 9, 16>}, {pipeline_mode = #tpu.pipeline_mode<synchronous>, transform_indices = @transform_4, window_bounds = array<i64: 1, 32>}, {pipeline_mode = #tpu.pipeline_mode<synchronous>, transform_indices = @transform_5, window_bounds = array<i64: 32, 32>}, {pipeline_mode = #tpu.pipeline_mode<synchronous>, transform_indices = @transform_6, window_bounds = array<i64: 32, 16>}, {pipeline_mode = #tpu.pipeline_mode<synchronous>, transform_indices = @transform_7, window_bounds = array<i64: 32, 16>}, {pipeline_mode = #tpu.pipeline_mode<synchronous>, transform_indices = @transform_8, window_bounds = array<i64: 32, 128>}, {pipeline_mode = #tpu.pipeline_mode<synchronous>, transform_indices = @transform_9, window_bounds = array<i64: 32, 128>}, {pipeline_mode = #tpu.pipeline_mode<synchronous>, transform_indices = @transform_10, window_bounds = array<i64: 32, 32>}, {pipeline_mode = #tpu.pipeline_mode<synchronous>, transform_indices = @transform_11, window_bounds = array<i64: 128, 32>}, {transform_indices = @transform_12, window_bounds = array<i64: 1, 9, 32>}]} {
    %c0 = arith.constant 0 : index
    %c0_0 = arith.constant 0 : index
    %c0_1 = arith.constant 0 : index
    %0 = vector.load %arg1[%c0, %c0_0, %c0_1] : memref<1x9x32xf32, #tpu.memory_space<vmem>>, vector<1x9x32xf32>
    %1 = vector.shape_cast %0 : vector<1x9x32xf32> to vector<9x32xf32>
    %c0_2 = arith.constant 0 : index
    %c0_3 = arith.constant 0 : index
    %c0_4 = arith.constant 0 : index
    %2 = vector.load %arg2[%c0_2, %c0_3, %c0_4] : memref<1x1x9xf32, #tpu.memory_space<vmem>>, vector<1x1x9xf32>
    %3 = vector.shape_cast %2 : vector<1x1x9xf32> to vector<1x9xf32>
    %c0_5 = arith.constant 0 : index
    %c0_6 = arith.constant 0 : index
    %4 = vector.load %arg3[%c0_5, %c0_6] : memref<9x16xf32, #tpu.memory_space<vmem>>, vector<9x16xf32>
    %c0_7 = arith.constant 0 : index
    %c0_8 = arith.constant 0 : index
    %5 = vector.load %arg4[%c0_7, %c0_8] : memref<9x16xf32, #tpu.memory_space<vmem>>, vector<9x16xf32>
    %c0_9 = arith.constant 0 : index
    %c0_10 = arith.constant 0 : index
    %6 = vector.load %arg5[%c0_9, %c0_10] : memref<1x32xf32, #tpu.memory_space<vmem>>, vector<1x32xf32>
    %c0_11 = arith.constant 0 : index
    %c0_12 = arith.constant 0 : index
    %7 = vector.load %arg6[%c0_11, %c0_12] : memref<32x32xbf16, #tpu.memory_space<vmem>>, vector<32x32xbf16>
    %c0_13 = arith.constant 0 : index
    %c0_14 = arith.constant 0 : index
    %8 = vector.load %arg7[%c0_13, %c0_14] : memref<32x16xbf16, #tpu.memory_space<vmem>>, vector<32x16xbf16>
    %c0_15 = arith.constant 0 : index
    %c0_16 = arith.constant 0 : index
    %9 = vector.load %arg8[%c0_15, %c0_16] : memref<32x16xbf16, #tpu.memory_space<vmem>>, vector<32x16xbf16>
    %c0_17 = arith.constant 0 : index
    %c0_18 = arith.constant 0 : index
    %10 = vector.load %arg9[%c0_17, %c0_18] : memref<32x128xbf16, #tpu.memory_space<vmem>>, vector<32x128xbf16>
    %c0_19 = arith.constant 0 : index
    %c0_20 = arith.constant 0 : index
    %11 = vector.load %arg10[%c0_19, %c0_20] : memref<32x128xbf16, #tpu.memory_space<vmem>>, vector<32x128xbf16>
    %c0_21 = arith.constant 0 : index
    %c0_22 = arith.constant 0 : index
    %12 = vector.load %arg11[%c0_21, %c0_22] : memref<32x32xbf16, #tpu.memory_space<vmem>>, vector<32x32xbf16>
    %c0_23 = arith.constant 0 : index
    %c0_24 = arith.constant 0 : index
    %13 = vector.load %arg12[%c0_23, %c0_24] : memref<128x32xbf16, #tpu.memory_space<vmem>>, vector<128x32xbf16>
    %cst = arith.constant dense<0.000000e+00> : vector<9xf32>
    %14 = vector.multi_reduction <add>, %1, %cst [1] : vector<9x32xf32> to vector<9xf32>
    %15 = vector.shape_cast %14 : vector<9xf32> to vector<9x1xf32>
    %cst_25 = arith.constant 3.200000e+01 : f32
    %16 = vector.broadcast %cst_25 : f32 to vector<9x1xf32>
    %17 = arith.divf %15, %16 : vector<9x1xf32>
    %18 = vector.broadcast %17 : vector<9x1xf32> to vector<9x32xf32>
    %19 = arith.subf %1, %18 : vector<9x32xf32>
    %20 = arith.mulf %19, %19 : vector<9x32xf32>
    %cst_26 = arith.constant dense<0.000000e+00> : vector<9xf32>
    %21 = vector.multi_reduction <add>, %20, %cst_26 [1] : vector<9x32xf32> to vector<9xf32>
    %22 = vector.shape_cast %21 : vector<9xf32> to vector<9x1xf32>
    %cst_27 = arith.constant 3.200000e+01 : f32
    %23 = vector.broadcast %cst_27 : f32 to vector<9x1xf32>
    %24 = arith.divf %22, %23 : vector<9x1xf32>
    %25 = vector.broadcast %17 : vector<9x1xf32> to vector<9x32xf32>
    %26 = arith.subf %1, %25 : vector<9x32xf32>
    %cst_28 = arith.constant 9.99999974E-6 : f32
    %27 = vector.broadcast %cst_28 : f32 to vector<9x1xf32>
    %28 = arith.addf %24, %27 : vector<9x1xf32>
    %29 = math.rsqrt %28 : vector<9x1xf32>
    %30 = vector.broadcast %29 : vector<9x1xf32> to vector<9x32xf32>
    %31 = arith.mulf %26, %30 : vector<9x32xf32>
    %32 = vector.broadcast %6 : vector<1x32xf32> to vector<9x32xf32>
    %33 = arith.mulf %31, %32 : vector<9x32xf32>
    %34 = arith.truncf %33 : vector<9x32xf32> to vector<9x32xbf16>
    %cst_29 = arith.constant dense<0.000000e+00> : vector<9x16xf32>
    %35 = tpu.matmul %34, %8, %cst_29 {dimension_numbers = #tpu.dot_dimension_numbers<[1], [0], [0], [1], [0, 0, 1, 1], [], []>} : vector<9x32xbf16>, vector<32x16xbf16>, vector<9x16xf32> -> vector<9x16xf32>
    %36 = vector.extract_strided_slice %35 {offsets = [0, 0], sizes = [9, 8], strides = [1, 1]} : vector<9x16xf32> to vector<9x8xf32>
    %37 = vector.extract_strided_slice %35 {offsets = [0, 8], sizes = [9, 8], strides = [1, 1]} : vector<9x16xf32> to vector<9x8xf32>
    %cst_30 = arith.constant 0.000000e+00 : f32
    %38 = vector.broadcast %cst_30 : f32 to vector<9x8xf32>
    %39 = arith.subf %38, %37 : vector<9x8xf32>
    %40 = tpu.concatenate %39, %36 in 1 : vector<9x8xf32>, vector<9x8xf32> -> vector<9x16xf32>
    %41 = arith.mulf %35, %4 : vector<9x16xf32>
    %42 = arith.mulf %40, %5 : vector<9x16xf32>
    %43 = arith.addf %41, %42 : vector<9x16xf32>
    %cst_31 = arith.constant dense<0.000000e+00> : vector<9x16xf32>
    %44 = tpu.matmul %34, %9, %cst_31 {dimension_numbers = #tpu.dot_dimension_numbers<[1], [0], [0], [1], [0, 0, 1, 1], [], []>} : vector<9x32xbf16>, vector<32x16xbf16>, vector<9x16xf32> -> vector<9x16xf32>
    %45 = tpu.iota {dimensions = array<i32: 0>} : vector<9x9xi32>
    %46 = tpu.iota {dimensions = array<i32: 1>} : vector<9x9xi32>
    %47 = arith.cmpi sle, %46, %45 : vector<9x9xi32>
    %c8_i32 = arith.constant 8 : i32
    %48 = vector.broadcast %c8_i32 : i32 to vector<9x9xi32>
    %49 = arith.cmpi slt, %45, %48 : vector<9x9xi32>
    %cst_32 = arith.constant 5.000000e-01 : f32
    %50 = vector.broadcast %cst_32 : f32 to vector<1x9xf32>
    %51 = arith.cmpf ogt, %3, %50 : vector<1x9xf32>
    %52 = vector.broadcast %51 : vector<1x9xi1> to vector<9x9xi1>
    %53 = arith.ori %49, %52 : vector<9x9xi1>
    %54 = arith.andi %47, %53 : vector<9x9xi1>
    %cst_33 = arith.constant 0.000000e+00 : f32
    %cst_34 = arith.constant -1.000000e+30 : f32
    %55 = vector.broadcast %cst_33 : f32 to vector<9x9xf32>
    %56 = vector.broadcast %cst_34 : f32 to vector<9x9xf32>
    %57 = arith.select %54, %55, %56 : vector<9x9xi1>, vector<9x9xf32>
    %cst_35 = arith.constant dense<0.000000e+00> : vector<9x32xf32>
    %58 = tpu.matmul %34, %7, %cst_35 {dimension_numbers = #tpu.dot_dimension_numbers<[1], [0], [0], [1], [0, 0, 1, 1], [], []>} : vector<9x32xbf16>, vector<32x32xbf16>, vector<9x32xf32> -> vector<9x32xf32>
    %59 = vector.extract_strided_slice %58 {offsets = [0, 0], sizes = [9, 16], strides = [1, 1]} : vector<9x32xf32> to vector<9x16xf32>
    %60 = vector.extract_strided_slice %58 {offsets = [0, 16], sizes = [9, 16], strides = [1, 1]} : vector<9x32xf32> to vector<9x16xf32>
    %61 = tpu.concatenate %59, %60 in 0 : vector<9x16xf32>, vector<9x16xf32> -> vector<18x16xf32>
    %62 = tpu.concatenate %4, %4 in 0 : vector<9x16xf32>, vector<9x16xf32> -> vector<18x16xf32>
    %63 = tpu.concatenate %5, %5 in 0 : vector<9x16xf32>, vector<9x16xf32> -> vector<18x16xf32>
    %64 = vector.extract_strided_slice %61 {offsets = [0, 0], sizes = [18, 8], strides = [1, 1]} : vector<18x16xf32> to vector<18x8xf32>
    %65 = vector.extract_strided_slice %61 {offsets = [0, 8], sizes = [18, 8], strides = [1, 1]} : vector<18x16xf32> to vector<18x8xf32>
    %cst_36 = arith.constant 0.000000e+00 : f32
    %66 = vector.broadcast %cst_36 : f32 to vector<18x8xf32>
    %67 = arith.subf %66, %65 : vector<18x8xf32>
    %68 = tpu.concatenate %67, %64 in 1 : vector<18x8xf32>, vector<18x8xf32> -> vector<18x16xf32>
    %69 = arith.mulf %61, %62 : vector<18x16xf32>
    %70 = arith.mulf %68, %63 : vector<18x16xf32>
    %71 = arith.addf %69, %70 : vector<18x16xf32>
    %72 = arith.truncf %71 : vector<18x16xf32> to vector<18x16xbf16>
    %73 = arith.truncf %43 : vector<9x16xf32> to vector<9x16xbf16>
    %cst_37 = arith.constant dense<0.000000e+00> : vector<18x9xf32>
    %74 = tpu.matmul %72, %73, %cst_37 {dimension_numbers = #tpu.dot_dimension_numbers<[1], [1], [0], [0], [0, 0, 1, 0], [], []>} : vector<18x16xbf16>, vector<9x16xbf16>, vector<18x9xf32> -> vector<18x9xf32>
    %75 = tpu.concatenate %57, %57 in 0 : vector<9x9xf32>, vector<9x9xf32> -> vector<18x9xf32>
    %76 = arith.addf %74, %75 : vector<18x9xf32>
    %cst_38 = arith.constant dense<0xFF800000> : vector<18xf32>
    %77 = vector.multi_reduction <maximumf>, %76, %cst_38 [1] : vector<18x9xf32> to vector<18xf32>
    %78 = vector.shape_cast %77 : vector<18xf32> to vector<18x1xf32>
    %79 = vector.broadcast %78 : vector<18x1xf32> to vector<18x9xf32>
    %80 = arith.subf %76, %79 : vector<18x9xf32>
    %81 = math.exp %80 : vector<18x9xf32>
    %cst_39 = arith.constant dense<0.000000e+00> : vector<18xf32>
    %82 = vector.multi_reduction <add>, %81, %cst_39 [1] : vector<18x9xf32> to vector<18xf32>
    %83 = vector.shape_cast %82 : vector<18xf32> to vector<18x1xf32>
    %84 = tpu.reciprocal %83 {approx = true} : vector<18x1xf32> -> vector<18x1xf32>
    %85 = vector.broadcast %84 : vector<18x1xf32> to vector<18x9xf32>
    %86 = arith.mulf %81, %85 : vector<18x9xf32>
    %87 = arith.truncf %86 : vector<18x9xf32> to vector<18x9xbf16>
    %88 = arith.truncf %44 : vector<9x16xf32> to vector<9x16xbf16>
    %cst_40 = arith.constant dense<0.000000e+00> : vector<18x16xf32>
    %89 = tpu.matmul %87, %88, %cst_40 {dimension_numbers = #tpu.dot_dimension_numbers<[1], [0], [0], [1], [0, 0, 1, 1], [], []>} : vector<18x9xbf16>, vector<9x16xbf16>, vector<18x16xf32> -> vector<18x16xf32>
    %90 = vector.extract_strided_slice %89 {offsets = [0, 0], sizes = [9, 16], strides = [1, 1]} : vector<18x16xf32> to vector<9x16xf32>
    %91 = vector.extract_strided_slice %89 {offsets = [9, 0], sizes = [9, 16], strides = [1, 1]} : vector<18x16xf32> to vector<9x16xf32>
    %92 = tpu.concatenate %90, %91 in 1 : vector<9x16xf32>, vector<9x16xf32> -> vector<9x32xf32>
    %93 = arith.truncf %92 : vector<9x32xf32> to vector<9x32xbf16>
    %cst_41 = arith.constant dense<0.000000e+00> : vector<9x32xf32>
    %94 = tpu.matmul %93, %12, %cst_41 {dimension_numbers = #tpu.dot_dimension_numbers<[1], [0], [0], [1], [0, 0, 1, 1], [], []>} : vector<9x32xbf16>, vector<32x32xbf16>, vector<9x32xf32> -> vector<9x32xf32>
    %cst_42 = arith.constant dense<0.000000e+00> : vector<9x128xf32>
    %95 = tpu.matmul %34, %10, %cst_42 {dimension_numbers = #tpu.dot_dimension_numbers<[1], [0], [0], [1], [0, 0, 1, 1], [], []>} : vector<9x32xbf16>, vector<32x128xbf16>, vector<9x128xf32> -> vector<9x128xf32>
    %cst_43 = arith.constant dense<0.000000e+00> : vector<9x128xf32>
    %96 = tpu.matmul %34, %11, %cst_43 {dimension_numbers = #tpu.dot_dimension_numbers<[1], [0], [0], [1], [0, 0, 1, 1], [], []>} : vector<9x32xbf16>, vector<32x128xbf16>, vector<9x128xf32> -> vector<9x128xf32>
    %97 = arith.negf %96 : vector<9x128xf32>
    %98 = math.exp %97 : vector<9x128xf32>
    %cst_44 = arith.constant 1.000000e+00 : f32
    %99 = vector.broadcast %cst_44 : f32 to vector<9x128xf32>
    %100 = arith.addf %99, %98 : vector<9x128xf32>
    %101 = arith.divf %99, %100 : vector<9x128xf32>
    %102 = arith.mulf %96, %101 : vector<9x128xf32>
    %103 = arith.mulf %102, %95 : vector<9x128xf32>
    %104 = arith.truncf %103 : vector<9x128xf32> to vector<9x128xbf16>
    %cst_45 = arith.constant dense<0.000000e+00> : vector<9x32xf32>
    %105 = tpu.matmul %104, %13, %cst_45 {dimension_numbers = #tpu.dot_dimension_numbers<[1], [0], [0], [1], [0, 0, 1, 1], [], []>} : vector<9x128xbf16>, vector<128x32xbf16>, vector<9x32xf32> -> vector<9x32xf32>
    %106 = arith.addf %1, %94 : vector<9x32xf32>
    %107 = arith.addf %106, %105 : vector<9x32xf32>
    %c0_46 = arith.constant 0 : index
    %c0_47 = arith.constant 0 : index
    %c0_48 = arith.constant 0 : index
    %108 = vector.load %arg13[%c0_46, %c0_47, %c0_48] : memref<1x9x32xf32, #tpu.memory_space<vmem>>, vector<1x9x32xf32>
    %109 = vector.shape_cast %108 : vector<1x9x32xf32> to vector<9x32xf32>
    %110 = vector.shape_cast %107 : vector<9x32xf32> to vector<1x9x32xf32>
    tpu.vector_store %arg13[%c0_46, %c0_47, %c0_48], %110 {strides = array<i32>} : memref<1x9x32xf32, #tpu.memory_space<vmem>>, vector<1x9x32xf32>,
    return
  }
  func.func @transform_0(%arg0: i32) -> (i32, i32, i32) {
    %c0_i32 = arith.constant 0 : i32
    %c0_i32_0 = arith.constant 0 : i32
    %c0_i32_1 = arith.constant 0 : i32
    return %arg0, %c0_i32, %c0_i32_0 : i32, i32, i32
  }
  func.func @transform_1(%arg0: i32) -> (i32, i32, i32) {
    %c0_i32 = arith.constant 0 : i32
    %c0_i32_0 = arith.constant 0 : i32
    %c0_i32_1 = arith.constant 0 : i32
    return %arg0, %c0_i32, %c0_i32_0 : i32, i32, i32
  }
  func.func @transform_2(%arg0: i32) -> (i32, i32) {
    %c0_i32 = arith.constant 0 : i32
    %c0_i32_0 = arith.constant 0 : i32
    %c0_i32_1 = arith.constant 0 : i32
    return %c0_i32, %c0_i32_0 : i32, i32
  }
  func.func @transform_3(%arg0: i32) -> (i32, i32) {
    %c0_i32 = arith.constant 0 : i32
    %c0_i32_0 = arith.constant 0 : i32
    %c0_i32_1 = arith.constant 0 : i32
    return %c0_i32, %c0_i32_0 : i32, i32
  }
  func.func @transform_4(%arg0: i32) -> (i32, i32) {
    %c0_i32 = arith.constant 0 : i32
    %c0_i32_0 = arith.constant 0 : i32
    %c0_i32_1 = arith.constant 0 : i32
    return %c0_i32, %c0_i32_0 : i32, i32
  }
  func.func @transform_5(%arg0: i32) -> (i32, i32) {
    %c0_i32 = arith.constant 0 : i32
    %c0_i32_0 = arith.constant 0 : i32
    %c0_i32_1 = arith.constant 0 : i32
    return %c0_i32, %c0_i32_0 : i32, i32
  }
  func.func @transform_6(%arg0: i32) -> (i32, i32) {
    %c0_i32 = arith.constant 0 : i32
    %c0_i32_0 = arith.constant 0 : i32
    %c0_i32_1 = arith.constant 0 : i32
    return %c0_i32, %c0_i32_0 : i32, i32
  }
  func.func @transform_7(%arg0: i32) -> (i32, i32) {
    %c0_i32 = arith.constant 0 : i32
    %c0_i32_0 = arith.constant 0 : i32
    %c0_i32_1 = arith.constant 0 : i32
    return %c0_i32, %c0_i32_0 : i32, i32
  }
  func.func @transform_8(%arg0: i32) -> (i32, i32) {
    %c0_i32 = arith.constant 0 : i32
    %c0_i32_0 = arith.constant 0 : i32
    %c0_i32_1 = arith.constant 0 : i32
    return %c0_i32, %c0_i32_0 : i32, i32
  }
  func.func @transform_9(%arg0: i32) -> (i32, i32) {
    %c0_i32 = arith.constant 0 : i32
    %c0_i32_0 = arith.constant 0 : i32
    %c0_i32_1 = arith.constant 0 : i32
    return %c0_i32, %c0_i32_0 : i32, i32
  }
  func.func @transform_10(%arg0: i32) -> (i32, i32) {
    %c0_i32 = arith.constant 0 : i32
    %c0_i32_0 = arith.constant 0 : i32
    %c0_i32_1 = arith.constant 0 : i32
    return %c0_i32, %c0_i32_0 : i32, i32
  }
  func.func @transform_11(%arg0: i32) -> (i32, i32) {
    %c0_i32 = arith.constant 0 : i32
    %c0_i32_0 = arith.constant 0 : i32
    %c0_i32_1 = arith.constant 0 : i32
    return %c0_i32, %c0_i32_0 : i32, i32
  }
  func.func @transform_12(%arg0: i32) -> (i32, i32, i32) {
    %c0_i32 = arith.constant 0 : i32
    %c0_i32_0 = arith.constant 0 : i32
    %c0_i32_1 = arith.constant 0 : i32
    return %arg0, %c0_i32, %c0_i32_0 : i32, i32, i32
  }
}

module attributes {stable_mosaic.version = 11 : i64} {
  func.func @img_pool_kernel(%arg0: i32, %arg1: memref<1x8x32xf32, #tpu.memory_space<vmem>>, %arg2: memref<1x8x48xf32, #tpu.memory_space<vmem>>, %arg3: memref<1x32xf32, #tpu.memory_space<vmem>>, %arg4: memref<1x48xf32, #tpu.memory_space<vmem>>, %arg5: memref<32x32xbf16, #tpu.memory_space<vmem>>, %arg6: memref<48x16xbf16, #tpu.memory_space<vmem>>, %arg7: memref<48x16xbf16, #tpu.memory_space<vmem>>, %arg8: memref<32x32xbf16, #tpu.memory_space<vmem>>, %arg9: memref<1x32xf32, #tpu.memory_space<vmem>>, %arg10: memref<1x8x32xf32, #tpu.memory_space<vmem>>) attributes {dimension_semantics = [#tpu.dimension_semantics<parallel>], iteration_bounds = array<i64: 2>, scalar_prefetch = 0 : i64, scratch_operands = 0 : i64, tpu.core_type = #tpu.core_type<tc>, window_params = [{transform_indices = @transform_0, window_bounds = array<i64: 1, 8, 32>}, {transform_indices = @transform_1, window_bounds = array<i64: 1, 8, 48>}, {pipeline_mode = #tpu.pipeline_mode<synchronous>, transform_indices = @transform_2, window_bounds = array<i64: 1, 32>}, {pipeline_mode = #tpu.pipeline_mode<synchronous>, transform_indices = @transform_3, window_bounds = array<i64: 1, 48>}, {pipeline_mode = #tpu.pipeline_mode<synchronous>, transform_indices = @transform_4, window_bounds = array<i64: 32, 32>}, {pipeline_mode = #tpu.pipeline_mode<synchronous>, transform_indices = @transform_5, window_bounds = array<i64: 48, 16>}, {pipeline_mode = #tpu.pipeline_mode<synchronous>, transform_indices = @transform_6, window_bounds = array<i64: 48, 16>}, {pipeline_mode = #tpu.pipeline_mode<synchronous>, transform_indices = @transform_7, window_bounds = array<i64: 32, 32>}, {pipeline_mode = #tpu.pipeline_mode<synchronous>, transform_indices = @transform_8, window_bounds = array<i64: 1, 32>}, {transform_indices = @transform_9, window_bounds = array<i64: 1, 8, 32>}]} {
    %c0 = arith.constant 0 : index
    %c0_0 = arith.constant 0 : index
    %c0_1 = arith.constant 0 : index
    %0 = vector.load %arg1[%c0, %c0_0, %c0_1] : memref<1x8x32xf32, #tpu.memory_space<vmem>>, vector<1x8x32xf32>
    %1 = vector.shape_cast %0 : vector<1x8x32xf32> to vector<8x32xf32>
    %c0_2 = arith.constant 0 : index
    %c0_3 = arith.constant 0 : index
    %c0_4 = arith.constant 0 : index
    %2 = vector.load %arg2[%c0_2, %c0_3, %c0_4] : memref<1x8x48xf32, #tpu.memory_space<vmem>>, vector<1x8x48xf32>
    %3 = vector.shape_cast %2 : vector<1x8x48xf32> to vector<8x48xf32>
    %c0_5 = arith.constant 0 : index
    %c0_6 = arith.constant 0 : index
    %4 = vector.load %arg3[%c0_5, %c0_6] : memref<1x32xf32, #tpu.memory_space<vmem>>, vector<1x32xf32>
    %c0_7 = arith.constant 0 : index
    %c0_8 = arith.constant 0 : index
    %5 = vector.load %arg4[%c0_7, %c0_8] : memref<1x48xf32, #tpu.memory_space<vmem>>, vector<1x48xf32>
    %c0_9 = arith.constant 0 : index
    %c0_10 = arith.constant 0 : index
    %6 = vector.load %arg5[%c0_9, %c0_10] : memref<32x32xbf16, #tpu.memory_space<vmem>>, vector<32x32xbf16>
    %c0_11 = arith.constant 0 : index
    %c0_12 = arith.constant 0 : index
    %7 = vector.load %arg6[%c0_11, %c0_12] : memref<48x16xbf16, #tpu.memory_space<vmem>>, vector<48x16xbf16>
    %c0_13 = arith.constant 0 : index
    %c0_14 = arith.constant 0 : index
    %8 = vector.load %arg7[%c0_13, %c0_14] : memref<48x16xbf16, #tpu.memory_space<vmem>>, vector<48x16xbf16>
    %c0_15 = arith.constant 0 : index
    %c0_16 = arith.constant 0 : index
    %9 = vector.load %arg8[%c0_15, %c0_16] : memref<32x32xbf16, #tpu.memory_space<vmem>>, vector<32x32xbf16>
    %cst = arith.constant dense<0.000000e+00> : vector<8xf32>
    %10 = vector.multi_reduction <add>, %1, %cst [1] : vector<8x32xf32> to vector<8xf32>
    %11 = vector.shape_cast %10 : vector<8xf32> to vector<8x1xf32>
    %cst_17 = arith.constant 3.200000e+01 : f32
    %12 = vector.broadcast %cst_17 : f32 to vector<8x1xf32>
    %13 = arith.divf %11, %12 : vector<8x1xf32>
    %14 = vector.broadcast %13 : vector<8x1xf32> to vector<8x32xf32>
    %15 = arith.subf %1, %14 : vector<8x32xf32>
    %16 = arith.mulf %15, %15 : vector<8x32xf32>
    %cst_18 = arith.constant dense<0.000000e+00> : vector<8xf32>
    %17 = vector.multi_reduction <add>, %16, %cst_18 [1] : vector<8x32xf32> to vector<8xf32>
    %18 = vector.shape_cast %17 : vector<8xf32> to vector<8x1xf32>
    %cst_19 = arith.constant 3.200000e+01 : f32
    %19 = vector.broadcast %cst_19 : f32 to vector<8x1xf32>
    %20 = arith.divf %18, %19 : vector<8x1xf32>
    %21 = vector.broadcast %13 : vector<8x1xf32> to vector<8x32xf32>
    %22 = arith.subf %1, %21 : vector<8x32xf32>
    %cst_20 = arith.constant 9.99999974E-6 : f32
    %23 = vector.broadcast %cst_20 : f32 to vector<8x1xf32>
    %24 = arith.addf %20, %23 : vector<8x1xf32>
    %25 = math.rsqrt %24 : vector<8x1xf32>
    %26 = vector.broadcast %25 : vector<8x1xf32> to vector<8x32xf32>
    %27 = arith.mulf %22, %26 : vector<8x32xf32>
    %28 = vector.broadcast %4 : vector<1x32xf32> to vector<8x32xf32>
    %29 = arith.mulf %27, %28 : vector<8x32xf32>
    %30 = arith.truncf %29 : vector<8x32xf32> to vector<8x32xbf16>
    %cst_21 = arith.constant dense<0.000000e+00> : vector<8xf32>
    %31 = vector.multi_reduction <add>, %3, %cst_21 [1] : vector<8x48xf32> to vector<8xf32>
    %32 = vector.shape_cast %31 : vector<8xf32> to vector<8x1xf32>
    %cst_22 = arith.constant 4.800000e+01 : f32
    %33 = vector.broadcast %cst_22 : f32 to vector<8x1xf32>
    %34 = arith.divf %32, %33 : vector<8x1xf32>
    %35 = vector.broadcast %34 : vector<8x1xf32> to vector<8x48xf32>
    %36 = arith.subf %3, %35 : vector<8x48xf32>
    %37 = arith.mulf %36, %36 : vector<8x48xf32>
    %cst_23 = arith.constant dense<0.000000e+00> : vector<8xf32>
    %38 = vector.multi_reduction <add>, %37, %cst_23 [1] : vector<8x48xf32> to vector<8xf32>
    %39 = vector.shape_cast %38 : vector<8xf32> to vector<8x1xf32>
    %cst_24 = arith.constant 4.800000e+01 : f32
    %40 = vector.broadcast %cst_24 : f32 to vector<8x1xf32>
    %41 = arith.divf %39, %40 : vector<8x1xf32>
    %42 = vector.broadcast %34 : vector<8x1xf32> to vector<8x48xf32>
    %43 = arith.subf %3, %42 : vector<8x48xf32>
    %cst_25 = arith.constant 9.99999974E-6 : f32
    %44 = vector.broadcast %cst_25 : f32 to vector<8x1xf32>
    %45 = arith.addf %41, %44 : vector<8x1xf32>
    %46 = math.rsqrt %45 : vector<8x1xf32>
    %47 = vector.broadcast %46 : vector<8x1xf32> to vector<8x48xf32>
    %48 = arith.mulf %43, %47 : vector<8x48xf32>
    %49 = vector.broadcast %5 : vector<1x48xf32> to vector<8x48xf32>
    %50 = arith.mulf %48, %49 : vector<8x48xf32>
    %51 = arith.truncf %50 : vector<8x48xf32> to vector<8x48xbf16>
    %cst_26 = arith.constant dense<0.000000e+00> : vector<8x16xf32>
    %52 = tpu.matmul %51, %7, %cst_26 {dimension_numbers = #tpu.dot_dimension_numbers<[1], [0], [0], [1], [0, 0, 1, 1], [], []>} : vector<8x48xbf16>, vector<48x16xbf16>, vector<8x16xf32> -> vector<8x16xf32>
    %cst_27 = arith.constant dense<0.000000e+00> : vector<8x16xf32>
    %53 = tpu.matmul %51, %8, %cst_27 {dimension_numbers = #tpu.dot_dimension_numbers<[1], [0], [0], [1], [0, 0, 1, 1], [], []>} : vector<8x48xbf16>, vector<48x16xbf16>, vector<8x16xf32> -> vector<8x16xf32>
    %cst_28 = arith.constant dense<0.000000e+00> : vector<8x32xf32>
    %54 = tpu.matmul %30, %6, %cst_28 {dimension_numbers = #tpu.dot_dimension_numbers<[1], [0], [0], [1], [0, 0, 1, 1], [], []>} : vector<8x32xbf16>, vector<32x32xbf16>, vector<8x32xf32> -> vector<8x32xf32>
    %55 = vector.extract_strided_slice %54 {offsets = [0, 0], sizes = [8, 16], strides = [1, 1]} : vector<8x32xf32> to vector<8x16xf32>
    %56 = vector.extract_strided_slice %54 {offsets = [0, 16], sizes = [8, 16], strides = [1, 1]} : vector<8x32xf32> to vector<8x16xf32>
    %57 = tpu.concatenate %55, %56 in 0 : vector<8x16xf32>, vector<8x16xf32> -> vector<16x16xf32>
    %58 = arith.truncf %57 : vector<16x16xf32> to vector<16x16xbf16>
    %59 = arith.truncf %52 : vector<8x16xf32> to vector<8x16xbf16>
    %cst_29 = arith.constant dense<0.000000e+00> : vector<16x8xf32>
    %60 = tpu.matmul %58, %59, %cst_29 {dimension_numbers = #tpu.dot_dimension_numbers<[1], [1], [0], [0], [0, 0, 1, 0], [], []>} : vector<16x16xbf16>, vector<8x16xbf16>, vector<16x8xf32> -> vector<16x8xf32>
    %cst_30 = arith.constant dense<0xFF800000> : vector<16xf32>
    %61 = vector.multi_reduction <maximumf>, %60, %cst_30 [1] : vector<16x8xf32> to vector<16xf32>
    %62 = vector.shape_cast %61 : vector<16xf32> to vector<16x1xf32>
    %63 = vector.broadcast %62 : vector<16x1xf32> to vector<16x8xf32>
    %64 = arith.subf %60, %63 : vector<16x8xf32>
    %65 = math.exp %64 : vector<16x8xf32>
    %cst_31 = arith.constant dense<0.000000e+00> : vector<16xf32>
    %66 = vector.multi_reduction <add>, %65, %cst_31 [1] : vector<16x8xf32> to vector<16xf32>
    %67 = vector.shape_cast %66 : vector<16xf32> to vector<16x1xf32>
    %68 = tpu.reciprocal %67 {approx = true} : vector<16x1xf32> -> vector<16x1xf32>
    %69 = vector.broadcast %68 : vector<16x1xf32> to vector<16x8xf32>
    %70 = arith.mulf %65, %69 : vector<16x8xf32>
    %71 = arith.truncf %70 : vector<16x8xf32> to vector<16x8xbf16>
    %72 = arith.truncf %53 : vector<8x16xf32> to vector<8x16xbf16>
    %cst_32 = arith.constant dense<0.000000e+00> : vector<16x16xf32>
    %73 = tpu.matmul %71, %72, %cst_32 {dimension_numbers = #tpu.dot_dimension_numbers<[1], [0], [0], [1], [0, 0, 1, 1], [], []>} : vector<16x8xbf16>, vector<8x16xbf16>, vector<16x16xf32> -> vector<16x16xf32>
    %74 = vector.extract_strided_slice %73 {offsets = [0, 0], sizes = [8, 16], strides = [1, 1]} : vector<16x16xf32> to vector<8x16xf32>
    %75 = vector.extract_strided_slice %73 {offsets = [8, 0], sizes = [8, 16], strides = [1, 1]} : vector<16x16xf32> to vector<8x16xf32>
    %76 = tpu.concatenate %74, %75 in 1 : vector<8x16xf32>, vector<8x16xf32> -> vector<8x32xf32>
    %77 = arith.truncf %76 : vector<8x32xf32> to vector<8x32xbf16>
    %cst_33 = arith.constant dense<0.000000e+00> : vector<8x32xf32>
    %78 = tpu.matmul %77, %9, %cst_33 {dimension_numbers = #tpu.dot_dimension_numbers<[1], [0], [0], [1], [0, 0, 1, 1], [], []>} : vector<8x32xbf16>, vector<32x32xbf16>, vector<8x32xf32> -> vector<8x32xf32>
    %c0_34 = arith.constant 0 : index
    %c0_35 = arith.constant 0 : index
    %79 = vector.load %arg9[%c0_34, %c0_35] : memref<1x32xf32, #tpu.memory_space<vmem>>, vector<1x32xf32>
    %cst_36 = arith.constant dense<0.000000e+00> : vector<8xf32>
    %80 = vector.multi_reduction <add>, %78, %cst_36 [1] : vector<8x32xf32> to vector<8xf32>
    %81 = vector.shape_cast %80 : vector<8xf32> to vector<8x1xf32>
    %cst_37 = arith.constant 3.200000e+01 : f32
    %82 = vector.broadcast %cst_37 : f32 to vector<8x1xf32>
    %83 = arith.divf %81, %82 : vector<8x1xf32>
    %84 = vector.broadcast %83 : vector<8x1xf32> to vector<8x32xf32>
    %85 = arith.subf %78, %84 : vector<8x32xf32>
    %86 = arith.mulf %85, %85 : vector<8x32xf32>
    %cst_38 = arith.constant dense<0.000000e+00> : vector<8xf32>
    %87 = vector.multi_reduction <add>, %86, %cst_38 [1] : vector<8x32xf32> to vector<8xf32>
    %88 = vector.shape_cast %87 : vector<8xf32> to vector<8x1xf32>
    %cst_39 = arith.constant 3.200000e+01 : f32
    %89 = vector.broadcast %cst_39 : f32 to vector<8x1xf32>
    %90 = arith.divf %88, %89 : vector<8x1xf32>
    %91 = vector.broadcast %83 : vector<8x1xf32> to vector<8x32xf32>
    %92 = arith.subf %78, %91 : vector<8x32xf32>
    %cst_40 = arith.constant 9.99999974E-6 : f32
    %93 = vector.broadcast %cst_40 : f32 to vector<8x1xf32>
    %94 = arith.addf %90, %93 : vector<8x1xf32>
    %95 = math.rsqrt %94 : vector<8x1xf32>
    %96 = vector.broadcast %95 : vector<8x1xf32> to vector<8x32xf32>
    %97 = arith.mulf %92, %96 : vector<8x32xf32>
    %98 = vector.broadcast %79 : vector<1x32xf32> to vector<8x32xf32>
    %99 = arith.mulf %97, %98 : vector<8x32xf32>
    %c0_41 = arith.constant 0 : index
    %c0_42 = arith.constant 0 : index
    %c0_43 = arith.constant 0 : index
    %100 = vector.load %arg10[%c0_41, %c0_42, %c0_43] : memref<1x8x32xf32, #tpu.memory_space<vmem>>, vector<1x8x32xf32>
    %101 = vector.shape_cast %100 : vector<1x8x32xf32> to vector<8x32xf32>
    %102 = vector.shape_cast %99 : vector<8x32xf32> to vector<1x8x32xf32>
    tpu.vector_store %arg10[%c0_41, %c0_42, %c0_43], %102 {strides = array<i32>} : memref<1x8x32xf32, #tpu.memory_space<vmem>>, vector<1x8x32xf32>,
    return
  }
  func.func @transform_0(%arg0: i32) -> (i32, i32, i32) {
    %c0_i32 = arith.constant 0 : i32
    %c0_i32_0 = arith.constant 0 : i32
    %c0_i32_1 = arith.constant 0 : i32
    return %arg0, %c0_i32, %c0_i32_0 : i32, i32, i32
  }
  func.func @transform_1(%arg0: i32) -> (i32, i32, i32) {
    %c0_i32 = arith.constant 0 : i32
    %c0_i32_0 = arith.constant 0 : i32
    %c0_i32_1 = arith.constant 0 : i32
    return %arg0, %c0_i32, %c0_i32_0 : i32, i32, i32
  }
  func.func @transform_2(%arg0: i32) -> (i32, i32) {
    %c0_i32 = arith.constant 0 : i32
    %c0_i32_0 = arith.constant 0 : i32
    %c0_i32_1 = arith.constant 0 : i32
    return %c0_i32, %c0_i32_0 : i32, i32
  }
  func.func @transform_3(%arg0: i32) -> (i32, i32) {
    %c0_i32 = arith.constant 0 : i32
    %c0_i32_0 = arith.constant 0 : i32
    %c0_i32_1 = arith.constant 0 : i32
    return %c0_i32, %c0_i32_0 : i32, i32
  }
  func.func @transform_4(%arg0: i32) -> (i32, i32) {
    %c0_i32 = arith.constant 0 : i32
    %c0_i32_0 = arith.constant 0 : i32
    %c0_i32_1 = arith.constant 0 : i32
    return %c0_i32, %c0_i32_0 : i32, i32
  }
  func.func @transform_5(%arg0: i32) -> (i32, i32) {
    %c0_i32 = arith.constant 0 : i32
    %c0_i32_0 = arith.constant 0 : i32
    %c0_i32_1 = arith.constant 0 : i32
    return %c0_i32, %c0_i32_0 : i32, i32
  }
  func.func @transform_6(%arg0: i32) -> (i32, i32) {
    %c0_i32 = arith.constant 0 : i32
    %c0_i32_0 = arith.constant 0 : i32
    %c0_i32_1 = arith.constant 0 : i32
    return %c0_i32, %c0_i32_0 : i32, i32
  }
  func.func @transform_7(%arg0: i32) -> (i32, i32) {
    %c0_i32 = arith.constant 0 : i32
    %c0_i32_0 = arith.constant 0 : i32
    %c0_i32_1 = arith.constant 0 : i32
    return %c0_i32, %c0_i32_0 : i32, i32
  }
  func.func @transform_8(%arg0: i32) -> (i32, i32) {
    %c0_i32 = arith.constant 0 : i32
    %c0_i32_0 = arith.constant 0 : i32
    %c0_i32_1 = arith.constant 0 : i32
    return %c0_i32, %c0_i32_0 : i32, i32
  }
  func.func @transform_9(%arg0: i32) -> (i32, i32, i32) {
    %c0_i32 = arith.constant 0 : i32
    %c0_i32_0 = arith.constant 0 : i32
    %c0_i32_1 = arith.constant 0 : i32
    return %arg0, %c0_i32, %c0_i32_0 : i32, i32, i32
  }
}

module attributes {stable_mosaic.version = 11 : i64} {
  func.func @multimodal_kernel(%arg0: i32, %arg1: memref<1x8x32xf32, #tpu.memory_space<vmem>>, %arg2: memref<1x7x32xf32, #tpu.memory_space<vmem>>, %arg3: memref<8x16xf32, #tpu.memory_space<vmem>>, %arg4: memref<8x16xf32, #tpu.memory_space<vmem>>, %arg5: memref<1x32xf32, #tpu.memory_space<vmem>>, %arg6: memref<32x32xbf16, #tpu.memory_space<vmem>>, %arg7: memref<32x16xbf16, #tpu.memory_space<vmem>>, %arg8: memref<32x16xbf16, #tpu.memory_space<vmem>>, %arg9: memref<32x128xbf16, #tpu.memory_space<vmem>>, %arg10: memref<32x128xbf16, #tpu.memory_space<vmem>>, %arg11: memref<32x32xbf16, #tpu.memory_space<vmem>>, %arg12: memref<128x32xbf16, #tpu.memory_space<vmem>>, %arg13: memref<1x32xf32, #tpu.memory_space<vmem>>, %arg14: memref<32x32xbf16, #tpu.memory_space<vmem>>, %arg15: memref<32x16xbf16, #tpu.memory_space<vmem>>, %arg16: memref<32x16xbf16, #tpu.memory_space<vmem>>, %arg17: memref<32x32xbf16, #tpu.memory_space<vmem>>, %arg18: memref<32x128xbf16, #tpu.memory_space<vmem>>, %arg19: memref<32x128xbf16, #tpu.memory_space<vmem>>, %arg20: memref<128x32xbf16, #tpu.memory_space<vmem>>, %arg21: memref<1x8x32xf32, #tpu.memory_space<vmem>>) attributes {dimension_semantics = [#tpu.dimension_semantics<parallel>], iteration_bounds = array<i64: 2>, scalar_prefetch = 0 : i64, scratch_operands = 0 : i64, tpu.core_type = #tpu.core_type<tc>, window_params = [{transform_indices = @transform_0, window_bounds = array<i64: 1, 8, 32>}, {transform_indices = @transform_1, window_bounds = array<i64: 1, 7, 32>}, {pipeline_mode = #tpu.pipeline_mode<synchronous>, transform_indices = @transform_2, window_bounds = array<i64: 8, 16>}, {pipeline_mode = #tpu.pipeline_mode<synchronous>, transform_indices = @transform_3, window_bounds = array<i64: 8, 16>}, {pipeline_mode = #tpu.pipeline_mode<synchronous>, transform_indices = @transform_4, window_bounds = array<i64: 1, 32>}, {pipeline_mode = #tpu.pipeline_mode<synchronous>, transform_indices = @transform_5, window_bounds = array<i64: 32, 32>}, {pipeline_mode = #tpu.pipeline_mode<synchronous>, transform_indices = @transform_6, window_bounds = array<i64: 32, 16>}, {pipeline_mode = #tpu.pipeline_mode<synchronous>, transform_indices = @transform_7, window_bounds = array<i64: 32, 16>}, {pipeline_mode = #tpu.pipeline_mode<synchronous>, transform_indices = @transform_8, window_bounds = array<i64: 32, 128>}, {pipeline_mode = #tpu.pipeline_mode<synchronous>, transform_indices = @transform_9, window_bounds = array<i64: 32, 128>}, {pipeline_mode = #tpu.pipeline_mode<synchronous>, transform_indices = @transform_10, window_bounds = array<i64: 32, 32>}, {pipeline_mode = #tpu.pipeline_mode<synchronous>, transform_indices = @transform_11, window_bounds = array<i64: 128, 32>}, {pipeline_mode = #tpu.pipeline_mode<synchronous>, transform_indices = @transform_12, window_bounds = array<i64: 1, 32>}, {pipeline_mode = #tpu.pipeline_mode<synchronous>, transform_indices = @transform_13, window_bounds = array<i64: 32, 32>}, {pipeline_mode = #tpu.pipeline_mode<synchronous>, transform_indices = @transform_14, window_bounds = array<i64: 32, 16>}, {pipeline_mode = #tpu.pipeline_mode<synchronous>, transform_indices = @transform_15, window_bounds = array<i64: 32, 16>}, {pipeline_mode = #tpu.pipeline_mode<synchronous>, transform_indices = @transform_16, window_bounds = array<i64: 32, 32>}, {pipeline_mode = #tpu.pipeline_mode<synchronous>, transform_indices = @transform_17, window_bounds = array<i64: 32, 128>}, {pipeline_mode = #tpu.pipeline_mode<synchronous>, transform_indices = @transform_18, window_bounds = array<i64: 32, 128>}, {pipeline_mode = #tpu.pipeline_mode<synchronous>, transform_indices = @transform_19, window_bounds = array<i64: 128, 32>}, {transform_indices = @transform_20, window_bounds = array<i64: 1, 8, 32>}]} {
    %c0 = arith.constant 0 : index
    %c0_0 = arith.constant 0 : index
    %c0_1 = arith.constant 0 : index
    %0 = vector.load %arg1[%c0, %c0_0, %c0_1] : memref<1x8x32xf32, #tpu.memory_space<vmem>>, vector<1x8x32xf32>
    %1 = vector.shape_cast %0 : vector<1x8x32xf32> to vector<8x32xf32>
    %c0_2 = arith.constant 0 : index
    %c0_3 = arith.constant 0 : index
    %2 = vector.load %arg3[%c0_2, %c0_3] : memref<8x16xf32, #tpu.memory_space<vmem>>, vector<8x16xf32>
    %c0_4 = arith.constant 0 : index
    %c0_5 = arith.constant 0 : index
    %3 = vector.load %arg4[%c0_4, %c0_5] : memref<8x16xf32, #tpu.memory_space<vmem>>, vector<8x16xf32>
    %c0_6 = arith.constant 0 : index
    %c0_7 = arith.constant 0 : index
    %4 = vector.load %arg5[%c0_6, %c0_7] : memref<1x32xf32, #tpu.memory_space<vmem>>, vector<1x32xf32>
    %c0_8 = arith.constant 0 : index
    %c0_9 = arith.constant 0 : index
    %5 = vector.load %arg6[%c0_8, %c0_9] : memref<32x32xbf16, #tpu.memory_space<vmem>>, vector<32x32xbf16>
    %c0_10 = arith.constant 0 : index
    %c0_11 = arith.constant 0 : index
    %6 = vector.load %arg7[%c0_10, %c0_11] : memref<32x16xbf16, #tpu.memory_space<vmem>>, vector<32x16xbf16>
    %c0_12 = arith.constant 0 : index
    %c0_13 = arith.constant 0 : index
    %7 = vector.load %arg8[%c0_12, %c0_13] : memref<32x16xbf16, #tpu.memory_space<vmem>>, vector<32x16xbf16>
    %c0_14 = arith.constant 0 : index
    %c0_15 = arith.constant 0 : index
    %8 = vector.load %arg9[%c0_14, %c0_15] : memref<32x128xbf16, #tpu.memory_space<vmem>>, vector<32x128xbf16>
    %c0_16 = arith.constant 0 : index
    %c0_17 = arith.constant 0 : index
    %9 = vector.load %arg10[%c0_16, %c0_17] : memref<32x128xbf16, #tpu.memory_space<vmem>>, vector<32x128xbf16>
    %c0_18 = arith.constant 0 : index
    %c0_19 = arith.constant 0 : index
    %10 = vector.load %arg11[%c0_18, %c0_19] : memref<32x32xbf16, #tpu.memory_space<vmem>>, vector<32x32xbf16>
    %c0_20 = arith.constant 0 : index
    %c0_21 = arith.constant 0 : index
    %11 = vector.load %arg12[%c0_20, %c0_21] : memref<128x32xbf16, #tpu.memory_space<vmem>>, vector<128x32xbf16>
    %cst = arith.constant dense<0.000000e+00> : vector<8xf32>
    %12 = vector.multi_reduction <add>, %1, %cst [1] : vector<8x32xf32> to vector<8xf32>
    %13 = vector.shape_cast %12 : vector<8xf32> to vector<8x1xf32>
    %cst_22 = arith.constant 3.200000e+01 : f32
    %14 = vector.broadcast %cst_22 : f32 to vector<8x1xf32>
    %15 = arith.divf %13, %14 : vector<8x1xf32>
    %16 = vector.broadcast %15 : vector<8x1xf32> to vector<8x32xf32>
    %17 = arith.subf %1, %16 : vector<8x32xf32>
    %18 = arith.mulf %17, %17 : vector<8x32xf32>
    %cst_23 = arith.constant dense<0.000000e+00> : vector<8xf32>
    %19 = vector.multi_reduction <add>, %18, %cst_23 [1] : vector<8x32xf32> to vector<8xf32>
    %20 = vector.shape_cast %19 : vector<8xf32> to vector<8x1xf32>
    %cst_24 = arith.constant 3.200000e+01 : f32
    %21 = vector.broadcast %cst_24 : f32 to vector<8x1xf32>
    %22 = arith.divf %20, %21 : vector<8x1xf32>
    %23 = vector.broadcast %15 : vector<8x1xf32> to vector<8x32xf32>
    %24 = arith.subf %1, %23 : vector<8x32xf32>
    %cst_25 = arith.constant 9.99999974E-6 : f32
    %25 = vector.broadcast %cst_25 : f32 to vector<8x1xf32>
    %26 = arith.addf %22, %25 : vector<8x1xf32>
    %27 = math.rsqrt %26 : vector<8x1xf32>
    %28 = vector.broadcast %27 : vector<8x1xf32> to vector<8x32xf32>
    %29 = arith.mulf %24, %28 : vector<8x32xf32>
    %30 = vector.broadcast %4 : vector<1x32xf32> to vector<8x32xf32>
    %31 = arith.mulf %29, %30 : vector<8x32xf32>
    %32 = arith.truncf %31 : vector<8x32xf32> to vector<8x32xbf16>
    %cst_26 = arith.constant dense<0.000000e+00> : vector<8x16xf32>
    %33 = tpu.matmul %32, %6, %cst_26 {dimension_numbers = #tpu.dot_dimension_numbers<[1], [0], [0], [1], [0, 0, 1, 1], [], []>} : vector<8x32xbf16>, vector<32x16xbf16>, vector<8x16xf32> -> vector<8x16xf32>
    %34 = vector.extract_strided_slice %33 {offsets = [0, 0], sizes = [8, 8], strides = [1, 1]} : vector<8x16xf32> to vector<8x8xf32>
    %35 = vector.extract_strided_slice %33 {offsets = [0, 8], sizes = [8, 8], strides = [1, 1]} : vector<8x16xf32> to vector<8x8xf32>
    %cst_27 = arith.constant 0.000000e+00 : f32
    %36 = vector.broadcast %cst_27 : f32 to vector<8x8xf32>
    %37 = arith.subf %36, %35 : vector<8x8xf32>
    %38 = tpu.concatenate %37, %34 in 1 : vector<8x8xf32>, vector<8x8xf32> -> vector<8x16xf32>
    %39 = arith.mulf %33, %2 : vector<8x16xf32>
    %40 = arith.mulf %38, %3 : vector<8x16xf32>
    %41 = arith.addf %39, %40 : vector<8x16xf32>
    %cst_28 = arith.constant dense<0.000000e+00> : vector<8x16xf32>
    %42 = tpu.matmul %32, %7, %cst_28 {dimension_numbers = #tpu.dot_dimension_numbers<[1], [0], [0], [1], [0, 0, 1, 1], [], []>} : vector<8x32xbf16>, vector<32x16xbf16>, vector<8x16xf32> -> vector<8x16xf32>
    %43 = tpu.iota {dimensions = array<i32: 0>} : vector<8x8xi32>
    %44 = tpu.iota {dimensions = array<i32: 1>} : vector<8x8xi32>
    %45 = arith.cmpi sle, %44, %43 : vector<8x8xi32>
    %cst_29 = arith.constant 0.000000e+00 : f32
    %cst_30 = arith.constant -1.000000e+30 : f32
    %46 = vector.broadcast %cst_29 : f32 to vector<8x8xf32>
    %47 = vector.broadcast %cst_30 : f32 to vector<8x8xf32>
    %48 = arith.select %45, %46, %47 : vector<8x8xi1>, vector<8x8xf32>
    %cst_31 = arith.constant dense<0.000000e+00> : vector<8x32xf32>
    %49 = tpu.matmul %32, %5, %cst_31 {dimension_numbers = #tpu.dot_dimension_numbers<[1], [0], [0], [1], [0, 0, 1, 1], [], []>} : vector<8x32xbf16>, vector<32x32xbf16>, vector<8x32xf32> -> vector<8x32xf32>
    %50 = vector.extract_strided_slice %49 {offsets = [0, 0], sizes = [8, 16], strides = [1, 1]} : vector<8x32xf32> to vector<8x16xf32>
    %51 = vector.extract_strided_slice %49 {offsets = [0, 16], sizes = [8, 16], strides = [1, 1]} : vector<8x32xf32> to vector<8x16xf32>
    %52 = tpu.concatenate %50, %51 in 0 : vector<8x16xf32>, vector<8x16xf32> -> vector<16x16xf32>
    %53 = tpu.concatenate %2, %2 in 0 : vector<8x16xf32>, vector<8x16xf32> -> vector<16x16xf32>
    %54 = tpu.concatenate %3, %3 in 0 : vector<8x16xf32>, vector<8x16xf32> -> vector<16x16xf32>
    %55 = vector.extract_strided_slice %52 {offsets = [0, 0], sizes = [16, 8], strides = [1, 1]} : vector<16x16xf32> to vector<16x8xf32>
    %56 = vector.extract_strided_slice %52 {offsets = [0, 8], sizes = [16, 8], strides = [1, 1]} : vector<16x16xf32> to vector<16x8xf32>
    %cst_32 = arith.constant 0.000000e+00 : f32
    %57 = vector.broadcast %cst_32 : f32 to vector<16x8xf32>
    %58 = arith.subf %57, %56 : vector<16x8xf32>
    %59 = tpu.concatenate %58, %55 in 1 : vector<16x8xf32>, vector<16x8xf32> -> vector<16x16xf32>
    %60 = arith.mulf %52, %53 : vector<16x16xf32>
    %61 = arith.mulf %59, %54 : vector<16x16xf32>
    %62 = arith.addf %60, %61 : vector<16x16xf32>
    %63 = arith.truncf %62 : vector<16x16xf32> to vector<16x16xbf16>
    %64 = arith.truncf %41 : vector<8x16xf32> to vector<8x16xbf16>
    %cst_33 = arith.constant dense<0.000000e+00> : vector<16x8xf32>
    %65 = tpu.matmul %63, %64, %cst_33 {dimension_numbers = #tpu.dot_dimension_numbers<[1], [1], [0], [0], [0, 0, 1, 0], [], []>} : vector<16x16xbf16>, vector<8x16xbf16>, vector<16x8xf32> -> vector<16x8xf32>
    %66 = tpu.concatenate %48, %48 in 0 : vector<8x8xf32>, vector<8x8xf32> -> vector<16x8xf32>
    %67 = arith.addf %65, %66 : vector<16x8xf32>
    %cst_34 = arith.constant dense<0xFF800000> : vector<16xf32>
    %68 = vector.multi_reduction <maximumf>, %67, %cst_34 [1] : vector<16x8xf32> to vector<16xf32>
    %69 = vector.shape_cast %68 : vector<16xf32> to vector<16x1xf32>
    %70 = vector.broadcast %69 : vector<16x1xf32> to vector<16x8xf32>
    %71 = arith.subf %67, %70 : vector<16x8xf32>
    %72 = math.exp %71 : vector<16x8xf32>
    %cst_35 = arith.constant dense<0.000000e+00> : vector<16xf32>
    %73 = vector.multi_reduction <add>, %72, %cst_35 [1] : vector<16x8xf32> to vector<16xf32>
    %74 = vector.shape_cast %73 : vector<16xf32> to vector<16x1xf32>
    %75 = tpu.reciprocal %74 {approx = true} : vector<16x1xf32> -> vector<16x1xf32>
    %76 = vector.broadcast %75 : vector<16x1xf32> to vector<16x8xf32>
    %77 = arith.mulf %72, %76 : vector<16x8xf32>
    %78 = arith.truncf %77 : vector<16x8xf32> to vector<16x8xbf16>
    %79 = arith.truncf %42 : vector<8x16xf32> to vector<8x16xbf16>
    %cst_36 = arith.constant dense<0.000000e+00> : vector<16x16xf32>
    %80 = tpu.matmul %78, %79, %cst_36 {dimension_numbers = #tpu.dot_dimension_numbers<[1], [0], [0], [1], [0, 0, 1, 1], [], []>} : vector<16x8xbf16>, vector<8x16xbf16>, vector<16x16xf32> -> vector<16x16xf32>
    %81 = vector.extract_strided_slice %80 {offsets = [0, 0], sizes = [8, 16], strides = [1, 1]} : vector<16x16xf32> to vector<8x16xf32>
    %82 = vector.extract_strided_slice %80 {offsets = [8, 0], sizes = [8, 16], strides = [1, 1]} : vector<16x16xf32> to vector<8x16xf32>
    %83 = tpu.concatenate %81, %82 in 1 : vector<8x16xf32>, vector<8x16xf32> -> vector<8x32xf32>
    %84 = arith.truncf %83 : vector<8x32xf32> to vector<8x32xbf16>
    %cst_37 = arith.constant dense<0.000000e+00> : vector<8x32xf32>
    %85 = tpu.matmul %84, %10, %cst_37 {dimension_numbers = #tpu.dot_dimension_numbers<[1], [0], [0], [1], [0, 0, 1, 1], [], []>} : vector<8x32xbf16>, vector<32x32xbf16>, vector<8x32xf32> -> vector<8x32xf32>
    %cst_38 = arith.constant dense<0.000000e+00> : vector<8x128xf32>
    %86 = tpu.matmul %32, %8, %cst_38 {dimension_numbers = #tpu.dot_dimension_numbers<[1], [0], [0], [1], [0, 0, 1, 1], [], []>} : vector<8x32xbf16>, vector<32x128xbf16>, vector<8x128xf32> -> vector<8x128xf32>
    %cst_39 = arith.constant dense<0.000000e+00> : vector<8x128xf32>
    %87 = tpu.matmul %32, %9, %cst_39 {dimension_numbers = #tpu.dot_dimension_numbers<[1], [0], [0], [1], [0, 0, 1, 1], [], []>} : vector<8x32xbf16>, vector<32x128xbf16>, vector<8x128xf32> -> vector<8x128xf32>
    %88 = arith.negf %87 : vector<8x128xf32>
    %89 = math.exp %88 : vector<8x128xf32>
    %cst_40 = arith.constant 1.000000e+00 : f32
    %90 = vector.broadcast %cst_40 : f32 to vector<8x128xf32>
    %91 = arith.addf %90, %89 : vector<8x128xf32>
    %92 = arith.divf %90, %91 : vector<8x128xf32>
    %93 = arith.mulf %87, %92 : vector<8x128xf32>
    %94 = arith.mulf %93, %86 : vector<8x128xf32>
    %95 = arith.truncf %94 : vector<8x128xf32> to vector<8x128xbf16>
    %cst_41 = arith.constant dense<0.000000e+00> : vector<8x32xf32>
    %96 = tpu.matmul %95, %11, %cst_41 {dimension_numbers = #tpu.dot_dimension_numbers<[1], [0], [0], [1], [0, 0, 1, 1], [], []>} : vector<8x128xbf16>, vector<128x32xbf16>, vector<8x32xf32> -> vector<8x32xf32>
    %97 = arith.addf %1, %85 : vector<8x32xf32>
    %98 = arith.addf %97, %96 : vector<8x32xf32>
    %c0_42 = arith.constant 0 : index
    %c0_43 = arith.constant 0 : index
    %c0_44 = arith.constant 0 : index
    %99 = vector.load %arg2[%c0_42, %c0_43, %c0_44] : memref<1x7x32xf32, #tpu.memory_space<vmem>>, vector<1x7x32xf32>
    %100 = vector.shape_cast %99 : vector<1x7x32xf32> to vector<7x32xf32>
    %c0_45 = arith.constant 0 : index
    %c0_46 = arith.constant 0 : index
    %101 = vector.load %arg13[%c0_45, %c0_46] : memref<1x32xf32, #tpu.memory_space<vmem>>, vector<1x32xf32>
    %c0_47 = arith.constant 0 : index
    %c0_48 = arith.constant 0 : index
    %102 = vector.load %arg14[%c0_47, %c0_48] : memref<32x32xbf16, #tpu.memory_space<vmem>>, vector<32x32xbf16>
    %c0_49 = arith.constant 0 : index
    %c0_50 = arith.constant 0 : index
    %103 = vector.load %arg15[%c0_49, %c0_50] : memref<32x16xbf16, #tpu.memory_space<vmem>>, vector<32x16xbf16>
    %c0_51 = arith.constant 0 : index
    %c0_52 = arith.constant 0 : index
    %104 = vector.load %arg16[%c0_51, %c0_52] : memref<32x16xbf16, #tpu.memory_space<vmem>>, vector<32x16xbf16>
    %c0_53 = arith.constant 0 : index
    %c0_54 = arith.constant 0 : index
    %105 = vector.load %arg17[%c0_53, %c0_54] : memref<32x32xbf16, #tpu.memory_space<vmem>>, vector<32x32xbf16>
    %c0_55 = arith.constant 0 : index
    %c0_56 = arith.constant 0 : index
    %106 = vector.load %arg18[%c0_55, %c0_56] : memref<32x128xbf16, #tpu.memory_space<vmem>>, vector<32x128xbf16>
    %c0_57 = arith.constant 0 : index
    %c0_58 = arith.constant 0 : index
    %107 = vector.load %arg19[%c0_57, %c0_58] : memref<32x128xbf16, #tpu.memory_space<vmem>>, vector<32x128xbf16>
    %c0_59 = arith.constant 0 : index
    %c0_60 = arith.constant 0 : index
    %108 = vector.load %arg20[%c0_59, %c0_60] : memref<128x32xbf16, #tpu.memory_space<vmem>>, vector<128x32xbf16>
    %cst_61 = arith.constant dense<0.000000e+00> : vector<8xf32>
    %109 = vector.multi_reduction <add>, %98, %cst_61 [1] : vector<8x32xf32> to vector<8xf32>
    %110 = vector.shape_cast %109 : vector<8xf32> to vector<8x1xf32>
    %cst_62 = arith.constant 3.200000e+01 : f32
    %111 = vector.broadcast %cst_62 : f32 to vector<8x1xf32>
    %112 = arith.divf %110, %111 : vector<8x1xf32>
    %113 = vector.broadcast %112 : vector<8x1xf32> to vector<8x32xf32>
    %114 = arith.subf %98, %113 : vector<8x32xf32>
    %115 = arith.mulf %114, %114 : vector<8x32xf32>
    %cst_63 = arith.constant dense<0.000000e+00> : vector<8xf32>
    %116 = vector.multi_reduction <add>, %115, %cst_63 [1] : vector<8x32xf32> to vector<8xf32>
    %117 = vector.shape_cast %116 : vector<8xf32> to vector<8x1xf32>
    %cst_64 = arith.constant 3.200000e+01 : f32
    %118 = vector.broadcast %cst_64 : f32 to vector<8x1xf32>
    %119 = arith.divf %117, %118 : vector<8x1xf32>
    %120 = vector.broadcast %112 : vector<8x1xf32> to vector<8x32xf32>
    %121 = arith.subf %98, %120 : vector<8x32xf32>
    %cst_65 = arith.constant 9.99999974E-6 : f32
    %122 = vector.broadcast %cst_65 : f32 to vector<8x1xf32>
    %123 = arith.addf %119, %122 : vector<8x1xf32>
    %124 = math.rsqrt %123 : vector<8x1xf32>
    %125 = vector.broadcast %124 : vector<8x1xf32> to vector<8x32xf32>
    %126 = arith.mulf %121, %125 : vector<8x32xf32>
    %127 = vector.broadcast %101 : vector<1x32xf32> to vector<8x32xf32>
    %128 = arith.mulf %126, %127 : vector<8x32xf32>
    %129 = arith.truncf %128 : vector<8x32xf32> to vector<8x32xbf16>
    %130 = arith.truncf %100 : vector<7x32xf32> to vector<7x32xbf16>
    %cst_66 = arith.constant dense<0.000000e+00> : vector<7x16xf32>
    %131 = tpu.matmul %130, %103, %cst_66 {dimension_numbers = #tpu.dot_dimension_numbers<[1], [0], [0], [1], [0, 0, 1, 1], [], []>} : vector<7x32xbf16>, vector<32x16xbf16>, vector<7x16xf32> -> vector<7x16xf32>
    %cst_67 = arith.constant dense<0.000000e+00> : vector<7x16xf32>
    %132 = tpu.matmul %130, %104, %cst_67 {dimension_numbers = #tpu.dot_dimension_numbers<[1], [0], [0], [1], [0, 0, 1, 1], [], []>} : vector<7x32xbf16>, vector<32x16xbf16>, vector<7x16xf32> -> vector<7x16xf32>
    %cst_68 = arith.constant dense<0.000000e+00> : vector<8x32xf32>
    %133 = tpu.matmul %129, %102, %cst_68 {dimension_numbers = #tpu.dot_dimension_numbers<[1], [0], [0], [1], [0, 0, 1, 1], [], []>} : vector<8x32xbf16>, vector<32x32xbf16>, vector<8x32xf32> -> vector<8x32xf32>
    %134 = vector.extract_strided_slice %133 {offsets = [0, 0], sizes = [8, 16], strides = [1, 1]} : vector<8x32xf32> to vector<8x16xf32>
    %135 = vector.extract_strided_slice %133 {offsets = [0, 16], sizes = [8, 16], strides = [1, 1]} : vector<8x32xf32> to vector<8x16xf32>
    %136 = tpu.concatenate %134, %135 in 0 : vector<8x16xf32>, vector<8x16xf32> -> vector<16x16xf32>
    %137 = arith.truncf %136 : vector<16x16xf32> to vector<16x16xbf16>
    %138 = arith.truncf %131 : vector<7x16xf32> to vector<7x16xbf16>
    %cst_69 = arith.constant dense<0.000000e+00> : vector<16x7xf32>
    %139 = tpu.matmul %137, %138, %cst_69 {dimension_numbers = #tpu.dot_dimension_numbers<[1], [1], [0], [0], [0, 0, 1, 0], [], []>} : vector<16x16xbf16>, vector<7x16xbf16>, vector<16x7xf32> -> vector<16x7xf32>
    %cst_70 = arith.constant dense<0xFF800000> : vector<16xf32>
    %140 = vector.multi_reduction <maximumf>, %139, %cst_70 [1] : vector<16x7xf32> to vector<16xf32>
    %141 = vector.shape_cast %140 : vector<16xf32> to vector<16x1xf32>
    %142 = vector.broadcast %141 : vector<16x1xf32> to vector<16x7xf32>
    %143 = arith.subf %139, %142 : vector<16x7xf32>
    %144 = math.exp %143 : vector<16x7xf32>
    %cst_71 = arith.constant dense<0.000000e+00> : vector<16xf32>
    %145 = vector.multi_reduction <add>, %144, %cst_71 [1] : vector<16x7xf32> to vector<16xf32>
    %146 = vector.shape_cast %145 : vector<16xf32> to vector<16x1xf32>
    %147 = tpu.reciprocal %146 {approx = true} : vector<16x1xf32> -> vector<16x1xf32>
    %148 = vector.broadcast %147 : vector<16x1xf32> to vector<16x7xf32>
    %149 = arith.mulf %144, %148 : vector<16x7xf32>
    %150 = arith.truncf %149 : vector<16x7xf32> to vector<16x7xbf16>
    %151 = arith.truncf %132 : vector<7x16xf32> to vector<7x16xbf16>
    %cst_72 = arith.constant dense<0.000000e+00> : vector<16x16xf32>
    %152 = tpu.matmul %150, %151, %cst_72 {dimension_numbers = #tpu.dot_dimension_numbers<[1], [0], [0], [1], [0, 0, 1, 1], [], []>} : vector<16x7xbf16>, vector<7x16xbf16>, vector<16x16xf32> -> vector<16x16xf32>
    %153 = vector.extract_strided_slice %152 {offsets = [0, 0], sizes = [8, 16], strides = [1, 1]} : vector<16x16xf32> to vector<8x16xf32>
    %154 = vector.extract_strided_slice %152 {offsets = [8, 0], sizes = [8, 16], strides = [1, 1]} : vector<16x16xf32> to vector<8x16xf32>
    %155 = tpu.concatenate %153, %154 in 1 : vector<8x16xf32>, vector<8x16xf32> -> vector<8x32xf32>
    %156 = arith.truncf %155 : vector<8x32xf32> to vector<8x32xbf16>
    %cst_73 = arith.constant dense<0.000000e+00> : vector<8x32xf32>
    %157 = tpu.matmul %156, %105, %cst_73 {dimension_numbers = #tpu.dot_dimension_numbers<[1], [0], [0], [1], [0, 0, 1, 1], [], []>} : vector<8x32xbf16>, vector<32x32xbf16>, vector<8x32xf32> -> vector<8x32xf32>
    %cst_74 = arith.constant dense<0.000000e+00> : vector<8x128xf32>
    %158 = tpu.matmul %129, %106, %cst_74 {dimension_numbers = #tpu.dot_dimension_numbers<[1], [0], [0], [1], [0, 0, 1, 1], [], []>} : vector<8x32xbf16>, vector<32x128xbf16>, vector<8x128xf32> -> vector<8x128xf32>
    %cst_75 = arith.constant dense<0.000000e+00> : vector<8x128xf32>
    %159 = tpu.matmul %129, %107, %cst_75 {dimension_numbers = #tpu.dot_dimension_numbers<[1], [0], [0], [1], [0, 0, 1, 1], [], []>} : vector<8x32xbf16>, vector<32x128xbf16>, vector<8x128xf32> -> vector<8x128xf32>
    %160 = arith.negf %159 : vector<8x128xf32>
    %161 = math.exp %160 : vector<8x128xf32>
    %cst_76 = arith.constant 1.000000e+00 : f32
    %162 = vector.broadcast %cst_76 : f32 to vector<8x128xf32>
    %163 = arith.addf %162, %161 : vector<8x128xf32>
    %164 = arith.divf %162, %163 : vector<8x128xf32>
    %165 = arith.mulf %159, %164 : vector<8x128xf32>
    %166 = arith.mulf %165, %158 : vector<8x128xf32>
    %167 = arith.truncf %166 : vector<8x128xf32> to vector<8x128xbf16>
    %cst_77 = arith.constant dense<0.000000e+00> : vector<8x32xf32>
    %168 = tpu.matmul %167, %108, %cst_77 {dimension_numbers = #tpu.dot_dimension_numbers<[1], [0], [0], [1], [0, 0, 1, 1], [], []>} : vector<8x128xbf16>, vector<128x32xbf16>, vector<8x32xf32> -> vector<8x32xf32>
    %169 = arith.addf %157, %168 : vector<8x32xf32>
    %170 = arith.addf %169, %98 : vector<8x32xf32>
    %c0_78 = arith.constant 0 : index
    %c0_79 = arith.constant 0 : index
    %c0_80 = arith.constant 0 : index
    %171 = vector.load %arg21[%c0_78, %c0_79, %c0_80] : memref<1x8x32xf32, #tpu.memory_space<vmem>>, vector<1x8x32xf32>
    %172 = vector.shape_cast %171 : vector<1x8x32xf32> to vector<8x32xf32>
    %173 = vector.shape_cast %170 : vector<8x32xf32> to vector<1x8x32xf32>
    tpu.vector_store %arg21[%c0_78, %c0_79, %c0_80], %173 {strides = array<i32>} : memref<1x8x32xf32, #tpu.memory_space<vmem>>, vector<1x8x32xf32>,
    return
  }
  func.func @transform_0(%arg0: i32) -> (i32, i32, i32) {
    %c0_i32 = arith.constant 0 : i32
    %c0_i32_0 = arith.constant 0 : i32
    %c0_i32_1 = arith.constant 0 : i32
    return %arg0, %c0_i32, %c0_i32_0 : i32, i32, i32
  }
  func.func @transform_1(%arg0: i32) -> (i32, i32, i32) {
    %c0_i32 = arith.constant 0 : i32
    %c0_i32_0 = arith.constant 0 : i32
    %c0_i32_1 = arith.constant 0 : i32
    return %arg0, %c0_i32, %c0_i32_0 : i32, i32, i32
  }
  func.func @transform_2(%arg0: i32) -> (i32, i32) {
    %c0_i32 = arith.constant 0 : i32
    %c0_i32_0 = arith.constant 0 : i32
    %c0_i32_1 = arith.constant 0 : i32
    return %c0_i32, %c0_i32_0 : i32, i32
  }
  func.func @transform_3(%arg0: i32) -> (i32, i32) {
    %c0_i32 = arith.constant 0 : i32
    %c0_i32_0 = arith.constant 0 : i32
    %c0_i32_1 = arith.constant 0 : i32
    return %c0_i32, %c0_i32_0 : i32, i32
  }
  func.func @transform_4(%arg0: i32) -> (i32, i32) {
    %c0_i32 = arith.constant 0 : i32
    %c0_i32_0 = arith.constant 0 : i32
    %c0_i32_1 = arith.constant 0 : i32
    return %c0_i32, %c0_i32_0 : i32, i32
  }
  func.func @transform_5(%arg0: i32) -> (i32, i32) {
    %c0_i32 = arith.constant 0 : i32
    %c0_i32_0 = arith.constant 0 : i32
    %c0_i32_1 = arith.constant 0 : i32
    return %c0_i32, %c0_i32_0 : i32, i32
  }
  func.func @transform_6(%arg0: i32) -> (i32, i32) {
    %c0_i32 = arith.constant 0 : i32
    %c0_i32_0 = arith.constant 0 : i32
    %c0_i32_1 = arith.constant 0 : i32
    return %c0_i32, %c0_i32_0 : i32, i32
  }
  func.func @transform_7(%arg0: i32) -> (i32, i32) {
    %c0_i32 = arith.constant 0 : i32
    %c0_i32_0 = arith.constant 0 : i32
    %c0_i32_1 = arith.constant 0 : i32
    return %c0_i32, %c0_i32_0 : i32, i32
  }
  func.func @transform_8(%arg0: i32) -> (i32, i32) {
    %c0_i32 = arith.constant 0 : i32
    %c0_i32_0 = arith.constant 0 : i32
    %c0_i32_1 = arith.constant 0 : i32
    return %c0_i32, %c0_i32_0 : i32, i32
  }
  func.func @transform_9(%arg0: i32) -> (i32, i32) {
    %c0_i32 = arith.constant 0 : i32
    %c0_i32_0 = arith.constant 0 : i32
    %c0_i32_1 = arith.constant 0 : i32
    return %c0_i32, %c0_i32_0 : i32, i32
  }
  func.func @transform_10(%arg0: i32) -> (i32, i32) {
    %c0_i32 = arith.constant 0 : i32
    %c0_i32_0 = arith.constant 0 : i32
    %c0_i32_1 = arith.constant 0 : i32
    return %c0_i32, %c0_i32_0 : i32, i32
  }
  func.func @transform_11(%arg0: i32) -> (i32, i32) {
    %c0_i32 = arith.constant 0 : i32
    %c0_i32_0 = arith.constant 0 : i32
    %c0_i32_1 = arith.constant 0 : i32
    return %c0_i32, %c0_i32_0 : i32, i32
  }
  func.func @transform_12(%arg0: i32) -> (i32, i32) {
    %c0_i32 = arith.constant 0 : i32
    %c0_i32_0 = arith.constant 0 : i32
    %c0_i32_1 = arith.constant 0 : i32
    return %c0_i32, %c0_i32_0 : i32, i32
  }
  func.func @transform_13(%arg0: i32) -> (i32, i32) {
    %c0_i32 = arith.constant 0 : i32
    %c0_i32_0 = arith.constant 0 : i32
    %c0_i32_1 = arith.constant 0 : i32
    return %c0_i32, %c0_i32_0 : i32, i32
  }
  func.func @transform_14(%arg0: i32) -> (i32, i32) {
    %c0_i32 = arith.constant 0 : i32
    %c0_i32_0 = arith.constant 0 : i32
    %c0_i32_1 = arith.constant 0 : i32
    return %c0_i32, %c0_i32_0 : i32, i32
  }
  func.func @transform_15(%arg0: i32) -> (i32, i32) {
    %c0_i32 = arith.constant 0 : i32
    %c0_i32_0 = arith.constant 0 : i32
    %c0_i32_1 = arith.constant 0 : i32
    return %c0_i32, %c0_i32_0 : i32, i32
  }
  func.func @transform_16(%arg0: i32) -> (i32, i32) {
    %c0_i32 = arith.constant 0 : i32
    %c0_i32_0 = arith.constant 0 : i32
    %c0_i32_1 = arith.constant 0 : i32
    return %c0_i32, %c0_i32_0 : i32, i32
  }
  func.func @transform_17(%arg0: i32) -> (i32, i32) {
    %c0_i32 = arith.constant 0 : i32
    %c0_i32_0 = arith.constant 0 : i32
    %c0_i32_1 = arith.constant 0 : i32
    return %c0_i32, %c0_i32_0 : i32, i32
  }
  func.func @transform_18(%arg0: i32) -> (i32, i32) {
    %c0_i32 = arith.constant 0 : i32
    %c0_i32_0 = arith.constant 0 : i32
    %c0_i32_1 = arith.constant 0 : i32
    return %c0_i32, %c0_i32_0 : i32, i32
  }
  func.func @transform_19(%arg0: i32) -> (i32, i32) {
    %c0_i32 = arith.constant 0 : i32
    %c0_i32_0 = arith.constant 0 : i32
    %c0_i32_1 = arith.constant 0 : i32
    return %c0_i32, %c0_i32_0 : i32, i32
  }
  func.func @transform_20(%arg0: i32) -> (i32, i32, i32) {
    %c0_i32 = arith.constant 0 : i32
    %c0_i32_0 = arith.constant 0 : i32
    %c0_i32_1 = arith.constant 0 : i32
    return %arg0, %c0_i32, %c0_i32_0 : i32, i32, i32
  }
}

module attributes {stable_mosaic.version = 11 : i64} {
  func.func @logits_kernel(%arg0: i32, %arg1: i32, %arg2: memref<1x8x32xf32, #tpu.memory_space<vmem>>, %arg3: memref<1x32xf32, #tpu.memory_space<vmem>>, %arg4: memref<64x32xbf16, #tpu.memory_space<vmem>>, %arg5: memref<1x8x64xf32, #tpu.memory_space<vmem>>, %arg6: memref<8x32xf32, #tpu.memory_space<vmem>>) attributes {dimension_semantics = [#tpu.dimension_semantics<parallel>, #tpu.dimension_semantics<arbitrary>], iteration_bounds = array<i64: 2, 1>, scalar_prefetch = 0 : i64, scratch_operands = 1 : i64, tpu.core_type = #tpu.core_type<tc>, window_params = [{transform_indices = @transform_0, window_bounds = array<i64: 1, 8, 32>}, {pipeline_mode = #tpu.pipeline_mode<synchronous>, transform_indices = @transform_1, window_bounds = array<i64: 1, 32>}, {transform_indices = @transform_2, window_bounds = array<i64: 64, 32>}, {transform_indices = @transform_3, window_bounds = array<i64: 1, 8, 64>}]} {
    %c0_i32 = arith.constant 0 : i32
    %0 = arith.cmpi eq, %arg1, %c0_i32 : i32
    %1 = arith.extui %0 : i1 to i32
    %c0_i32_0 = arith.constant 0 : i32
    %2 = arith.cmpi ne, %1, %c0_i32_0 : i32
    scf.if %2 {
      %c0_7 = arith.constant 0 : index
      %c0_8 = arith.constant 0 : index
      %c0_9 = arith.constant 0 : index
      %10 = vector.load %arg2[%c0_7, %c0_8, %c0_9] : memref<1x8x32xf32, #tpu.memory_space<vmem>>, vector<1x8x32xf32>
      %11 = vector.shape_cast %10 : vector<1x8x32xf32> to vector<8x32xf32>
      %c0_10 = arith.constant 0 : index
      %c0_11 = arith.constant 0 : index
      %12 = vector.load %arg3[%c0_10, %c0_11] : memref<1x32xf32, #tpu.memory_space<vmem>>, vector<1x32xf32>
      %cst_12 = arith.constant dense<0.000000e+00> : vector<8xf32>
      %13 = vector.multi_reduction <add>, %11, %cst_12 [1] : vector<8x32xf32> to vector<8xf32>
      %14 = vector.shape_cast %13 : vector<8xf32> to vector<8x1xf32>
      %cst_13 = arith.constant 3.200000e+01 : f32
      %15 = vector.broadcast %cst_13 : f32 to vector<8x1xf32>
      %16 = arith.divf %14, %15 : vector<8x1xf32>
      %17 = vector.broadcast %16 : vector<8x1xf32> to vector<8x32xf32>
      %18 = arith.subf %11, %17 : vector<8x32xf32>
      %19 = arith.mulf %18, %18 : vector<8x32xf32>
      %cst_14 = arith.constant dense<0.000000e+00> : vector<8xf32>
      %20 = vector.multi_reduction <add>, %19, %cst_14 [1] : vector<8x32xf32> to vector<8xf32>
      %21 = vector.shape_cast %20 : vector<8xf32> to vector<8x1xf32>
      %cst_15 = arith.constant 3.200000e+01 : f32
      %22 = vector.broadcast %cst_15 : f32 to vector<8x1xf32>
      %23 = arith.divf %21, %22 : vector<8x1xf32>
      %24 = vector.broadcast %16 : vector<8x1xf32> to vector<8x32xf32>
      %25 = arith.subf %11, %24 : vector<8x32xf32>
      %cst_16 = arith.constant 9.99999974E-6 : f32
      %26 = vector.broadcast %cst_16 : f32 to vector<8x1xf32>
      %27 = arith.addf %23, %26 : vector<8x1xf32>
      %28 = math.rsqrt %27 : vector<8x1xf32>
      %29 = vector.broadcast %28 : vector<8x1xf32> to vector<8x32xf32>
      %30 = arith.mulf %25, %29 : vector<8x32xf32>
      %31 = vector.broadcast %12 : vector<1x32xf32> to vector<8x32xf32>
      %32 = arith.mulf %30, %31 : vector<8x32xf32>
      %c0_17 = arith.constant 0 : index
      %c0_18 = arith.constant 0 : index
      %33 = vector.load %arg6[%c0_17, %c0_18] : memref<8x32xf32, #tpu.memory_space<vmem>>, vector<8x32xf32>
      tpu.vector_store %arg6[%c0_17, %c0_18], %32 {strides = array<i32>} : memref<8x32xf32, #tpu.memory_space<vmem>>, vector<8x32xf32>,
    } else {
    }
    %c0 = arith.constant 0 : index
    %c0_1 = arith.constant 0 : index
    %3 = vector.load %arg6[%c0, %c0_1] : memref<8x32xf32, #tpu.memory_space<vmem>>, vector<8x32xf32>
    %4 = arith.truncf %3 : vector<8x32xf32> to vector<8x32xbf16>
    %c0_2 = arith.constant 0 : index
    %c0_3 = arith.constant 0 : index
    %5 = vector.load %arg4[%c0_2, %c0_3] : memref<64x32xbf16, #tpu.memory_space<vmem>>, vector<64x32xbf16>
    %cst = arith.constant dense<0.000000e+00> : vector<8x64xf32>
    %6 = tpu.matmul %4, %5, %cst {dimension_numbers = #tpu.dot_dimension_numbers<[1], [1], [0], [0], [0, 0, 1, 0], [], []>} : vector<8x32xbf16>, vector<64x32xbf16>, vector<8x64xf32> -> vector<8x64xf32>
    %c0_4 = arith.constant 0 : index
    %c0_5 = arith.constant 0 : index
    %c0_6 = arith.constant 0 : index
    %7 = vector.load %arg5[%c0_4, %c0_5, %c0_6] : memref<1x8x64xf32, #tpu.memory_space<vmem>>, vector<1x8x64xf32>
    %8 = vector.shape_cast %7 : vector<1x8x64xf32> to vector<8x64xf32>
    %9 = vector.shape_cast %6 : vector<8x64xf32> to vector<1x8x64xf32>
    tpu.vector_store %arg5[%c0_4, %c0_5, %c0_6], %9 {strides = array<i32>} : memref<1x8x64xf32, #tpu.memory_space<vmem>>, vector<1x8x64xf32>,
    return
  }
  func.func @transform_0(%arg0: i32, %arg1: i32) -> (i32, i32, i32) {
    %c0_i32 = arith.constant 0 : i32
    %c0_i32_0 = arith.constant 0 : i32
    %c0_i32_1 = arith.constant 0 : i32
    return %arg0, %c0_i32, %c0_i32_0 : i32, i32, i32
  }
  func.func @transform_1(%arg0: i32, %arg1: i32) -> (i32, i32) {
    %c0_i32 = arith.constant 0 : i32
    %c0_i32_0 = arith.constant 0 : i32
    %c0_i32_1 = arith.constant 0 : i32
    return %c0_i32, %c0_i32_0 : i32, i32
  }
  func.func @transform_2(%arg0: i32, %arg1: i32) -> (i32, i32) {
    %c0_i32 = arith.constant 0 : i32
    %c0_i32_0 = arith.constant 0 : i32
    return %arg1, %c0_i32 : i32, i32
  }
  func.func @transform_3(%arg0: i32, %arg1: i32) -> (i32, i32, i32) {
    %c0_i32 = arith.constant 0 : i32
    %c0_i32_0 = arith.constant 0 : i32
    return %arg0, %c0_i32, %arg1 : i32, i32, i32
  }
}

</mosaic_0001>

<llo_original>
// kernel: fwd.7
$region0: #{fwd.7}
  #allocation0 [shape = 'u32[]', space=smem, size = 0x4, offset = 0x4, fixed_abs, tag = 'smem constant byte address 0x4 - core index']
  #allocation1 [shape = 'u32[72,128]{1,0:T(1,128)}', space=vmem, size = 0x9000, scoped, tag = 'internal scratch']
  #allocation2 [shape = 'f32[8,32]{1,0:T(8,128)}', space=vmem, size = 0x1000, scoped, tag = 'scratch operand']
  %s0 = inlined_call_operand.vmem [shape: f32[2,8,32], index: 0, kind: input, shape index: {}]
  %s1 = inlined_call_operand.vmem [shape: f32[1,32], index: 1, kind: input, shape index: {}]
  %s2 = inlined_call_operand.vmem [shape: bf16[64,32], index: 2, kind: input, shape index: {}]
  %s3 = inlined_call_operand.hbm [shape: f32[2,8,64], index: 3, kind: output, shape index: {}]
  %s4 = sld [smem:[#allocation0]]
  $region49: #{fwd.7} parent=0
    _
  %s6 = ssub.s32 1, %s4
  %s7 = scalar_select 0, %s6, %s4
  $region1: #{fwd.7} parent=0
    #allocation3 [shape = 'u8[8192]{0}', space=vmem, size = 0x2000, scoped, tag = 'output window, operand 0']
    #allocation4 [shape = 's32[2]{0}', space=sflag, size = 0x8, scoped, tag = 'scoped memory for fwd.7']
    %8 = vsyncpa [#allocation4], 0
    %s9 = scalar_lea.sflag [#allocation4], 1
    %10 = vsyncpa %s9, 0
    loop: start=0, step=1, limit=4
    $region2: #{fwd.7} parent=1 // loop_pre_header
      _
    $region3: #{fwd.7} parent=1 // loop_header
      %s12 = sphi 0, %s16
      %p13 = scmp.ge.s32.totalorder %s12, 4
      %s19 = sphi 0, %s31
      %s20 = sphi 0, %s27
      %s21 = sphi 0, %s19
      %s22 = sphi 0, %s20
      %s23 = sphi 0, %s21
      %s24 = sphi 0, %s22
      %s34 = sphi 0, %s36
      %s37 = sphi 0, %s34
      %s38 = sphi 0, %s37
      %s54 = sphi 0, %s38
      %s58 = sphi 0, %s58
      %s60 = sphi 0, %s58
      %s61 = sphi 0, %s60
      %s75 = sphi 0, %s61
      %s81 = sphi 0, %s83
      %s84 = sphi 0, %s81
      %s85 = sphi 0, %s84
      %s101 = sphi 0, %s85
      %s109 = sphi 0, %s111
      %s112 = sphi 0, %s109
      %s113 = sphi 0, %s112
      %s129 = sphi 0, %s113
    $region4: #{fwd.7} parent=1 // loop_header_branch
      %15 = sbr.rel (%p13) target = $region8
    $region5: #{fwd.7} parent=1 // loop_body
      %s17 = ssub.s32 %s12, 1
      %s18 = ssub.s32 %s12, 2
      %s25 = sadd.s32 1, %s20
      %p26 = scmp.ge.s32.totalorder %s25, 1
      %s27 = scalar_select %p26, 0, %s25
      %s28 = sadd.s32 1, %s19
      %s29 = scalar_select %p26, %s28, %s19
      %p30 = scmp.ge.s32.totalorder %s29, 2
      %s31 = scalar_select %p30, 0, %s29
      %s32 = ssub.s32 %s19, %s31
      %p33 = scmp.eq.s32.totalorder %s32, 0
      %s35 = sadd.s32 %s34, 1
      %s36 = scalar_select %p33, %s34, %s35
      %p39 = pneg %p33
      %p40 = scmp.eq.s32.totalorder %s12, 1
      %p41 = por %p39, %p40
      %p42 = scmp.ne.s32.totalorder %s34, %s37
      %p43 = scmp.eq.s32.totalorder %s12, 0
      %p44 = por %p42, %p43
      %p45 = scmp.ne.s32.totalorder %s34, %s37
      %p46 = scmp.eq.s32.totalorder %s17, 1
      %p47 = por %p45, %p46
      %p48 = scmp.ne.s32.totalorder %s37, %s38
      %p49 = scmp.eq.s32.totalorder %s17, 0
      %p50 = por %p48, %p49
      %p51 = scmp.ne.s32.totalorder %s37, %s38
      %p52 = scmp.eq.s32.totalorder %s18, 1
      %p53 = por %p51, %p52
      %p55 = scmp.ne.s32.totalorder %s38, %s54
      %p56 = scmp.eq.s32.totalorder %s18, 0
      %p57 = por %p55, %p56
      %s59 = sadd.s32 %s58, 1
      %p62 = scmp.eq.s32.totalorder %s12, 1
      %p63 = scmp.ne.s32.totalorder %s58, %s60
      %p64 = scmp.eq.s32.totalorder %s12, 0
      %p65 = por %p63, %p64
      %p66 = scmp.ne.s32.totalorder %s58, %s60
      %p67 = scmp.eq.s32.totalorder %s17, 1
      %p68 = por %p66, %p67
      %p69 = scmp.ne.s32.totalorder %s60, %s61
      %p70 = scmp.eq.s32.totalorder %s17, 0
      %p71 = por %p69, %p70
      %p72 = scmp.ne.s32.totalorder %s60, %s61
      %p73 = scmp.eq.s32.totalorder %s18, 1
      %p74 = por %p72, %p73
      %p76 = scmp.ne.s32.totalorder %s61, %s75
      %p77 = scmp.eq.s32.totalorder %s18, 0
      %p78 = por %p76, %p77
      %s79 = ssub.s32 %s20, %s27
      %p80 = scmp.eq.s32.totalorder %s79, 0
      %s82 = sadd.s32 %s81, 1
      %s83 = scalar_select %p80, %s81, %s82
      %p86 = pneg %p80
      %p87 = scmp.eq.s32.totalorder %s12, 1
      %p88 = por %p86, %p87
      %p89 = scmp.ne.s32.totalorder %s81, %s84
      %p90 = scmp.eq.s32.totalorder %s12, 0
      %p91 = por %p89, %p90
      %p92 = scmp.ne.s32.totalorder %s81, %s84
      %p93 = scmp.eq.s32.totalorder %s17, 1
      %p94 = por %p92, %p93
      %p95 = scmp.ne.s32.totalorder %s84, %s85
      %p96 = scmp.eq.s32.totalorder %s17, 0
      %p97 = por %p95, %p96
      %p98 = scmp.ne.s32.totalorder %s84, %s85
      %p99 = scmp.eq.s32.totalorder %s18, 1
      %p100 = por %p98, %p99
      %p102 = scmp.ne.s32.totalorder %s85, %s101
      %p103 = scmp.eq.s32.totalorder %s18, 0
      %p104 = por %p102, %p103
      %s105 = ssub.s32 %s19, %s31
      %s106 = ssub.s32 %s20, %s27
      %s107 = sor.u32 %s105, %s106
      %p108 = scmp.eq.s32.totalorder %s107, 0
      %s110 = sadd.s32 %s109, 1
      %s111 = scalar_select %p108, %s109, %s110
      %p114 = pneg %p108
      %p115 = scmp.eq.s32.totalorder %s12, 1
      %p116 = por %p114, %p115
      %p117 = scmp.ne.s32.totalorder %s109, %s112
      %p118 = scmp.eq.s32.totalorder %s12, 0
      %p119 = por %p117, %p118
      %p120 = scmp.ne.s32.totalorder %s109, %s112
      %p121 = scmp.eq.s32.totalorder %s17, 1
      %p122 = por %p120, %p121
      %p123 = scmp.ne.s32.totalorder %s112, %s113
      %p124 = scmp.eq.s32.totalorder %s17, 0
      %p125 = por %p123, %p124
      %p126 = scmp.ne.s32.totalorder %s112, %s113
      %p127 = scmp.eq.s32.totalorder %s18, 1
      %p128 = por %p126, %p127
      %p130 = scmp.ne.s32.totalorder %s113, %s129
      %p131 = scmp.eq.s32.totalorder %s18, 0
      %p132 = por %p130, %p131
      %p133 = scmp.le.s32.totalorder 1, %s12
      %p134 = scmp.lt.s32.totalorder %s12, 3
      %p135 = pnand %p133, %p134
      %p136 = pneg %p135
      // Predicated region
      $region9: #{fwd.7} parent=5 // pred_check
        _
      $region10: #{fwd.7} parent=5 // pred_check_branch
        %138 = sbr.rel (%p135) target = $region12
      $region11: #{fwd.7} parent=5 // pred_region
        %s139 = ssub.s32 %s12, 1
        // Predicated region
        $region13: #{fwd.7} parent=11 // pred_check
          %p140 = pneg %p71
        $region14: #{fwd.7} parent=11 // pred_check_branch
          %142 = sbr.rel (%p140) target = $region16
        $region15: #{fwd.7} parent=11 // pred_region
          _
        $region16: #{fwd.7} parent=11 // pred_fallthru
          _
        // Predicated region
        $region17: #{fwd.7} parent=11 // pred_check
          %p143 = pneg %p97
        $region18: #{fwd.7} parent=11 // pred_check_branch
          %145 = sbr.rel (%p143) target = $region20
        $region19: #{fwd.7} parent=11 // pred_region
          %s146 = smul.u32 8, %s22
          %p147 = scmp.lt.s32.totalorder %s146, 7
          %s148 = scalar_select %p147, %s146, 7
          %s149 = smul.addr %s148, 4
          %s150 = scalar_lea.vmem %s2, %s149
          %s151 = smul.u32 8, %s22
        $region20: #{fwd.7} parent=11 // pred_fallthru
          _
      $region12: #{fwd.7} parent=5 // pred_fallthru
        _
      %p152 = scmp.lt.s32.totalorder %s12, 2
      // Predicated region
      $region21: #{fwd.7} parent=5 // pred_check
        %p153 = pneg %p152
      $region22: #{fwd.7} parent=5 // pred_check_branch
        %155 = sbr.rel (%p153) target = $region24
      $region23: #{fwd.7} parent=5 // pred_region
        // Predicated region
        $region25: #{fwd.7} parent=23 // pred_check
          %p156 = pneg %p44
        $region26: #{fwd.7} parent=23 // pred_check_branch
          %158 = sbr.rel (%p156) target = $region28
        $region27: #{fwd.7} parent=23 // pred_region
          %p159 = scmp.lt.s32.totalorder %s19, 1
          %s160 = scalar_select %p159, %s19, 1
          %s161 = smul.addr %s160, 8
          %s162 = scalar_lea.vmem %s0, %s161
        $region28: #{fwd.7} parent=23 // pred_fallthru
          _
      $region24: #{fwd.7} parent=5 // pred_fallthru
        _
      %p163 = scmp.le.s32.totalorder 1, %s12
      %p164 = scmp.lt.s32.totalorder %s12, 3
      %p165 = pnand %p163, %p164
      %p166 = pneg %p165
      // Predicated region
      $region29: #{fwd.7} parent=5 // pred_check
        _
      $region30: #{fwd.7} parent=5 // pred_check_branch
        %168 = sbr.rel (%p165) target = $region32
      $region31: #{fwd.7} parent=5 // pred_region
        %s169 = ssub.s32 %s12, 1
        %p170 = scmp.lt.s32.totalorder %s21, 1
        %s171 = scalar_select %p170, %s21, 1
        %s172 = smul.addr %s171, 8
        %s173 = scalar_lea.vmem %s0, %s172
        %p174 = pneg %p50
        %p175 = pneg %p47
        %p176 = pneg %p71
        %p177 = pneg %p68
        %s178 = smul.u32 8, %s22
        %p179 = scmp.lt.s32.totalorder %s178, 7
        %s180 = scalar_select %p179, %s178, 7
        %s181 = smul.addr %s180, 4
        %s182 = scalar_lea.vmem %s2, %s181
        %p183 = pneg %p97
        %p184 = pneg %p94
        %p185 = pneg %p125
        %p186 = pneg %p122
        %s187 = sand.u32 %s112, 1
        %s188 = scalar_lea.sflag [#allocation4], %s187
        %s189 = sand.u32 %s112, 1
        %s190 = smul.addr %s189, 8
        %s191 = scalar_lea.vmem [#allocation3], %s190
        %p192 = scmp.lt.s32.totalorder %s21, 1
        %s193 = scalar_select %p192, %s21, 1
        %s194 = smul.addr %s193, 8
        %s195 = scalar_lea.vmem %s0, %s194
        %s196 = smul.u32 8, %s22
        %p197 = scmp.lt.s32.totalorder %s196, 7
        %s198 = scalar_select %p197, %s196, 7
        %s199 = smul.addr %s198, 4
        %s200 = scalar_lea.vmem %s2, %s199
        %s201 = smul.u32 8, %s22
        %p203 = scmp.eq.s32.totalorder %s22, 0
        // Predicated region
        $region33: #{fwd.7} parent=31 // pred_check
          %p204 = pneg %p203
        $region34: #{fwd.7} parent=31 // pred_check_branch
          %206 = sbr.rel (%p204) target = $region36
        $region35: #{fwd.7} parent=31 // pred_region
          %v207 = vld [vmem:[%s195] sm:$0xff]
          %v208 = vld [vmem:[%s1] sm:$0x1]
          %vm209 = vcmask 261120
          %v210 = vsel %vm209, %v207, 0.0
          %211 = vadd.xlane.f32.xlu0 %v210
          %v212 = vpop.xlane.xlu0 %211
          %v213 = vrcp.pop 32.0
          %v214 = vmul.f32 32.0, %v213
          %v215 = vsub.f32 1.0, %v214
          %v216 = vmul.f32 %v213, %v215
          %v217 = vadd.f32 %v213, %v216
          %vm218 = vweird.f32 %v213
          %v219 = vsel %vm218, %v213, %v217
          %v220 = vmul.f32 %v212, %v219
          %v221 = vsub.f32 %v207, %v220
          %v222 = vmul.f32 %v221, %v221
          %v223 = vsel %vm209, %v222, 0.0
          %224 = vadd.xlane.f32.xlu0 %v223
          %v225 = vpop.xlane.xlu0 %224
          %v226 = vmul.f32 %v225, %v219
          %v227 = vadd.f32 %v226, 1e-05
          %v228 = vrsqrt.pop %v227
          %v229 = vmul.f32 %v228, %v227
          %v230 = vmul.f32 %v229, %v228
          %v231 = vmul.f32 0.5, %v230
          %v232 = vsub.f32 1.5, %v231
          %v233 = vmul.f32 %v228, %v232
          %vm234 = vweird.f32 %v227
          %vm235 = vweird.f32 %v228
          %vm236 = vmor %vm234, %vm235
          %v237 = vsel %vm236, %v228, %v233
          %v238 = vmul.f32 %v221, %v237
          %v240 = vperm.slane %v208, 0
          %v242 = vmul.f32 %v238, %v240
          %243 = vst.msk [vmem:[#allocation2] sm:$0xff] %vm209, %v242
        $region36: #{fwd.7} parent=31 // pred_fallthru
          _
        %v244 = vld [vmem:[#allocation2] sm:$0xff]
        %v245 = vpack.c.bf16 %v244, %v244
        %v246 = vld [vmem:[%s200] sm:$0xf]
        %v247 = vld [vmem:[%s200 + $0x4] sm:$0xf]
        %v248 = vld [vmem:[%s200 + $0x8] sm:$0xf]
        %v249 = vld [vmem:[%s200 + $0xc] sm:$0xf]
        %v250 = vld [vmem:[%s200 + $0x10] sm:$0xf]
        %v251 = vld [vmem:[%s200 + $0x14] sm:$0xf]
        %v252 = vld [vmem:[%s200 + $0x18] sm:$0xf]
        %v253 = vld [vmem:[%s200 + $0x1c] sm:$0xf]
        %v262 = vunpack.c.l.b16 %v246
        %v263 = vunpack.c.l.b16 %v247
        %v264 = vunpack.c.l.b16 %v248
        %v265 = vunpack.c.l.b16 %v249
        %v266 = vunpack.c.l.b16 %v250
        %v267 = vunpack.c.l.b16 %v251
        %v268 = vunpack.c.l.b16 %v252
        %v269 = vunpack.c.l.b16 %v253
        %v270 = vpack.c.b16 %v263, %v262
        %v271 = vpack.c.b16 %v265, %v264
        %v272 = vpack.c.b16 %v267, %v266
        %v273 = vpack.c.b16 %v269, %v268
        %vm274 = vcmask 261120
        %v276 = vsel %vm274, %v245, 0
        %v279 = vsel %vm274, %v270, 0
        %v282 = vsel %vm274, %v271, 0
        %v285 = vsel %vm274, %v272, 0
        %v288 = vsel %vm274, %v273, 0
        %290 = vmatpush.bf16.xpose.msra.mxu0 0
        %291 = vmatpush.bf16.xpose.msra.mxu0 0
        %292 = vmatpush.bf16.xpose.msra.mxu0 0
        %293 = vmatpush.bf16.xpose.msra.mxu0 0
        %294 = vmatpush.bf16.xpose.msra.mxu0 %v288
        %295 = vmatpush.bf16.xpose.msra.mxu0 %v285
        %296 = vmatpush.bf16.xpose.msra.mxu0 %v282
        %297 = vmatpush.bf16.xpose.msra.mxu0 %v279
        %298 = vmatmul.bf16.gmra.mxu0 %v276
        %v299 = vpop.f32.mrf.mxu0
        %v300 = vadd.f32 0.0, %v299
        %v301 = vpop.f32.mrf.mxu0
        %302 = vdwg.mxu0
        %vm303 = vcmask 523264
        %304 = vst.msk [vmem:[%s191] sm:$0xff] %vm303, %v300
        %s305 = sand.u32 %s112, 1
        %s306 = scalar_lea.sflag [#allocation4], %s305
        %s307 = sand.u32 %s112, 1
        %s308 = smul.addr %s307, 8
        %s309 = scalar_lea.vmem [#allocation3], %s308
        // Predicated region
        $region37: #{fwd.7} parent=31 // pred_check
          %p310 = pneg %p122
        $region38: #{fwd.7} parent=31 // pred_check_branch
          %312 = sbr.rel (%p310) target = $region40
        $region39: #{fwd.7} parent=31 // pred_region
          %314 = vsyncadd %s306, 0
          %s315 = sadd.s32 %s22, %s21
          %s316 = smul.addr %s315, 8
          %s317 = scalar_lea.hbm %s3, %s316
          %s319 = sshll.u32 %s309, 4
          %s320 = int_to_ptr.vmem [resolvable:$true] %s319
          %s321 = sshll.u32 %s317, 4
          %s322 = int_to_ptr.hbm [resolvable:$true] %s321
          %324 = dma.vmem_to_hbm [thread:$0]  %s320, 128, %s322, %s306
        $region40: #{fwd.7} parent=31 // pred_fallthru
          _
      $region32: #{fwd.7} parent=5 // pred_fallthru
        _
      %p325 = scmp.le.s32.totalorder 2, %s12
      // Predicated region
      $region41: #{fwd.7} parent=5 // pred_check
        %p326 = pneg %p325
      $region42: #{fwd.7} parent=5 // pred_check_branch
        %328 = sbr.rel (%p326) target = $region44
      $region43: #{fwd.7} parent=5 // pred_region
        %s329 = ssub.s32 %s12, 2
        // Predicated region
        $region45: #{fwd.7} parent=43 // pred_check
          %p330 = pneg %p128
        $region46: #{fwd.7} parent=43 // pred_check_branch
          %332 = sbr.rel (%p330) target = $region48
        $region47: #{fwd.7} parent=43 // pred_region
          %s333 = sand.u32 %s113, 1
          %s334 = scalar_lea.sflag [#allocation4], %s333
          %s335 = sand.u32 %s113, 1
          %s336 = smul.addr %s335, 8
          %s337 = scalar_lea.vmem [#allocation3], %s336
          %339 = dma.done %s334, 128
        $region48: #{fwd.7} parent=43 // pred_fallthru
          _
      $region44: #{fwd.7} parent=5 // pred_fallthru
        _
    $region6: #{fwd.7} parent=1 // loop_footer
      %s16 = sadd.s32 1, %s12
    $region7: #{fwd.7} parent=1 // loop_footer_branch
      %11 = sbr.rel target = $region3
    $region8: #{fwd.7} parent=1 // loop_exit
      _
    %340 = vsyncpa [#allocation4], 1
    %s341 = scalar_lea.sflag [#allocation4], 1
    %342 = vsyncpa %s341, 1

// kernel: fwd.5
$region0: #{fwd.5}
  #allocation0 [shape = 'u32[]', space=smem, size = 0x4, offset = 0x4, fixed_abs, tag = 'smem constant byte address 0x4 - core index']
  #allocation1 [shape = 'u32[72,128]{1,0:T(1,128)}', space=vmem, size = 0x9000, scoped, tag = 'internal scratch']
  %s0 = inlined_call_operand.vmem [shape: f32[2,8,32], index: 0, kind: input, shape index: {}]
  %s1 = inlined_call_operand.vmem [shape: f32[2,8,48], index: 1, kind: input, shape index: {}]
  %s2 = inlined_call_operand.vmem [shape: f32[1,32], index: 2, kind: input, shape index: {}]
  %s3 = inlined_call_operand.vmem [shape: f32[1,48], index: 3, kind: input, shape index: {}]
  %s4 = inlined_call_operand.vmem [shape: bf16[32,32], index: 4, kind: input, shape index: {}]
  %s5 = inlined_call_operand.vmem [shape: bf16[48,16], index: 5, kind: input, shape index: {}]
  %s6 = inlined_call_operand.vmem [shape: bf16[48,16], index: 6, kind: input, shape index: {}]
  %s7 = inlined_call_operand.vmem [shape: bf16[32,32], index: 7, kind: input, shape index: {}]
  %s8 = inlined_call_operand.vmem [shape: f32[1,32], index: 8, kind: input, shape index: {}]
  %s9 = inlined_call_operand.vmem [shape: f32[2,8,32], index: 9, kind: output, shape index: {}]
  %s10 = sld [smem:[#allocation0]]
  $region69: #{fwd.5} parent=0
    _
  %s12 = ssub.s32 1, %s10
  %s13 = scalar_select 0, %s12, %s10
  loop: start=0, step=1, limit=4
  $region2: #{fwd.5} parent=0 // loop_pre_header
    _
  $region3: #{fwd.5} parent=0 // loop_header
    %s15 = sphi 0, %s19
    %p16 = scmp.ge.s32.totalorder %s15, 4
    %s25 = sphi 0, %s27
    %s28 = sphi 0, %s25
    %s29 = sphi 0, %s28
    %s45 = sphi 0, %s29
    %s51 = sphi 0, %s53
    %s54 = sphi 0, %s51
    %s55 = sphi 0, %s54
    %s71 = sphi 0, %s55
    %s75 = sphi 0, %s75
    %s77 = sphi 0, %s75
    %s78 = sphi 0, %s77
    %s92 = sphi 0, %s78
    %s96 = sphi 0, %s96
    %s98 = sphi 0, %s96
    %s99 = sphi 0, %s98
    %s113 = sphi 0, %s99
    %s117 = sphi 0, %s117
    %s119 = sphi 0, %s117
    %s120 = sphi 0, %s119
    %s134 = sphi 0, %s120
    %s138 = sphi 0, %s138
    %s140 = sphi 0, %s138
    %s141 = sphi 0, %s140
    %s155 = sphi 0, %s141
    %s159 = sphi 0, %s159
    %s161 = sphi 0, %s159
    %s162 = sphi 0, %s161
    %s176 = sphi 0, %s162
    %s180 = sphi 0, %s180
    %s182 = sphi 0, %s180
    %s183 = sphi 0, %s182
    %s197 = sphi 0, %s183
    %s201 = sphi 0, %s201
    %s203 = sphi 0, %s201
    %s204 = sphi 0, %s203
    %s218 = sphi 0, %s204
    %s224 = sphi 0, %s226
    %s227 = sphi 0, %s224
    %s228 = sphi 0, %s227
    %s244 = sphi 0, %s228
  $region4: #{fwd.5} parent=0 // loop_header_branch
    %18 = sbr.rel (%p16) target = $region8
  $region5: #{fwd.5} parent=0 // loop_body
    %s20 = ssub.s32 %s15, 1
    %s21 = ssub.s32 %s15, 2
    %s22 = sadd.s32 %s15, 1
    %s23 = ssub.s32 %s15, %s22
    %p24 = scmp.eq.s32.totalorder %s23, 0
    %s26 = sadd.s32 %s25, 1
    %s27 = scalar_select %p24, %s25, %s26
    %p30 = pneg %p24
    %p31 = scmp.eq.s32.totalorder %s15, 1
    %p32 = por %p30, %p31
    %p33 = scmp.ne.s32.totalorder %s25, %s28
    %p34 = scmp.eq.s32.totalorder %s15, 0
    %p35 = por %p33, %p34
    %p36 = scmp.ne.s32.totalorder %s25, %s28
    %p37 = scmp.eq.s32.totalorder %s20, 1
    %p38 = por %p36, %p37
    %p39 = scmp.ne.s32.totalorder %s28, %s29
    %p40 = scmp.eq.s32.totalorder %s20, 0
    %p41 = por %p39, %p40
    %p42 = scmp.ne.s32.totalorder %s28, %s29
    %p43 = scmp.eq.s32.totalorder %s21, 1
    %p44 = por %p42, %p43
    %p46 = scmp.ne.s32.totalorder %s29, %s45
    %p47 = scmp.eq.s32.totalorder %s21, 0
    %p48 = por %p46, %p47
    %s49 = ssub.s32 %s15, %s22
    %p50 = scmp.eq.s32.totalorder %s49, 0
    %s52 = sadd.s32 %s51, 1
    %s53 = scalar_select %p50, %s51, %s52
    %p56 = pneg %p50
    %p57 = scmp.eq.s32.totalorder %s15, 1
    %p58 = por %p56, %p57
    %p59 = scmp.ne.s32.totalorder %s51, %s54
    %p60 = scmp.eq.s32.totalorder %s15, 0
    %p61 = por %p59, %p60
    %p62 = scmp.ne.s32.totalorder %s51, %s54
    %p63 = scmp.eq.s32.totalorder %s20, 1
    %p64 = por %p62, %p63
    %p65 = scmp.ne.s32.totalorder %s54, %s55
    %p66 = scmp.eq.s32.totalorder %s20, 0
    %p67 = por %p65, %p66
    %p68 = scmp.ne.s32.totalorder %s54, %s55
    %p69 = scmp.eq.s32.totalorder %s21, 1
    %p70 = por %p68, %p69
    %p72 = scmp.ne.s32.totalorder %s55, %s71
    %p73 = scmp.eq.s32.totalorder %s21, 0
    %p74 = por %p72, %p73
    %s76 = sadd.s32 %s75, 1
    %p79 = scmp.eq.s32.totalorder %s15, 1
    %p80 = scmp.ne.s32.totalorder %s75, %s77
    %p81 = scmp.eq.s32.totalorder %s15, 0
    %p82 = por %p80, %p81
    %p83 = scmp.ne.s32.totalorder %s75, %s77
    %p84 = scmp.eq.s32.totalorder %s20, 1
    %p85 = por %p83, %p84
    %p86 = scmp.ne.s32.totalorder %s77, %s78
    %p87 = scmp.eq.s32.totalorder %s20, 0
    %p88 = por %p86, %p87
    %p89 = scmp.ne.s32.totalorder %s77, %s78
    %p90 = scmp.eq.s32.totalorder %s21, 1
    %p91 = por %p89, %p90
    %p93 = scmp.ne.s32.totalorder %s78, %s92
    %p94 = scmp.eq.s32.totalorder %s21, 0
    %p95 = por %p93, %p94
    %s97 = sadd.s32 %s96, 1
    %p100 = scmp.eq.s32.totalorder %s15, 1
    %p101 = scmp.ne.s32.totalorder %s96, %s98
    %p102 = scmp.eq.s32.totalorder %s15, 0
    %p103 = por %p101, %p102
    %p104 = scmp.ne.s32.totalorder %s96, %s98
    %p105 = scmp.eq.s32.totalorder %s20, 1
    %p106 = por %p104, %p105
    %p107 = scmp.ne.s32.totalorder %s98, %s99
    %p108 = scmp.eq.s32.totalorder %s20, 0
    %p109 = por %p107, %p108
    %p110 = scmp.ne.s32.totalorder %s98, %s99
    %p111 = scmp.eq.s32.totalorder %s21, 1
    %p112 = por %p110, %p111
    %p114 = scmp.ne.s32.totalorder %s99, %s113
    %p115 = scmp.eq.s32.totalorder %s21, 0
    %p116 = por %p114, %p115
    %s118 = sadd.s32 %s117, 1
    %p121 = scmp.eq.s32.totalorder %s15, 1
    %p122 = scmp.ne.s32.totalorder %s117, %s119
    %p123 = scmp.eq.s32.totalorder %s15, 0
    %p124 = por %p122, %p123
    %p125 = scmp.ne.s32.totalorder %s117, %s119
    %p126 = scmp.eq.s32.totalorder %s20, 1
    %p127 = por %p125, %p126
    %p128 = scmp.ne.s32.totalorder %s119, %s120
    %p129 = scmp.eq.s32.totalorder %s20, 0
    %p130 = por %p128, %p129
    %p131 = scmp.ne.s32.totalorder %s119, %s120
    %p132 = scmp.eq.s32.totalorder %s21, 1
    %p133 = por %p131, %p132
    %p135 = scmp.ne.s32.totalorder %s120, %s134
    %p136 = scmp.eq.s32.totalorder %s21, 0
    %p137 = por %p135, %p136
    %s139 = sadd.s32 %s138, 1
    %p142 = scmp.eq.s32.totalorder %s15, 1
    %p143 = scmp.ne.s32.totalorder %s138, %s140
    %p144 = scmp.eq.s32.totalorder %s15, 0
    %p145 = por %p143, %p144
    %p146 = scmp.ne.s32.totalorder %s138, %s140
    %p147 = scmp.eq.s32.totalorder %s20, 1
    %p148 = por %p146, %p147
    %p149 = scmp.ne.s32.totalorder %s140, %s141
    %p150 = scmp.eq.s32.totalorder %s20, 0
    %p151 = por %p149, %p150
    %p152 = scmp.ne.s32.totalorder %s140, %s141
    %p153 = scmp.eq.s32.totalorder %s21, 1
    %p154 = por %p152, %p153
    %p156 = scmp.ne.s32.totalorder %s141, %s155
    %p157 = scmp.eq.s32.totalorder %s21, 0
    %p158 = por %p156, %p157
    %s160 = sadd.s32 %s159, 1
    %p163 = scmp.eq.s32.totalorder %s15, 1
    %p164 = scmp.ne.s32.totalorder %s159, %s161
    %p165 = scmp.eq.s32.totalorder %s15, 0
    %p166 = por %p164, %p165
    %p167 = scmp.ne.s32.totalorder %s159, %s161
    %p168 = scmp.eq.s32.totalorder %s20, 1
    %p169 = por %p167, %p168
    %p170 = scmp.ne.s32.totalorder %s161, %s162
    %p171 = scmp.eq.s32.totalorder %s20, 0
    %p172 = por %p170, %p171
    %p173 = scmp.ne.s32.totalorder %s161, %s162
    %p174 = scmp.eq.s32.totalorder %s21, 1
    %p175 = por %p173, %p174
    %p177 = scmp.ne.s32.totalorder %s162, %s176
    %p178 = scmp.eq.s32.totalorder %s21, 0
    %p179 = por %p177, %p178
    %s181 = sadd.s32 %s180, 1
    %p184 = scmp.eq.s32.totalorder %s15, 1
    %p185 = scmp.ne.s32.totalorder %s180, %s182
    %p186 = scmp.eq.s32.totalorder %s15, 0
    %p187 = por %p185, %p186
    %p188 = scmp.ne.s32.totalorder %s180, %s182
    %p189 = scmp.eq.s32.totalorder %s20, 1
    %p190 = por %p188, %p189
    %p191 = scmp.ne.s32.totalorder %s182, %s183
    %p192 = scmp.eq.s32.totalorder %s20, 0
    %p193 = por %p191, %p192
    %p194 = scmp.ne.s32.totalorder %s182, %s183
    %p195 = scmp.eq.s32.totalorder %s21, 1
    %p196 = por %p194, %p195
    %p198 = scmp.ne.s32.totalorder %s183, %s197
    %p199 = scmp.eq.s32.totalorder %s21, 0
    %p200 = por %p198, %p199
    %s202 = sadd.s32 %s201, 1
    %p205 = scmp.eq.s32.totalorder %s15, 1
    %p206 = scmp.ne.s32.totalorder %s201, %s203
    %p207 = scmp.eq.s32.totalorder %s15, 0
    %p208 = por %p206, %p207
    %p209 = scmp.ne.s32.totalorder %s201, %s203
    %p210 = scmp.eq.s32.totalorder %s20, 1
    %p211 = por %p209, %p210
    %p212 = scmp.ne.s32.totalorder %s203, %s204
    %p213 = scmp.eq.s32.totalorder %s20, 0
    %p214 = por %p212, %p213
    %p215 = scmp.ne.s32.totalorder %s203, %s204
    %p216 = scmp.eq.s32.totalorder %s21, 1
    %p217 = por %p215, %p216
    %p219 = scmp.ne.s32.totalorder %s204, %s218
    %p220 = scmp.eq.s32.totalorder %s21, 0
    %p221 = por %p219, %p220
    %s222 = ssub.s32 %s15, %s22
    %p223 = scmp.eq.s32.totalorder %s222, 0
    %s225 = sadd.s32 %s224, 1
    %s226 = scalar_select %p223, %s224, %s225
    %p229 = pneg %p223
    %p230 = scmp.eq.s32.totalorder %s15, 1
    %p231 = por %p229, %p230
    %p232 = scmp.ne.s32.totalorder %s224, %s227
    %p233 = scmp.eq.s32.totalorder %s15, 0
    %p234 = por %p232, %p233
    %p235 = scmp.ne.s32.totalorder %s224, %s227
    %p236 = scmp.eq.s32.totalorder %s20, 1
    %p237 = por %p235, %p236
    %p238 = scmp.ne.s32.totalorder %s227, %s228
    %p239 = scmp.eq.s32.totalorder %s20, 0
    %p240 = por %p238, %p239
    %p241 = scmp.ne.s32.totalorder %s227, %s228
    %p242 = scmp.eq.s32.totalorder %s21, 1
    %p243 = por %p241, %p242
    %p245 = scmp.ne.s32.totalorder %s228, %s244
    %p246 = scmp.eq.s32.totalorder %s21, 0
    %p247 = por %p245, %p246
    %p248 = scmp.le.s32.totalorder 1, %s15
    %p249 = scmp.lt.s32.totalorder %s15, 3
    %p250 = pnand %p248, %p249
    %p251 = pneg %p250
    // Predicated region
    $region9: #{fwd.5} parent=5 // pred_check
      _
    $region10: #{fwd.5} parent=5 // pred_check_branch
      %253 = sbr.rel (%p250) target = $region12
    $region11: #{fwd.5} parent=5 // pred_region
      %s254 = ssub.s32 %s15, 1
      // Predicated region
      $region13: #{fwd.5} parent=11 // pred_check
        %p255 = pneg %p88
      $region14: #{fwd.5} parent=11 // pred_check_branch
        %257 = sbr.rel (%p255) target = $region16
      $region15: #{fwd.5} parent=11 // pred_region
        _
      $region16: #{fwd.5} parent=11 // pred_fallthru
        _
      // Predicated region
      $region17: #{fwd.5} parent=11 // pred_check
        %p258 = pneg %p109
      $region18: #{fwd.5} parent=11 // pred_check_branch
        %260 = sbr.rel (%p258) target = $region20
      $region19: #{fwd.5} parent=11 // pred_region
        _
      $region20: #{fwd.5} parent=11 // pred_fallthru
        _
      // Predicated region
      $region21: #{fwd.5} parent=11 // pred_check
        %p261 = pneg %p130
      $region22: #{fwd.5} parent=11 // pred_check_branch
        %263 = sbr.rel (%p261) target = $region24
      $region23: #{fwd.5} parent=11 // pred_region
        _
      $region24: #{fwd.5} parent=11 // pred_fallthru
        _
      // Predicated region
      $region25: #{fwd.5} parent=11 // pred_check
        %p264 = pneg %p151
      $region26: #{fwd.5} parent=11 // pred_check_branch
        %266 = sbr.rel (%p264) target = $region28
      $region27: #{fwd.5} parent=11 // pred_region
        _
      $region28: #{fwd.5} parent=11 // pred_fallthru
        _
      // Predicated region
      $region29: #{fwd.5} parent=11 // pred_check
        %p267 = pneg %p172
      $region30: #{fwd.5} parent=11 // pred_check_branch
        %269 = sbr.rel (%p267) target = $region32
      $region31: #{fwd.5} parent=11 // pred_region
        _
      $region32: #{fwd.5} parent=11 // pred_fallthru
        _
      // Predicated region
      $region33: #{fwd.5} parent=11 // pred_check
        %p270 = pneg %p193
      $region34: #{fwd.5} parent=11 // pred_check_branch
        %272 = sbr.rel (%p270) target = $region36
      $region35: #{fwd.5} parent=11 // pred_region
        _
      $region36: #{fwd.5} parent=11 // pred_fallthru
        _
      // Predicated region
      $region37: #{fwd.5} parent=11 // pred_check
        %p273 = pneg %p214
      $region38: #{fwd.5} parent=11 // pred_check_branch
        %275 = sbr.rel (%p273) target = $region40
      $region39: #{fwd.5} parent=11 // pred_region
        _
      $region40: #{fwd.5} parent=11 // pred_fallthru
        _
    $region12: #{fwd.5} parent=5 // pred_fallthru
      _
    %p276 = scmp.lt.s32.totalorder %s15, 2
    // Predicated region
    $region41: #{fwd.5} parent=5 // pred_check
      %p277 = pneg %p276
    $region42: #{fwd.5} parent=5 // pred_check_branch
      %279 = sbr.rel (%p277) target = $region44
    $region43: #{fwd.5} parent=5 // pred_region
      // Predicated region
      $region45: #{fwd.5} parent=43 // pred_check
        %p280 = pneg %p35
      $region46: #{fwd.5} parent=43 // pred_check_branch
        %282 = sbr.rel (%p280) target = $region48
      $region47: #{fwd.5} parent=43 // pred_region
        %p283 = scmp.lt.s32.totalorder %s15, 1
        %s284 = scalar_select %p283, %s15, 1
        %s285 = smul.addr %s284, 8
        %s286 = scalar_lea.vmem %s0, %s285
      $region48: #{fwd.5} parent=43 // pred_fallthru
        _
      // Predicated region
      $region49: #{fwd.5} parent=43 // pred_check
        %p287 = pneg %p61
      $region50: #{fwd.5} parent=43 // pred_check_branch
        %289 = sbr.rel (%p287) target = $region52
      $region51: #{fwd.5} parent=43 // pred_region
        %p290 = scmp.lt.s32.totalorder %s15, 1
        %s291 = scalar_select %p290, %s15, 1
        %s292 = smul.addr %s291, 8
        %s293 = scalar_lea.vmem %s1, %s292
      $region52: #{fwd.5} parent=43 // pred_fallthru
        _
    $region44: #{fwd.5} parent=5 // pred_fallthru
      _
    %p294 = scmp.le.s32.totalorder 1, %s15
    %p295 = scmp.lt.s32.totalorder %s15, 3
    %p296 = pnand %p294, %p295
    %p297 = pneg %p296
    // Predicated region
    $region53: #{fwd.5} parent=5 // pred_check
      _
    $region54: #{fwd.5} parent=5 // pred_check_branch
      %299 = sbr.rel (%p296) target = $region56
    $region55: #{fwd.5} parent=5 // pred_region
      %s300 = ssub.s32 %s15, 1
      %p301 = scmp.lt.s32.totalorder %s20, 1
      %s302 = scalar_select %p301, %s20, 1
      %s303 = smul.addr %s302, 8
      %s304 = scalar_lea.vmem %s0, %s303
      %p305 = pneg %p41
      %p306 = pneg %p38
      %p307 = scmp.lt.s32.totalorder %s20, 1
      %s308 = scalar_select %p307, %s20, 1
      %s309 = smul.addr %s308, 8
      %s310 = scalar_lea.vmem %s1, %s309
      %p311 = pneg %p67
      %p312 = pneg %p64
      %p313 = pneg %p88
      %p314 = pneg %p85
      %p315 = pneg %p109
      %p316 = pneg %p106
      %p317 = pneg %p130
      %p318 = pneg %p127
      %p319 = pneg %p151
      %p320 = pneg %p148
      %p321 = pneg %p172
      %p322 = pneg %p169
      %p323 = pneg %p193
      %p324 = pneg %p190
      %p325 = pneg %p214
      %p326 = pneg %p211
      %p327 = pneg %p240
      %p328 = pneg %p237
      %p329 = scmp.lt.s32.totalorder %s20, 1
      %s330 = scalar_select %p329, %s20, 1
      %s331 = smul.addr %s330, 8
      %s332 = scalar_lea.vmem %s9, %s331
      %p333 = scmp.lt.s32.totalorder %s20, 1
      %s334 = scalar_select %p333, %s20, 1
      %s335 = smul.addr %s334, 8
      %s336 = scalar_lea.vmem %s0, %s335
      %p337 = scmp.lt.s32.totalorder %s20, 1
      %s338 = scalar_select %p337, %s20, 1
      %s339 = smul.addr %s338, 8
      %s340 = scalar_lea.vmem %s1, %s339
      %p341 = scmp.lt.s32.totalorder %s20, 1
      %s342 = scalar_select %p341, %s20, 1
      %s343 = smul.addr %s342, 8
      %s344 = scalar_lea.vmem %s9, %s343
      %v346 = vld [vmem:[%s336] sm:$0xff]
      %v347 = vld [vmem:[%s340] sm:$0xff]
      %v348 = vld [vmem:[%s2] sm:$0x1]
      %v349 = vld [vmem:[%s3] sm:$0x1]
      %v350 = vld [vmem:[%s4] sm:$0xf]
      %v351 = vld [vmem:[%s4 + $0x4] sm:$0xf]
      %v352 = vld [vmem:[%s4 + $0x8] sm:$0xf]
      %v353 = vld [vmem:[%s4 + $0xc] sm:$0xf]
      %v354 = vld [vmem:[%s5] sm:$0xf]
      %v355 = vld [vmem:[%s5 + $0x4] sm:$0xf]
      %v356 = vld [vmem:[%s5 + $0x8] sm:$0xf]
      %v357 = vld [vmem:[%s5 + $0xc] sm:$0xf]
      %v358 = vld [vmem:[%s5 + $0x10] sm:$0xf]
      %v359 = vld [vmem:[%s5 + $0x14] sm:$0xf]
      %v360 = vld [vmem:[%s6] sm:$0xf]
      %v361 = vld [vmem:[%s6 + $0x4] sm:$0xf]
      %v362 = vld [vmem:[%s6 + $0x8] sm:$0xf]
      %v363 = vld [vmem:[%s6 + $0xc] sm:$0xf]
      %v364 = vld [vmem:[%s6 + $0x10] sm:$0xf]
      %v365 = vld [vmem:[%s6 + $0x14] sm:$0xf]
      %v366 = vld [vmem:[%s7] sm:$0xf]
      %v367 = vld [vmem:[%s7 + $0x4] sm:$0xf]
      %v368 = vld [vmem:[%s7 + $0x8] sm:$0xf]
      %v369 = vld [vmem:[%s7 + $0xc] sm:$0xf]
      %vm370 = vcmask 261120
      %v371 = vsel %vm370, %v346, 0.0
      %372 = vadd.xlane.f32.xlu0 %v371
      %v373 = vpop.xlane.xlu0 %372
      %v374 = vrcp.pop 32.0
      %v375 = vmul.f32 32.0, %v374
      %v376 = vsub.f32 1.0, %v375
      %v377 = vmul.f32 %v374, %v376
      %v378 = vadd.f32 %v374, %v377
      %vm379 = vweird.f32 %v374
      %v380 = vsel %vm379, %v374, %v378
      %v381 = vmul.f32 %v373, %v380
      %v382 = vsub.f32 %v346, %v381
      %v383 = vmul.f32 %v382, %v382
      %v384 = vsel %vm370, %v383, 0.0
      %385 = vadd.xlane.f32.xlu0 %v384
      %v386 = vpop.xlane.xlu0 %385
      %v387 = vmul.f32 %v386, %v380
      %v388 = vadd.f32 %v387, 1e-05
      %v389 = vrsqrt.pop %v388
      %v390 = vmul.f32 %v389, %v388
      %v391 = vmul.f32 %v390, %v389
      %v392 = vmul.f32 0.5, %v391
      %v393 = vsub.f32 1.5, %v392
      %v394 = vmul.f32 %v389, %v393
      %vm395 = vweird.f32 %v388
      %vm396 = vweird.f32 %v389
      %vm397 = vmor %vm395, %vm396
      %v398 = vsel %vm397, %v389, %v394
      %v399 = vmul.f32 %v382, %v398
      %v401 = vperm.slane %v348, 0
      %v403 = vmul.f32 %v399, %v401
      %v404 = vpack.c.bf16 %v403, %v403
      %vm405 = vcmask 392192
      %v406 = vsel %vm405, %v347, 0.0
      %407 = vadd.xlane.f32.xlu0 %v406
      %v408 = vpop.xlane.xlu0 %407
      %v409 = vrcp.pop 48.0
      %v410 = vmul.f32 48.0, %v409
      %v411 = vsub.f32 1.0, %v410
      %v412 = vmul.f32 %v409, %v411
      %v413 = vadd.f32 %v409, %v412
      %vm414 = vweird.f32 %v409
      %v415 = vsel %vm414, %v409, %v413
      %v416 = vmul.f32 %v408, %v415
      %v417 = vsub.f32 %v347, %v416
      %v418 = vmul.f32 %v417, %v417
      %v419 = vsel %vm405, %v418, 0.0
      %420 = vadd.xlane.f32.xlu0 %v419
      %v421 = vpop.xlane.xlu0 %420
      %v422 = vmul.f32 %v421, %v415
      %v423 = vadd.f32 %v422, 1e-05
      %v424 = vrsqrt.pop %v423
      %v425 = vmul.f32 %v424, %v423
      %v426 = vmul.f32 %v425, %v424
      %v427 = vmul.f32 0.5, %v426
      %v428 = vsub.f32 1.5, %v427
      %v429 = vmul.f32 %v424, %v428
      %vm430 = vweird.f32 %v423
      %vm431 = vweird.f32 %v424
      %vm432 = vmor %vm430, %vm431
      %v433 = vsel %vm432, %v424, %v429
      %v434 = vmul.f32 %v417, %v433
      %v436 = vperm.slane %v349, 0
      %v438 = vmul.f32 %v434, %v436
      %v439 = vpack.c.bf16 %v438, %v438
      %v446 = vunpack.c.l.b16 %v354
      %v447 = vunpack.c.l.b16 %v355
      %v448 = vunpack.c.l.b16 %v356
      %v449 = vunpack.c.l.b16 %v357
      %v450 = vunpack.c.l.b16 %v358
      %v451 = vunpack.c.l.b16 %v359
      %v452 = vpack.c.b16 %v447, %v446
      %v453 = vpack.c.b16 %v449, %v448
      %v454 = vpack.c.b16 %v451, %v450
      %v459 = vsel %vm405, %v439, 0
      %461 = vmatpush.bf16.msra.mxu0 0
      %462 = vmatpush.bf16.msra.mxu0 0
      %463 = vmatpush.bf16.msra.mxu0 0
      %464 = vmatpush.bf16.msra.mxu0 0
      %465 = vmatpush.bf16.msra.mxu0 0
      %466 = vmatpush.bf16.msra.mxu0 %v454
      %467 = vmatpush.bf16.msra.mxu0 %v453
      %468 = vmatpush.bf16.msra.mxu0 %v452
      %469 = vmatmul.bf16.gmra.mxu0 %v459
      %v470 = vpop.f32.mrf.mxu0
      %v471 = vadd.f32 0.0, %v470
      %v472 = vpop.f32.mrf.mxu0
      %473 = vdwg.mxu0
      %v480 = vunpack.c.l.b16 %v360
      %v481 = vunpack.c.l.b16 %v361
      %v482 = vunpack.c.l.b16 %v362
      %v483 = vunpack.c.l.b16 %v363
      %v484 = vunpack.c.l.b16 %v364
      %v485 = vunpack.c.l.b16 %v365
      %v486 = vpack.c.b16 %v481, %v480
      %v487 = vpack.c.b16 %v483, %v482
      %v488 = vpack.c.b16 %v485, %v484
      %492 = vmatpush.bf16.msra.mxu0 0
      %493 = vmatpush.bf16.msra.mxu0 0
      %494 = vmatpush.bf16.msra.mxu0 0
      %495 = vmatpush.bf16.msra.mxu0 0
      %496 = vmatpush.bf16.msra.mxu0 0
      %497 = vmatpush.bf16.msra.mxu0 %v488
      %498 = vmatpush.bf16.msra.mxu0 %v487
      %499 = vmatpush.bf16.msra.mxu0 %v486
      %500 = vmatmul.bf16.gmra.mxu0 %v459
      %v501 = vpop.f32.mrf.mxu0
      %v502 = vadd.f32 0.0, %v501
      %v503 = vpop.f32.mrf.mxu0
      %504 = vdwg.mxu0
      %v509 = vunpack.c.l.b16 %v350
      %v510 = vunpack.c.l.b16 %v351
      %v511 = vunpack.c.l.b16 %v352
      %v512 = vunpack.c.l.b16 %v353
      %v513 = vpack.c.b16 %v510, %v509
      %v514 = vpack.c.b16 %v512, %v511
      %v518 = vsel %vm370, %v404, 0
      %520 = vmatpush.bf16.msra.mxu0 0
      %521 = vmatpush.bf16.msra.mxu0 0
      %522 = vmatpush.bf16.msra.mxu0 0
      %523 = vmatpush.bf16.msra.mxu0 0
      %524 = vmatpush.bf16.msra.mxu0 0
      %525 = vmatpush.bf16.msra.mxu0 0
      %526 = vmatpush.bf16.msra.mxu0 %v514
      %527 = vmatpush.bf16.msra.mxu0 %v513
      %528 = vmatmul.bf16.gmra.mxu0 %v518
      %v529 = vpop.f32.mrf.mxu0
      %v530 = vadd.f32 0.0, %v529
      %v531 = vpop.f32.mrf.mxu0
      %532 = vdwg.mxu0
      %534 = vrot.lane.b32.xlu0 %v530, 112
      %v535 = vpop.permute.xlu0 %534
      %v537 = vpack.c.bf16 %v535, %v530
      %v538 = vpack.c.bf16 %v471, %v471
      %vm539 = vcmask 130048
      %v541 = vsel %vm539, %v537, 0
      %v544 = vsel %vm539, %v538, 0
      %546 = vmatpush.bf16.xpose.msra.mxu0 0
      %547 = vmatpush.bf16.xpose.msra.mxu0 0
      %548 = vmatpush.bf16.xpose.msra.mxu0 0
      %549 = vmatpush.bf16.xpose.msra.mxu0 0
      %550 = vmatpush.bf16.xpose.msra.mxu0 0
      %551 = vmatpush.bf16.xpose.msra.mxu0 0
      %552 = vmatpush.bf16.xpose.msra.mxu0 0
      %553 = vmatpush.bf16.xpose.msra.mxu0 %v544
      %554 = vmatmul.bf16.gmra.mxu0 %v541
      %v555 = vpop.f32.mrf.mxu0
      %v556 = vadd.f32 0.0, %v555
      %v557 = vpop.f32.mrf.mxu0
      %v558 = vadd.f32 0.0, %v557
      %559 = vdwg.mxu0
      %vm560 = vcmask 64512
      %v561 = vsel %vm560, %v556, -inf
      %562 = vmax.xlane.f32.xlu0 %v561
      %v563 = vpop.xlane.xlu0 %562
      %v564 = vsel %vm560, %v558, -inf
      %565 = vmax.xlane.f32.xlu0 %v564
      %v566 = vpop.xlane.xlu0 %565
      %v567 = vsub.f32 %v556, %v563
      %v568 = vsub.f32 %v558, %v566
      %v569 = vmul.f32 %v567, 1.442695
      %v570 = vpow.pop %v569
      %v571 = vmul.f32 %v568, 1.442695
      %v572 = vpow.pop %v571
      %v573 = vsel %vm560, %v570, 0.0
      %574 = vadd.xlane.f32.xlu0 %v573
      %v575 = vpop.xlane.xlu0 %574
      %v576 = vsel %vm560, %v572, 0.0
      %577 = vadd.xlane.f32.xlu0 %v576
      %v578 = vpop.xlane.xlu0 %577
      %v579 = vrcp.pop %v575
      %v580 = vrcp.pop %v578
      %v581 = vmul.f32 %v570, %v579
      %v582 = vmul.f32 %v572, %v580
      %v583 = vpack.c.bf16 %v582, %v581
      %v584 = vpack.c.bf16 %v502, %v502
      %v586 = vsel %vm560, %v583, 0
      %vm588 = vcmask 1043456
      %v590 = vsel %vm588, %v584, 0
      %592 = vmatpush.bf16.msra.mxu0 0
      %593 = vmatpush.bf16.msra.mxu0 0
      %594 = vmatpush.bf16.msra.mxu0 0
      %595 = vmatpush.bf16.msra.mxu0 0
      %596 = vmatpush.bf16.msra.mxu0 0
      %597 = vmatpush.bf16.msra.mxu0 0
      %598 = vmatpush.bf16.msra.mxu0 0
      %599 = vmatpush.bf16.msra.mxu0 %v590
      %600 = vmatmul.bf16.gmra.mxu0 %v586
      %v601 = vpop.f32.mrf.mxu0
      %v602 = vadd.f32 0.0, %v601
      %v603 = vpop.f32.mrf.mxu0
      %v604 = vadd.f32 0.0, %v603
      %605 = vdwg.mxu0
      %607 = vrot.lane.b32.xlu0 %v604, 16
      %v608 = vpop.permute.xlu0 %607
      %v610 = vsel %vm539, %v602, %v608
      %v611 = vpack.c.bf16 %v610, %v610
      %v616 = vunpack.c.l.b16 %v366
      %v617 = vunpack.c.l.b16 %v367
      %v618 = vunpack.c.l.b16 %v368
      %v619 = vunpack.c.l.b16 %v369
      %v620 = vpack.c.b16 %v617, %v616
      %v621 = vpack.c.b16 %v619, %v618
      %v625 = vsel %vm370, %v611, 0
      %627 = vmatpush.bf16.msra.mxu0 0
      %628 = vmatpush.bf16.msra.mxu0 0
      %629 = vmatpush.bf16.msra.mxu0 0
      %630 = vmatpush.bf16.msra.mxu0 0
      %631 = vmatpush.bf16.msra.mxu0 0
      %632 = vmatpush.bf16.msra.mxu0 0
      %633 = vmatpush.bf16.msra.mxu0 %v621
      %634 = vmatpush.bf16.msra.mxu0 %v620
      %635 = vmatmul.bf16.gmra.mxu0 %v625
      %v636 = vpop.f32.mrf.mxu0
      %v637 = vadd.f32 0.0, %v636
      %v638 = vpop.f32.mrf.mxu0
      %639 = vdwg.mxu0
      %v640 = vld [vmem:[%s8] sm:$0x1]
      %v641 = vsel %vm370, %v637, 0.0
      %642 = vadd.xlane.f32.xlu0 %v641
      %v643 = vpop.xlane.xlu0 %642
      %v644 = vmul.f32 %v643, %v380
      %v645 = vsub.f32 %v637, %v644
      %v646 = vmul.f32 %v645, %v645
      %v647 = vsel %vm370, %v646, 0.0
      %648 = vadd.xlane.f32.xlu0 %v647
      %v649 = vpop.xlane.xlu0 %648
      %v650 = vmul.f32 %v649, %v380
      %v651 = vadd.f32 %v650, 1e-05
      %v652 = vrsqrt.pop %v651
      %v653 = vmul.f32 %v652, %v651
      %v654 = vmul.f32 %v653, %v652
      %v655 = vmul.f32 0.5, %v654
      %v656 = vsub.f32 1.5, %v655
      %v657 = vmul.f32 %v652, %v656
      %vm658 = vweird.f32 %v651
      %vm659 = vweird.f32 %v652
      %vm660 = vmor %vm658, %vm659
      %v661 = vsel %vm660, %v652, %v657
      %v662 = vmul.f32 %v645, %v661
      %v664 = vperm.slane %v640, 0
      %v666 = vmul.f32 %v662, %v664
      %667 = vst.msk [vmem:[%s344] sm:$0xff] %vm370, %v666
      %p668 = scmp.lt.s32.totalorder %s20, 1
      %s669 = scalar_select %p668, %s20, 1
      %s670 = smul.addr %s669, 8
      %s671 = scalar_lea.vmem %s9, %s670
      // Predicated region
      $region57: #{fwd.5} parent=55 // pred_check
        %p672 = pneg %p237
      $region58: #{fwd.5} parent=55 // pred_check_branch
        %674 = sbr.rel (%p672) target = $region60
      $region59: #{fwd.5} parent=55 // pred_region
        _
      $region60: #{fwd.5} parent=55 // pred_fallthru
        _
    $region56: #{fwd.5} parent=5 // pred_fallthru
      _
    %p675 = scmp.le.s32.totalorder 2, %s15
    // Predicated region
    $region61: #{fwd.5} parent=5 // pred_check
      %p676 = pneg %p675
    $region62: #{fwd.5} parent=5 // pred_check_branch
      %678 = sbr.rel (%p676) target = $region64
    $region63: #{fwd.5} parent=5 // pred_region
      %s679 = ssub.s32 %s15, 2
      // Predicated region
      $region65: #{fwd.5} parent=63 // pred_check
        %p680 = pneg %p243
      $region66: #{fwd.5} parent=63 // pred_check_branch
        %682 = sbr.rel (%p680) target = $region68
      $region67: #{fwd.5} parent=63 // pred_region
        %p683 = scmp.lt.s32.totalorder %s21, 1
        %s684 = scalar_select %p683, %s21, 1
        %s685 = smul.addr %s684, 8
        %s686 = scalar_lea.vmem %s9, %s685
      $region68: #{fwd.5} parent=63 // pred_fallthru
        _
    $region64: #{fwd.5} parent=5 // pred_fallthru
      _
  $region6: #{fwd.5} parent=0 // loop_footer
    %s19 = sadd.s32 1, %s15
  $region7: #{fwd.5} parent=0 // loop_footer_branch
    %14 = sbr.rel target = $region3
  $region8: #{fwd.5} parent=0 // loop_exit
    _

// kernel: fwd.4
$region0: #{fwd.4}
  #allocation0 [shape = 'u32[]', space=smem, size = 0x4, offset = 0x4, fixed_abs, tag = 'smem constant byte address 0x4 - core index']
  #allocation1 [shape = 'u32[72,128]{1,0:T(1,128)}', space=vmem, size = 0x9000, scoped, tag = 'internal scratch']
  %s0 = inlined_call_operand.vmem [shape: f32[2,9,32], index: 0, kind: input, shape index: {}]
  %s1 = inlined_call_operand.vmem [shape: f32[2,1,9], index: 1, kind: input, shape index: {}]
  %s2 = inlined_call_operand.vmem [shape: f32[9,16], index: 2, kind: input, shape index: {}]
  %s3 = inlined_call_operand.vmem [shape: f32[9,16], index: 3, kind: input, shape index: {}]
  %s4 = inlined_call_operand.vmem [shape: f32[1,32], index: 4, kind: input, shape index: {}]
  %s5 = inlined_call_operand.vmem [shape: bf16[32,32], index: 5, kind: input, shape index: {}]
  %s6 = inlined_call_operand.vmem [shape: bf16[32,16], index: 6, kind: input, shape index: {}]
  %s7 = inlined_call_operand.vmem [shape: bf16[32,16], index: 7, kind: input, shape index: {}]
  %s8 = inlined_call_operand.vmem [shape: bf16[32,128], index: 8, kind: input, shape index: {}]
  %s9 = inlined_call_operand.vmem [shape: bf16[32,128], index: 9, kind: input, shape index: {}]
  %s10 = inlined_call_operand.vmem [shape: bf16[32,32], index: 10, kind: input, shape index: {}]
  %s11 = inlined_call_operand.vmem [shape: bf16[128,32], index: 11, kind: input, shape index: {}]
  %s12 = inlined_call_operand.vmem [shape: f32[2,9,32], index: 12, kind: output, shape index: {}]
  %s13 = sld [smem:[#allocation0]]
  $region81: #{fwd.4} parent=0
    _
  %s15 = ssub.s32 1, %s13
  %s16 = scalar_select 0, %s15, %s13
  loop: start=0, step=1, limit=4
  $region2: #{fwd.4} parent=0 // loop_pre_header
    _
  $region3: #{fwd.4} parent=0 // loop_header
    %s18 = sphi 0, %s22
    %p19 = scmp.ge.s32.totalorder %s18, 4
    %s28 = sphi 0, %s30
    %s31 = sphi 0, %s28
    %s32 = sphi 0, %s31
    %s48 = sphi 0, %s32
    %s54 = sphi 0, %s56
    %s57 = sphi 0, %s54
    %s58 = sphi 0, %s57
    %s74 = sphi 0, %s58
    %s78 = sphi 0, %s78
    %s80 = sphi 0, %s78
    %s81 = sphi 0, %s80
    %s95 = sphi 0, %s81
    %s99 = sphi 0, %s99
    %s101 = sphi 0, %s99
    %s102 = sphi 0, %s101
    %s116 = sphi 0, %s102
    %s120 = sphi 0, %s120
    %s122 = sphi 0, %s120
    %s123 = sphi 0, %s122
    %s137 = sphi 0, %s123
    %s141 = sphi 0, %s141
    %s143 = sphi 0, %s141
    %s144 = sphi 0, %s143
    %s158 = sphi 0, %s144
    %s162 = sphi 0, %s162
    %s164 = sphi 0, %s162
    %s165 = sphi 0, %s164
    %s179 = sphi 0, %s165
    %s183 = sphi 0, %s183
    %s185 = sphi 0, %s183
    %s186 = sphi 0, %s185
    %s200 = sphi 0, %s186
    %s204 = sphi 0, %s204
    %s206 = sphi 0, %s204
    %s207 = sphi 0, %s206
    %s221 = sphi 0, %s207
    %s225 = sphi 0, %s225
    %s227 = sphi 0, %s225
    %s228 = sphi 0, %s227
    %s242 = sphi 0, %s228
    %s246 = sphi 0, %s246
    %s248 = sphi 0, %s246
    %s249 = sphi 0, %s248
    %s263 = sphi 0, %s249
    %s267 = sphi 0, %s267
    %s269 = sphi 0, %s267
    %s270 = sphi 0, %s269
    %s284 = sphi 0, %s270
    %s290 = sphi 0, %s292
    %s293 = sphi 0, %s290
    %s294 = sphi 0, %s293
    %s310 = sphi 0, %s294
  $region4: #{fwd.4} parent=0 // loop_header_branch
    %21 = sbr.rel (%p19) target = $region8
  $region5: #{fwd.4} parent=0 // loop_body
    %s23 = ssub.s32 %s18, 1
    %s24 = ssub.s32 %s18, 2
    %s25 = sadd.s32 %s18, 1
    %s26 = ssub.s32 %s18, %s25
    %p27 = scmp.eq.s32.totalorder %s26, 0
    %s29 = sadd.s32 %s28, 1
    %s30 = scalar_select %p27, %s28, %s29
    %p33 = pneg %p27
    %p34 = scmp.eq.s32.totalorder %s18, 1
    %p35 = por %p33, %p34
    %p36 = scmp.ne.s32.totalorder %s28, %s31
    %p37 = scmp.eq.s32.totalorder %s18, 0
    %p38 = por %p36, %p37
    %p39 = scmp.ne.s32.totalorder %s28, %s31
    %p40 = scmp.eq.s32.totalorder %s23, 1
    %p41 = por %p39, %p40
    %p42 = scmp.ne.s32.totalorder %s31, %s32
    %p43 = scmp.eq.s32.totalorder %s23, 0
    %p44 = por %p42, %p43
    %p45 = scmp.ne.s32.totalorder %s31, %s32
    %p46 = scmp.eq.s32.totalorder %s24, 1
    %p47 = por %p45, %p46
    %p49 = scmp.ne.s32.totalorder %s32, %s48
    %p50 = scmp.eq.s32.totalorder %s24, 0
    %p51 = por %p49, %p50
    %s52 = ssub.s32 %s18, %s25
    %p53 = scmp.eq.s32.totalorder %s52, 0
    %s55 = sadd.s32 %s54, 1
    %s56 = scalar_select %p53, %s54, %s55
    %p59 = pneg %p53
    %p60 = scmp.eq.s32.totalorder %s18, 1
    %p61 = por %p59, %p60
    %p62 = scmp.ne.s32.totalorder %s54, %s57
    %p63 = scmp.eq.s32.totalorder %s18, 0
    %p64 = por %p62, %p63
    %p65 = scmp.ne.s32.totalorder %s54, %s57
    %p66 = scmp.eq.s32.totalorder %s23, 1
    %p67 = por %p65, %p66
    %p68 = scmp.ne.s32.totalorder %s57, %s58
    %p69 = scmp.eq.s32.totalorder %s23, 0
    %p70 = por %p68, %p69
    %p71 = scmp.ne.s32.totalorder %s57, %s58
    %p72 = scmp.eq.s32.totalorder %s24, 1
    %p73 = por %p71, %p72
    %p75 = scmp.ne.s32.totalorder %s58, %s74
    %p76 = scmp.eq.s32.totalorder %s24, 0
    %p77 = por %p75, %p76
    %s79 = sadd.s32 %s78, 1
    %p82 = scmp.eq.s32.totalorder %s18, 1
    %p83 = scmp.ne.s32.totalorder %s78, %s80
    %p84 = scmp.eq.s32.totalorder %s18, 0
    %p85 = por %p83, %p84
    %p86 = scmp.ne.s32.totalorder %s78, %s80
    %p87 = scmp.eq.s32.totalorder %s23, 1
    %p88 = por %p86, %p87
    %p89 = scmp.ne.s32.totalorder %s80, %s81
    %p90 = scmp.eq.s32.totalorder %s23, 0
    %p91 = por %p89, %p90
    %p92 = scmp.ne.s32.totalorder %s80, %s81
    %p93 = scmp.eq.s32.totalorder %s24, 1
    %p94 = por %p92, %p93
    %p96 = scmp.ne.s32.totalorder %s81, %s95
    %p97 = scmp.eq.s32.totalorder %s24, 0
    %p98 = por %p96, %p97
    %s100 = sadd.s32 %s99, 1
    %p103 = scmp.eq.s32.totalorder %s18, 1
    %p104 = scmp.ne.s32.totalorder %s99, %s101
    %p105 = scmp.eq.s32.totalorder %s18, 0
    %p106 = por %p104, %p105
    %p107 = scmp.ne.s32.totalorder %s99, %s101
    %p108 = scmp.eq.s32.totalorder %s23, 1
    %p109 = por %p107, %p108
    %p110 = scmp.ne.s32.totalorder %s101, %s102
    %p111 = scmp.eq.s32.totalorder %s23, 0
    %p112 = por %p110, %p111
    %p113 = scmp.ne.s32.totalorder %s101, %s102
    %p114 = scmp.eq.s32.totalorder %s24, 1
    %p115 = por %p113, %p114
    %p117 = scmp.ne.s32.totalorder %s102, %s116
    %p118 = scmp.eq.s32.totalorder %s24, 0
    %p119 = por %p117, %p118
    %s121 = sadd.s32 %s120, 1
    %p124 = scmp.eq.s32.totalorder %s18, 1
    %p125 = scmp.ne.s32.totalorder %s120, %s122
    %p126 = scmp.eq.s32.totalorder %s18, 0
    %p127 = por %p125, %p126
    %p128 = scmp.ne.s32.totalorder %s120, %s122
    %p129 = scmp.eq.s32.totalorder %s23, 1
    %p130 = por %p128, %p129
    %p131 = scmp.ne.s32.totalorder %s122, %s123
    %p132 = scmp.eq.s32.totalorder %s23, 0
    %p133 = por %p131, %p132
    %p134 = scmp.ne.s32.totalorder %s122, %s123
    %p135 = scmp.eq.s32.totalorder %s24, 1
    %p136 = por %p134, %p135
    %p138 = scmp.ne.s32.totalorder %s123, %s137
    %p139 = scmp.eq.s32.totalorder %s24, 0
    %p140 = por %p138, %p139
    %s142 = sadd.s32 %s141, 1
    %p145 = scmp.eq.s32.totalorder %s18, 1
    %p146 = scmp.ne.s32.totalorder %s141, %s143
    %p147 = scmp.eq.s32.totalorder %s18, 0
    %p148 = por %p146, %p147
    %p149 = scmp.ne.s32.totalorder %s141, %s143
    %p150 = scmp.eq.s32.totalorder %s23, 1
    %p151 = por %p149, %p150
    %p152 = scmp.ne.s32.totalorder %s143, %s144
    %p153 = scmp.eq.s32.totalorder %s23, 0
    %p154 = por %p152, %p153
    %p155 = scmp.ne.s32.totalorder %s143, %s144
    %p156 = scmp.eq.s32.totalorder %s24, 1
    %p157 = por %p155, %p156
    %p159 = scmp.ne.s32.totalorder %s144, %s158
    %p160 = scmp.eq.s32.totalorder %s24, 0
    %p161 = por %p159, %p160
    %s163 = sadd.s32 %s162, 1
    %p166 = scmp.eq.s32.totalorder %s18, 1
    %p167 = scmp.ne.s32.totalorder %s162, %s164
    %p168 = scmp.eq.s32.totalorder %s18, 0
    %p169 = por %p167, %p168
    %p170 = scmp.ne.s32.totalorder %s162, %s164
    %p171 = scmp.eq.s32.totalorder %s23, 1
    %p172 = por %p170, %p171
    %p173 = scmp.ne.s32.totalorder %s164, %s165
    %p174 = scmp.eq.s32.totalorder %s23, 0
    %p175 = por %p173, %p174
    %p176 = scmp.ne.s32.totalorder %s164, %s165
    %p177 = scmp.eq.s32.totalorder %s24, 1
    %p178 = por %p176, %p177
    %p180 = scmp.ne.s32.totalorder %s165, %s179
    %p181 = scmp.eq.s32.totalorder %s24, 0
    %p182 = por %p180, %p181
    %s184 = sadd.s32 %s183, 1
    %p187 = scmp.eq.s32.totalorder %s18, 1
    %p188 = scmp.ne.s32.totalorder %s183, %s185
    %p189 = scmp.eq.s32.totalorder %s18, 0
    %p190 = por %p188, %p189
    %p191 = scmp.ne.s32.totalorder %s183, %s185
    %p192 = scmp.eq.s32.totalorder %s23, 1
    %p193 = por %p191, %p192
    %p194 = scmp.ne.s32.totalorder %s185, %s186
    %p195 = scmp.eq.s32.totalorder %s23, 0
    %p196 = por %p194, %p195
    %p197 = scmp.ne.s32.totalorder %s185, %s186
    %p198 = scmp.eq.s32.totalorder %s24, 1
    %p199 = por %p197, %p198
    %p201 = scmp.ne.s32.totalorder %s186, %s200
    %p202 = scmp.eq.s32.totalorder %s24, 0
    %p203 = por %p201, %p202
    %s205 = sadd.s32 %s204, 1
    %p208 = scmp.eq.s32.totalorder %s18, 1
    %p209 = scmp.ne.s32.totalorder %s204, %s206
    %p210 = scmp.eq.s32.totalorder %s18, 0
    %p211 = por %p209, %p210
    %p212 = scmp.ne.s32.totalorder %s204, %s206
    %p213 = scmp.eq.s32.totalorder %s23, 1
    %p214 = por %p212, %p213
    %p215 = scmp.ne.s32.totalorder %s206, %s207
    %p216 = scmp.eq.s32.totalorder %s23, 0
    %p217 = por %p215, %p216
    %p218 = scmp.ne.s32.totalorder %s206, %s207
    %p219 = scmp.eq.s32.totalorder %s24, 1
    %p220 = por %p218, %p219
    %p222 = scmp.ne.s32.totalorder %s207, %s221
    %p223 = scmp.eq.s32.totalorder %s24, 0
    %p224 = por %p222, %p223
    %s226 = sadd.s32 %s225, 1
    %p229 = scmp.eq.s32.totalorder %s18, 1
    %p230 = scmp.ne.s32.totalorder %s225, %s227
    %p231 = scmp.eq.s32.totalorder %s18, 0
    %p232 = por %p230, %p231
    %p233 = scmp.ne.s32.totalorder %s225, %s227
    %p234 = scmp.eq.s32.totalorder %s23, 1
    %p235 = por %p233, %p234
    %p236 = scmp.ne.s32.totalorder %s227, %s228
    %p237 = scmp.eq.s32.totalorder %s23, 0
    %p238 = por %p236, %p237
    %p239 = scmp.ne.s32.totalorder %s227, %s228
    %p240 = scmp.eq.s32.totalorder %s24, 1
    %p241 = por %p239, %p240
    %p243 = scmp.ne.s32.totalorder %s228, %s242
    %p244 = scmp.eq.s32.totalorder %s24, 0
    %p245 = por %p243, %p244
    %s247 = sadd.s32 %s246, 1
    %p250 = scmp.eq.s32.totalorder %s18, 1
    %p251 = scmp.ne.s32.totalorder %s246, %s248
    %p252 = scmp.eq.s32.totalorder %s18, 0
    %p253 = por %p251, %p252
    %p254 = scmp.ne.s32.totalorder %s246, %s248
    %p255 = scmp.eq.s32.totalorder %s23, 1
    %p256 = por %p254, %p255
    %p257 = scmp.ne.s32.totalorder %s248, %s249
    %p258 = scmp.eq.s32.totalorder %s23, 0
    %p259 = por %p257, %p258
    %p260 = scmp.ne.s32.totalorder %s248, %s249
    %p261 = scmp.eq.s32.totalorder %s24, 1
    %p262 = por %p260, %p261
    %p264 = scmp.ne.s32.totalorder %s249, %s263
    %p265 = scmp.eq.s32.totalorder %s24, 0
    %p266 = por %p264, %p265
    %s268 = sadd.s32 %s267, 1
    %p271 = scmp.eq.s32.totalorder %s18, 1
    %p272 = scmp.ne.s32.totalorder %s267, %s269
    %p273 = scmp.eq.s32.totalorder %s18, 0
    %p274 = por %p272, %p273
    %p275 = scmp.ne.s32.totalorder %s267, %s269
    %p276 = scmp.eq.s32.totalorder %s23, 1
    %p277 = por %p275, %p276
    %p278 = scmp.ne.s32.totalorder %s269, %s270
    %p279 = scmp.eq.s32.totalorder %s23, 0
    %p280 = por %p278, %p279
    %p281 = scmp.ne.s32.totalorder %s269, %s270
    %p282 = scmp.eq.s32.totalorder %s24, 1
    %p283 = por %p281, %p282
    %p285 = scmp.ne.s32.totalorder %s270, %s284
    %p286 = scmp.eq.s32.totalorder %s24, 0
    %p287 = por %p285, %p286
    %s288 = ssub.s32 %s18, %s25
    %p289 = scmp.eq.s32.totalorder %s288, 0
    %s291 = sadd.s32 %s290, 1
    %s292 = scalar_select %p289, %s290, %s291
    %p295 = pneg %p289
    %p296 = scmp.eq.s32.totalorder %s18, 1
    %p297 = por %p295, %p296
    %p298 = scmp.ne.s32.totalorder %s290, %s293
    %p299 = scmp.eq.s32.totalorder %s18, 0
    %p300 = por %p298, %p299
    %p301 = scmp.ne.s32.totalorder %s290, %s293
    %p302 = scmp.eq.s32.totalorder %s23, 1
    %p303 = por %p301, %p302
    %p304 = scmp.ne.s32.totalorder %s293, %s294
    %p305 = scmp.eq.s32.totalorder %s23, 0
    %p306 = por %p304, %p305
    %p307 = scmp.ne.s32.totalorder %s293, %s294
    %p308 = scmp.eq.s32.totalorder %s24, 1
    %p309 = por %p307, %p308
    %p311 = scmp.ne.s32.totalorder %s294, %s310
    %p312 = scmp.eq.s32.totalorder %s24, 0
    %p313 = por %p311, %p312
    %p314 = scmp.le.s32.totalorder 1, %s18
    %p315 = scmp.lt.s32.totalorder %s18, 3
    %p316 = pnand %p314, %p315
    %p317 = pneg %p316
    // Predicated region
    $region9: #{fwd.4} parent=5 // pred_check
      _
    $region10: #{fwd.4} parent=5 // pred_check_branch
      %319 = sbr.rel (%p316) target = $region12
    $region11: #{fwd.4} parent=5 // pred_region
      %s320 = ssub.s32 %s18, 1
      // Predicated region
      $region13: #{fwd.4} parent=11 // pred_check
        %p321 = pneg %p91
      $region14: #{fwd.4} parent=11 // pred_check_branch
        %323 = sbr.rel (%p321) target = $region16
      $region15: #{fwd.4} parent=11 // pred_region
        _
      $region16: #{fwd.4} parent=11 // pred_fallthru
        _
      // Predicated region
      $region17: #{fwd.4} parent=11 // pred_check
        %p324 = pneg %p112
      $region18: #{fwd.4} parent=11 // pred_check_branch
        %326 = sbr.rel (%p324) target = $region20
      $region19: #{fwd.4} parent=11 // pred_region
        _
      $region20: #{fwd.4} parent=11 // pred_fallthru
        _
      // Predicated region
      $region21: #{fwd.4} parent=11 // pred_check
        %p327 = pneg %p133
      $region22: #{fwd.4} parent=11 // pred_check_branch
        %329 = sbr.rel (%p327) target = $region24
      $region23: #{fwd.4} parent=11 // pred_region
        _
      $region24: #{fwd.4} parent=11 // pred_fallthru
        _
      // Predicated region
      $region25: #{fwd.4} parent=11 // pred_check
        %p330 = pneg %p154
      $region26: #{fwd.4} parent=11 // pred_check_branch
        %332 = sbr.rel (%p330) target = $region28
      $region27: #{fwd.4} parent=11 // pred_region
        _
      $region28: #{fwd.4} parent=11 // pred_fallthru
        _
      // Predicated region
      $region29: #{fwd.4} parent=11 // pred_check
        %p333 = pneg %p175
      $region30: #{fwd.4} parent=11 // pred_check_branch
        %335 = sbr.rel (%p333) target = $region32
      $region31: #{fwd.4} parent=11 // pred_region
        _
      $region32: #{fwd.4} parent=11 // pred_fallthru
        _
      // Predicated region
      $region33: #{fwd.4} parent=11 // pred_check
        %p336 = pneg %p196
      $region34: #{fwd.4} parent=11 // pred_check_branch
        %338 = sbr.rel (%p336) target = $region36
      $region35: #{fwd.4} parent=11 // pred_region
        _
      $region36: #{fwd.4} parent=11 // pred_fallthru
        _
      // Predicated region
      $region37: #{fwd.4} parent=11 // pred_check
        %p339 = pneg %p217
      $region38: #{fwd.4} parent=11 // pred_check_branch
        %341 = sbr.rel (%p339) target = $region40
      $region39: #{fwd.4} parent=11 // pred_region
        _
      $region40: #{fwd.4} parent=11 // pred_fallthru
        _
      // Predicated region
      $region41: #{fwd.4} parent=11 // pred_check
        %p342 = pneg %p238
      $region42: #{fwd.4} parent=11 // pred_check_branch
        %344 = sbr.rel (%p342) target = $region44
      $region43: #{fwd.4} parent=11 // pred_region
        _
      $region44: #{fwd.4} parent=11 // pred_fallthru
        _
      // Predicated region
      $region45: #{fwd.4} parent=11 // pred_check
        %p345 = pneg %p259
      $region46: #{fwd.4} parent=11 // pred_check_branch
        %347 = sbr.rel (%p345) target = $region48
      $region47: #{fwd.4} parent=11 // pred_region
        _
      $region48: #{fwd.4} parent=11 // pred_fallthru
        _
      // Predicated region
      $region49: #{fwd.4} parent=11 // pred_check
        %p348 = pneg %p280
      $region50: #{fwd.4} parent=11 // pred_check_branch
        %350 = sbr.rel (%p348) target = $region52
      $region51: #{fwd.4} parent=11 // pred_region
        _
      $region52: #{fwd.4} parent=11 // pred_fallthru
        _
    $region12: #{fwd.4} parent=5 // pred_fallthru
      _
    %p351 = scmp.lt.s32.totalorder %s18, 2
    // Predicated region
    $region53: #{fwd.4} parent=5 // pred_check
      %p352 = pneg %p351
    $region54: #{fwd.4} parent=5 // pred_check_branch
      %354 = sbr.rel (%p352) target = $region56
    $region55: #{fwd.4} parent=5 // pred_region
      // Predicated region
      $region57: #{fwd.4} parent=55 // pred_check
        %p355 = pneg %p38
      $region58: #{fwd.4} parent=55 // pred_check_branch
        %357 = sbr.rel (%p355) target = $region60
      $region59: #{fwd.4} parent=55 // pred_region
        %p358 = scmp.lt.s32.totalorder %s18, 1
        %s359 = scalar_select %p358, %s18, 1
        %s360 = smul.addr %s359, 2
        %s361 = smul.addr %s360, 8
        %s362 = scalar_lea.vmem %s0, %s361
      $region60: #{fwd.4} parent=55 // pred_fallthru
        _
      // Predicated region
      $region61: #{fwd.4} parent=55 // pred_check
        %p363 = pneg %p64
      $region62: #{fwd.4} parent=55 // pred_check_branch
        %365 = sbr.rel (%p363) target = $region64
      $region63: #{fwd.4} parent=55 // pred_region
        %p366 = scmp.lt.s32.totalorder %s18, 1
        %s367 = scalar_select %p366, %s18, 1
        %s368 = scalar_lea.vmem %s1, %s367
      $region64: #{fwd.4} parent=55 // pred_fallthru
        _
    $region56: #{fwd.4} parent=5 // pred_fallthru
      _
    %p369 = scmp.le.s32.totalorder 1, %s18
    %p370 = scmp.lt.s32.totalorder %s18, 3
    %p371 = pnand %p369, %p370
    %p372 = pneg %p371
    // Predicated region
    $region65: #{fwd.4} parent=5 // pred_check
      _
    $region66: #{fwd.4} parent=5 // pred_check_branch
      %374 = sbr.rel (%p371) target = $region68
    $region67: #{fwd.4} parent=5 // pred_region
      %s375 = ssub.s32 %s18, 1
      %p376 = scmp.lt.s32.totalorder %s23, 1
      %s377 = scalar_select %p376, %s23, 1
      %s378 = smul.addr %s377, 2
      %s379 = smul.addr %s378, 8
      %s380 = scalar_lea.vmem %s0, %s379
      %p381 = pneg %p44
      %p382 = pneg %p41
      %p383 = scmp.lt.s32.totalorder %s23, 1
      %s384 = scalar_select %p383, %s23, 1
      %s385 = scalar_lea.vmem %s1, %s384
      %p386 = pneg %p70
      %p387 = pneg %p67
      %p388 = pneg %p91
      %p389 = pneg %p88
      %p390 = pneg %p112
      %p391 = pneg %p109
      %p392 = pneg %p133
      %p393 = pneg %p130
      %p394 = pneg %p154
      %p395 = pneg %p151
      %p396 = pneg %p175
      %p397 = pneg %p172
      %p398 = pneg %p196
      %p399 = pneg %p193
      %p400 = pneg %p217
      %p401 = pneg %p214
      %p402 = pneg %p238
      %p403 = pneg %p235
      %p404 = pneg %p259
      %p405 = pneg %p256
      %p406 = pneg %p280
      %p407 = pneg %p277
      %p408 = pneg %p306
      %p409 = pneg %p303
      %p410 = scmp.lt.s32.totalorder %s23, 1
      %s411 = scalar_select %p410, %s23, 1
      %s412 = smul.addr %s411, 2
      %s413 = smul.addr %s412, 8
      %s414 = scalar_lea.vmem %s12, %s413
      %p415 = scmp.lt.s32.totalorder %s23, 1
      %s416 = scalar_select %p415, %s23, 1
      %s417 = smul.addr %s416, 2
      %s418 = smul.addr %s417, 8
      %s419 = scalar_lea.vmem %s0, %s418
      %p420 = scmp.lt.s32.totalorder %s23, 1
      %s421 = scalar_select %p420, %s23, 1
      %s422 = scalar_lea.vmem %s1, %s421
      %p423 = scmp.lt.s32.totalorder %s23, 1
      %s424 = scalar_select %p423, %s23, 1
      %s425 = smul.addr %s424, 2
      %s426 = smul.addr %s425, 8
      %s427 = scalar_lea.vmem %s12, %s426
      %v429 = vld [vmem:[%s419] sm:$0xff]
      %v430 = vld [vmem:[%s419 + $0x8] sm:$0x1]
      %v431 = vld [vmem:[%s422] sm:$0x1]
      %v432 = vld [vmem:[%s2] sm:$0xff]
      %v433 = vld [vmem:[%s2 + $0x8] sm:$0x1]
      %v434 = vld [vmem:[%s3] sm:$0xff]
      %v435 = vld [vmem:[%s3 + $0x8] sm:$0x1]
      %v436 = vld [vmem:[%s4] sm:$0x1]
      %v437 = vld [vmem:[%s5] sm:$0xf]
      %v438 = vld [vmem:[%s5 + $0x4] sm:$0xf]
      %v439 = vld [vmem:[%s5 + $0x8] sm:$0xf]
      %v440 = vld [vmem:[%s5 + $0xc] sm:$0xf]
      %v441 = vld [vmem:[%s6] sm:$0xf]
      %v442 = vld [vmem:[%s6 + $0x4] sm:$0xf]
      %v443 = vld [vmem:[%s6 + $0x8] sm:$0xf]
      %v444 = vld [vmem:[%s6 + $0xc] sm:$0xf]
      %v445 = vld [vmem:[%s7] sm:$0xf]
      %v446 = vld [vmem:[%s7 + $0x4] sm:$0xf]
      %v447 = vld [vmem:[%s7 + $0x8] sm:$0xf]
      %v448 = vld [vmem:[%s7 + $0xc] sm:$0xf]
      %v449 = vld [vmem:[%s8] sm:$0xf]
      %v450 = vld [vmem:[%s8 + $0x4] sm:$0xf]
      %v451 = vld [vmem:[%s8 + $0x8] sm:$0xf]
      %v452 = vld [vmem:[%s8 + $0xc] sm:$0xf]
      %v453 = vld [vmem:[%s9] sm:$0xf]
      %v454 = vld [vmem:[%s9 + $0x4] sm:$0xf]
      %v455 = vld [vmem:[%s9 + $0x8] sm:$0xf]
      %v456 = vld [vmem:[%s9 + $0xc] sm:$0xf]
      %v457 = vld [vmem:[%s10] sm:$0xf]
      %v458 = vld [vmem:[%s10 + $0x4] sm:$0xf]
      %v459 = vld [vmem:[%s10 + $0x8] sm:$0xf]
      %v460 = vld [vmem:[%s10 + $0xc] sm:$0xf]
      %v461 = vld [vmem:[%s11] sm:$0xf]
      %v462 = vld [vmem:[%s11 + $0x4] sm:$0xf]
      %v463 = vld [vmem:[%s11 + $0x8] sm:$0xf]
      %v464 = vld [vmem:[%s11 + $0xc] sm:$0xf]
      %v465 = vld [vmem:[%s11 + $0x10] sm:$0xf]
      %v466 = vld [vmem:[%s11 + $0x14] sm:$0xf]
      %v467 = vld [vmem:[%s11 + $0x18] sm:$0xf]
      %v468 = vld [vmem:[%s11 + $0x1c] sm:$0xf]
      %v469 = vld [vmem:[%s11 + $0x20] sm:$0xf]
      %v470 = vld [vmem:[%s11 + $0x24] sm:$0xf]
      %v471 = vld [vmem:[%s11 + $0x28] sm:$0xf]
      %v472 = vld [vmem:[%s11 + $0x2c] sm:$0xf]
      %v473 = vld [vmem:[%s11 + $0x30] sm:$0xf]
      %v474 = vld [vmem:[%s11 + $0x34] sm:$0xf]
      %v475 = vld [vmem:[%s11 + $0x38] sm:$0xf]
      %v476 = vld [vmem:[%s11 + $0x3c] sm:$0xf]
      %vm477 = vcmask 261120
      %v478 = vsel %vm477, %v429, 0.0
      %479 = vadd.xlane.f32.xlu0 %v478
      %v480 = vpop.xlane.xlu0 %479
      %vm481 = vcmask 253952
      %v482 = vsel %vm481, %v430, 0.0
      %483 = vadd.xlane.f32.xlu0 %v482
      %v484 = vpop.xlane.xlu0 %483
      %v485 = vrcp.pop 32.0
      %v486 = vmul.f32 32.0, %v485
      %v487 = vsub.f32 1.0, %v486
      %v488 = vmul.f32 %v485, %v487
      %v489 = vadd.f32 %v485, %v488
      %vm490 = vweird.f32 %v485
      %v491 = vsel %vm490, %v485, %v489
      %v492 = vmul.f32 %v480, %v491
      %v493 = vmul.f32 %v484, %v491
      %v494 = vsub.f32 %v429, %v492
      %v495 = vsub.f32 %v430, %v493
      %v496 = vmul.f32 %v494, %v494
      %v497 = vmul.f32 %v495, %v495
      %v498 = vsel %vm477, %v496, 0.0
      %499 = vadd.xlane.f32.xlu0 %v498
      %v500 = vpop.xlane.xlu0 %499
      %v501 = vsel %vm481, %v497, 0.0
      %502 = vadd.xlane.f32.xlu0 %v501
      %v503 = vpop.xlane.xlu0 %502
      %v504 = vmul.f32 %v500, %v491
      %v505 = vmul.f32 %v503, %v491
      %v506 = vadd.f32 %v504, 1e-05
      %v507 = vadd.f32 %v505, 1e-05
      %v508 = vrsqrt.pop %v506
      %v509 = vmul.f32 %v508, %v506
      %v510 = vmul.f32 %v509, %v508
      %v511 = vmul.f32 0.5, %v510
      %v512 = vsub.f32 1.5, %v511
      %v513 = vmul.f32 %v508, %v512
      %vm514 = vweird.f32 %v506
      %vm515 = vweird.f32 %v508
      %vm516 = vmor %vm514, %vm515
      %v517 = vsel %vm516, %v508, %v513
      %v518 = vrsqrt.pop %v507
      %v519 = vmul.f32 %v518, %v507
      %v520 = vmul.f32 %v519, %v518
      %v521 = vmul.f32 0.5, %v520
      %v522 = vsub.f32 1.5, %v521
      %v523 = vmul.f32 %v518, %v522
      %vm524 = vweird.f32 %v507
      %vm525 = vweird.f32 %v518
      %vm526 = vmor %vm524, %vm525
      %v527 = vsel %vm526, %v518, %v523
      %v528 = vmul.f32 %v494, %v517
      %v529 = vmul.f32 %v495, %v527
      %v531 = vperm.slane %v436, 0
      %v533 = vmul.f32 %v528, %v531
      %v534 = vmul.f32 %v529, %v531
      %v535 = vpack.c.bf16 %v534, %v533
      %v540 = vunpack.c.l.b16 %v441
      %v541 = vunpack.c.l.b16 %v442
      %v542 = vunpack.c.l.b16 %v443
      %v543 = vunpack.c.l.b16 %v444
      %v544 = vpack.c.b16 %v541, %v540
      %v545 = vpack.c.b16 %v543, %v542
      %v549 = vsel %vm477, %v535, 0
      %551 = vmatpush.bf16.msra.mxu0 0
      %552 = vmatpush.bf16.msra.mxu0 0
      %553 = vmatpush.bf16.msra.mxu0 0
      %554 = vmatpush.bf16.msra.mxu0 0
      %555 = vmatpush.bf16.msra.mxu0 0
      %556 = vmatpush.bf16.msra.mxu0 0
      %557 = vmatpush.bf16.msra.mxu0 %v545
      %558 = vmatpush.bf16.msra.mxu0 %v544
      %559 = vmatmul.bf16.gmra.mxu0 %v549
      %v560 = vpop.f32.mrf.mxu0
      %v561 = vadd.f32 0.0, %v560
      %v562 = vpop.f32.mrf.mxu0
      %v563 = vadd.f32 0.0, %v562
      %564 = vdwg.mxu0
      %v565 = vsub.f32 0.0, %v561
      %v566 = vsub.f32 0.0, %v563
      %569 = vrot.lane.b32.xlu0 %v565, 120
      %v570 = vpop.permute.xlu0 %569
      %571 = vrot.lane.b32.xlu0 %v566, 120
      %v572 = vpop.permute.xlu0 %571
      %577 = vrot.lane.b32.xlu0 %v561, 8
      %v578 = vpop.permute.xlu0 %577
      %579 = vrot.lane.b32.xlu0 %v563, 8
      %v580 = vpop.permute.xlu0 %579
      %vm583 = vcmask 64512
      %v584 = vsel %vm583, %v570, %v578
      %v585 = vsel %vm583, %v572, %v580
      %v586 = vmul.f32 %v561, %v432
      %v587 = vmul.f32 %v563, %v433
      %v588 = vmul.f32 %v584, %v434
      %v589 = vmul.f32 %v585, %v435
      %v590 = vadd.f32 %v586, %v588
      %v591 = vadd.f32 %v587, %v589
      %v596 = vunpack.c.l.b16 %v445
      %v597 = vunpack.c.l.b16 %v446
      %v598 = vunpack.c.l.b16 %v447
      %v599 = vunpack.c.l.b16 %v448
      %v600 = vpack.c.b16 %v597, %v596
      %v601 = vpack.c.b16 %v599, %v598
      %604 = vmatpush.bf16.msra.mxu0 0
      %605 = vmatpush.bf16.msra.mxu0 0
      %606 = vmatpush.bf16.msra.mxu0 0
      %607 = vmatpush.bf16.msra.mxu0 0
      %608 = vmatpush.bf16.msra.mxu0 0
      %609 = vmatpush.bf16.msra.mxu0 0
      %610 = vmatpush.bf16.msra.mxu0 %v601
      %611 = vmatpush.bf16.msra.mxu0 %v600
      %612 = vmatmul.bf16.gmra.mxu0 %v549
      %v613 = vpop.f32.mrf.mxu0
      %v614 = vadd.f32 0.0, %v613
      %v615 = vpop.f32.mrf.mxu0
      %v616 = vadd.f32 0.0, %v615
      %617 = vdwg.mxu0
      %v618 = vlaneseq
      %v619 = vshrl.u32 %v618, 7
      %v620 = vadd.s32 %v619, 8
      %v621 = vlaneseq
      %v622 = vand.u32 %v621, 127
      %vm623 = vcmp.le.s32.totalorder %v622, %v619
      %vm624 = vcmp.le.s32.totalorder %v622, %v620
      %vm625 = vcmp.lt.s32.totalorder %v619, 8
      %vm626 = vcmp.lt.s32.totalorder %v620, 8
      %vm627 = vcmp.gt.f32.partialorder %v431, 0.5
      %v628 = vsel %vm627, 1, 0
      %v629 = vperm.slane %v628, 0
      %vm630 = vcmp.eq.s32.totalorder %v629, 1
      %vm631 = vmor %vm625, %vm630
      %vm632 = vmor %vm626, %vm630
      %vm633 = vmand %vm623, %vm631
      %vm634 = vmand %vm624, %vm632
      %v635 = vsel %vm633, 0.0, -1e+30
      %v636 = vsel %vm634, 0.0, -1e+30
      %v641 = vunpack.c.l.b16 %v437
      %v642 = vunpack.c.l.b16 %v438
      %v643 = vunpack.c.l.b16 %v439
      %v644 = vunpack.c.l.b16 %v440
      %v645 = vpack.c.b16 %v642, %v641
      %v646 = vpack.c.b16 %v644, %v643
      %649 = vmatpush.bf16.msra.mxu0 0
      %650 = vmatpush.bf16.msra.mxu0 0
      %651 = vmatpush.bf16.msra.mxu0 0
      %652 = vmatpush.bf16.msra.mxu0 0
      %653 = vmatpush.bf16.msra.mxu0 0
      %654 = vmatpush.bf16.msra.mxu0 0
      %655 = vmatpush.bf16.msra.mxu0 %v646
      %656 = vmatpush.bf16.msra.mxu0 %v645
      %657 = vmatmul.bf16.gmra.mxu0 %v549
      %v658 = vpop.f32.mrf.mxu0
      %v659 = vadd.f32 0.0, %v658
      %v660 = vpop.f32.mrf.mxu0
      %v661 = vadd.f32 0.0, %v660
      %662 = vdwg.mxu0
      %vm665 = vcmask 1040384
      %v666 = vrot.slane %v659, 7
      %v667 = vrot.slane %v661, 7
      %v668 = vsel %vm665, %v666, %v667
      %669 = vrot.lane.b32.xlu0 %v666, 112
      %v670 = vpop.permute.xlu0 %669
      %671 = vrot.lane.b32.xlu0 %v668, 112
      %v672 = vpop.permute.xlu0 %671
      %v675 = vsel %vm665, %v661, %v670
      %v678 = vrot.slane %v432, 7
      %v679 = vrot.slane %v433, 7
      %v680 = vsel %vm665, %v678, %v679
      %v683 = vsel %vm665, %v433, %v678
      %v686 = vrot.slane %v434, 7
      %v687 = vrot.slane %v435, 7
      %v688 = vsel %vm665, %v686, %v687
      %v691 = vsel %vm665, %v435, %v686
      %v692 = vsub.f32 0.0, %v659
      %v693 = vsub.f32 0.0, %v675
      %v694 = vsub.f32 0.0, %v672
      %698 = vrot.lane.b32.xlu0 %v692, 120
      %v699 = vpop.permute.xlu0 %698
      %700 = vrot.lane.b32.xlu0 %v693, 120
      %v701 = vpop.permute.xlu0 %700
      %702 = vrot.lane.b32.xlu0 %v694, 120
      %v703 = vpop.permute.xlu0 %702
      %708 = vrot.lane.b32.xlu0 %v659, 8
      %v709 = vpop.permute.xlu0 %708
      %710 = vrot.lane.b32.xlu0 %v675, 8
      %v711 = vpop.permute.xlu0 %710
      %712 = vrot.lane.b32.xlu0 %v672, 8
      %v713 = vpop.permute.xlu0 %712
      %v717 = vsel %vm583, %v699, %v709
      %v718 = vsel %vm583, %v701, %v711
      %v719 = vsel %vm583, %v703, %v713
      %v720 = vmul.f32 %v659, %v432
      %v721 = vmul.f32 %v675, %v683
      %v722 = vmul.f32 %v672, %v680
      %v723 = vmul.f32 %v717, %v434
      %v724 = vmul.f32 %v718, %v691
      %v725 = vmul.f32 %v719, %v688
      %v726 = vadd.f32 %v720, %v723
      %v727 = vadd.f32 %v721, %v724
      %v728 = vadd.f32 %v722, %v725
      %v729 = vpack.c.bf16 %v727, %v726
      %v730 = vpack.c.bf16 %v728, %v728
      %v731 = vpack.c.bf16 %v591, %v590
      %v734 = vrot.slane %v635, 7
      %v735 = vrot.slane %v636, 7
      %v736 = vsel %vm665, %v734, %v735
      %v739 = vsel %vm665, %v636, %v734
      %vm740 = vcmask 130048
      %v742 = vsel %vm740, %v729, 0
      %v745 = vsel %vm740, %v730, 0
      %v748 = vsel %vm740, %v731, 0
      %750 = vmatpush.bf16.xpose.msra.mxu0 0
      %751 = vmatpush.bf16.xpose.msra.mxu0 0
      %752 = vmatpush.bf16.xpose.msra.mxu0 0
      %753 = vmatpush.bf16.xpose.msra.mxu0 0
      %754 = vmatpush.bf16.xpose.msra.mxu0 0
      %755 = vmatpush.bf16.xpose.msra.mxu0 0
      %756 = vmatpush.bf16.xpose.msra.mxu0 0
      %757 = vmatpush.bf16.xpose.msra.mxu0 %v748
      %758 = vmatmul.bf16.gmra.mxu0 %v742
      %v759 = vpop.f32.mrf.mxu0
      %v760 = vadd.f32 %v635, %v759
      %v761 = vpop.f32.mrf.mxu0
      %v762 = vadd.f32 %v739, %v761
      %763 = vmatmul.bf16.gmra.mxu0 %v745
      %v764 = vpop.f32.mrf.mxu0
      %v765 = vadd.f32 %v736, %v764
      %v766 = vpop.f32.mrf.mxu0
      %767 = vdwg.mxu0
      %vm768 = vcmask 72704
      %v769 = vsel %vm768, %v760, -inf
      %770 = vmax.xlane.f32.xlu0 %v769
      %v771 = vpop.xlane.xlu0 %770
      %v772 = vsel %vm768, %v762, -inf
      %773 = vmax.xlane.f32.xlu0 %v772
      %v774 = vpop.xlane.xlu0 %773
      %vm775 = vcmask 66560
      %v776 = vsel %vm775, %v765, -inf
      %777 = vmax.xlane.f32.xlu0 %v776
      %v778 = vpop.xlane.xlu0 %777
      %v779 = vsub.f32 %v760, %v771
      %v780 = vsub.f32 %v762, %v774
      %v781 = vsub.f32 %v765, %v778
      %v782 = vmul.f32 %v779, 1.442695
      %v783 = vpow.pop %v782
      %v784 = vmul.f32 %v780, 1.442695
      %v785 = vpow.pop %v784
      %v786 = vmul.f32 %v781, 1.442695
      %v787 = vpow.pop %v786
      %v788 = vsel %vm768, %v783, 0.0
      %789 = vadd.xlane.f32.xlu0 %v788
      %v790 = vpop.xlane.xlu0 %789
      %v791 = vsel %vm768, %v785, 0.0
      %792 = vadd.xlane.f32.xlu0 %v791
      %v793 = vpop.xlane.xlu0 %792
      %v794 = vsel %vm775, %v787, 0.0
      %795 = vadd.xlane.f32.xlu0 %v794
      %v796 = vpop.xlane.xlu0 %795
      %v797 = vrcp.pop %v790
      %v798 = vrcp.pop %v793
      %v799 = vrcp.pop %v796
      %v800 = vmul.f32 %v783, %v797
      %v801 = vmul.f32 %v785, %v798
      %v802 = vmul.f32 %v787, %v799
      %v803 = vpack.c.bf16 %v801, %v800
      %v804 = vpack.c.bf16 %v802, %v802
      %v805 = vpack.c.bf16 %v616, %v614
      %v807 = vsel %vm768, %v803, 0
      %v810 = vsel %vm768, %v804, 0
      %vm812 = vcmask 1043456
      %vm813 = vcmask 1044480
      %v814 = vsel %vm812, 4294967295, 65535
      %v815 = vsel %vm813, %v814, 0
      %v817 = vand.u32 %v805, %v815
      %819 = vmatpush.bf16.msra.mxu0 0
      %820 = vmatpush.bf16.msra.mxu0 0
      %821 = vmatpush.bf16.msra.mxu0 0
      %822 = vmatpush.bf16.msra.mxu0 0
      %823 = vmatpush.bf16.msra.mxu0 0
      %824 = vmatpush.bf16.msra.mxu0 0
      %825 = vmatpush.bf16.msra.mxu0 0
      %826 = vmatpush.bf16.msra.mxu0 %v817
      %827 = vmatmul.bf16.gmra.mxu0 %v807
      %v828 = vpop.f32.mrf.mxu0
      %v829 = vadd.f32 0.0, %v828
      %v830 = vpop.f32.mrf.mxu0
      %v831 = vadd.f32 0.0, %v830
      %832 = vmatmul.bf16.gmra.mxu0 %v810
      %v833 = vpop.f32.mrf.mxu0
      %v834 = vadd.f32 0.0, %v833
      %v835 = vpop.f32.mrf.mxu0
      %836 = vdwg.mxu0
      %vm839 = vcmask 1046528
      %v840 = vrot.slane %v831, 1
      %v841 = vrot.slane %v834, 1
      %v842 = vsel %vm839, %v840, %v841
      %843 = vrot.lane.b32.xlu0 %v842, 16
      %v844 = vpop.permute.xlu0 %843
      %845 = vrot.lane.b32.xlu0 %v841, 16
      %v846 = vpop.permute.xlu0 %845
      %v849 = vsel %vm740, %v829, %v844
      %v850 = vsel %vm740, %v831, %v846
      %v851 = vpack.c.bf16 %v850, %v849
      %v856 = vunpack.c.l.b16 %v457
      %v857 = vunpack.c.l.b16 %v458
      %v858 = vunpack.c.l.b16 %v459
      %v859 = vunpack.c.l.b16 %v460
      %v860 = vpack.c.b16 %v857, %v856
      %v861 = vpack.c.b16 %v859, %v858
      %v865 = vsel %vm477, %v851, 0
      %867 = vmatpush.bf16.msra.mxu0 0
      %868 = vmatpush.bf16.msra.mxu0 0
      %869 = vmatpush.bf16.msra.mxu0 0
      %870 = vmatpush.bf16.msra.mxu0 0
      %871 = vmatpush.bf16.msra.mxu0 0
      %872 = vmatpush.bf16.msra.mxu0 0
      %873 = vmatpush.bf16.msra.mxu0 %v861
      %874 = vmatpush.bf16.msra.mxu0 %v860
      %875 = vmatmul.bf16.gmra.mxu0 %v865
      %v876 = vpop.f32.mrf.mxu0
      %v877 = vadd.f32 0.0, %v876
      %v878 = vpop.f32.mrf.mxu0
      %v879 = vadd.f32 0.0, %v878
      %880 = vdwg.mxu0
      %v885 = vunpack.c.l.b16 %v449
      %v886 = vunpack.c.l.b16 %v450
      %v887 = vunpack.c.l.b16 %v451
      %v888 = vunpack.c.l.b16 %v452
      %v889 = vpack.c.b16 %v886, %v885
      %v890 = vpack.c.b16 %v888, %v887
      %893 = vmatpush.bf16.msra.mxu0 0
      %894 = vmatpush.bf16.msra.mxu0 0
      %895 = vmatpush.bf16.msra.mxu0 0
      %896 = vmatpush.bf16.msra.mxu0 0
      %897 = vmatpush.bf16.msra.mxu0 0
      %898 = vmatpush.bf16.msra.mxu0 0
      %899 = vmatpush.bf16.msra.mxu0 %v890
      %900 = vmatpush.bf16.msra.mxu0 %v889
      %901 = vmatmul.bf16.gmra.mxu0 %v549
      %v902 = vpop.f32.mrf.mxu0
      %v903 = vadd.f32 0.0, %v902
      %v904 = vpop.f32.mrf.mxu0
      %v905 = vadd.f32 0.0, %v904
      %906 = vdwg.mxu0
      %v911 = vunpack.c.l.b16 %v453
      %v912 = vunpack.c.l.b16 %v454
      %v913 = vunpack.c.l.b16 %v455
      %v914 = vunpack.c.l.b16 %v456
      %v915 = vpack.c.b16 %v912, %v911
      %v916 = vpack.c.b16 %v914, %v913
      %919 = vmatpush.bf16.msra.mxu0 0
      %920 = vmatpush.bf16.msra.mxu0 0
      %921 = vmatpush.bf16.msra.mxu0 0
      %922 = vmatpush.bf16.msra.mxu0 0
      %923 = vmatpush.bf16.msra.mxu0 0
      %924 = vmatpush.bf16.msra.mxu0 0
      %925 = vmatpush.bf16.msra.mxu0 %v916
      %926 = vmatpush.bf16.msra.mxu0 %v915
      %927 = vmatmul.bf16.gmra.mxu0 %v549
      %v928 = vpop.f32.mrf.mxu0
      %v929 = vadd.f32 0.0, %v928
      %v930 = vpop.f32.mrf.mxu0
      %v931 = vadd.f32 0.0, %v930
      %932 = vdwg.mxu0
      %v933 = vxor.u32 %v929, 2147483648
      %v934 = vxor.u32 %v931, 2147483648
      %v935 = vmul.f32 %v933, 1.442695
      %v936 = vpow.pop %v935
      %v937 = vmul.f32 %v934, 1.442695
      %v938 = vpow.pop %v937
      %v939 = vadd.f32 %v936, 1.0
      %v940 = vadd.f32 %v938, 1.0
      %v941 = vrcp.pop %v939
      %v942 = vmul.f32 %v939, %v941
      %v943 = vsub.f32 1.0, %v942
      %v944 = vmul.f32 %v941, %v943
      %v945 = vadd.f32 %v941, %v944
      %vm946 = vweird.f32 %v939
      %vm947 = vweird.f32 %v941
      %vm948 = vmor %vm946, %vm947
      %v949 = vsel %vm948, %v941, %v945
      %v950 = vand.u32 2147483647, %v939
      %vm951 = vcmp.eq.f32.partialorder %v950, 8.507059e+37
      %v952 = vand.u32 %v939, 2147483648
      %v953 = vor.u32 1.1754944e-38, %v952
      %v954 = vsel %vm951, %v953, %v949
      %v955 = vmul.f32 1.0, %v954
      %v956 = vrcp.pop %v940
      %v957 = vmul.f32 %v940, %v956
      %v958 = vsub.f32 1.0, %v957
      %v959 = vmul.f32 %v956, %v958
      %v960 = vadd.f32 %v956, %v959
      %vm961 = vweird.f32 %v940
      %vm962 = vweird.f32 %v956
      %vm963 = vmor %vm961, %vm962
      %v964 = vsel %vm963, %v956, %v960
      %v965 = vand.u32 2147483647, %v940
      %vm966 = vcmp.eq.f32.partialorder %v965, 8.507059e+37
      %v967 = vand.u32 %v940, 2147483648
      %v968 = vor.u32 1.1754944e-38, %v967
      %v969 = vsel %vm966, %v968, %v964
      %v970 = vmul.f32 1.0, %v969
      %v971 = vmul.f32 %v929, %v955
      %v972 = vmul.f32 %v931, %v970
      %v973 = vmul.f32 %v971, %v903
      %v974 = vmul.f32 %v972, %v905
      %v975 = vpack.c.bf16 %v974, %v973
      %v992 = vunpack.c.l.b16 %v461
      %v993 = vunpack.c.l.b16 %v462
      %v994 = vunpack.c.l.b16 %v463
      %v995 = vunpack.c.l.b16 %v464
      %v996 = vunpack.c.l.b16 %v465
      %v997 = vunpack.c.l.b16 %v466
      %v998 = vunpack.c.l.b16 %v467
      %v999 = vunpack.c.l.b16 %v468
      %v1000 = vunpack.c.l.b16 %v469
      %v1001 = vunpack.c.l.b16 %v470
      %v1002 = vunpack.c.l.b16 %v471
      %v1003 = vunpack.c.l.b16 %v472
      %v1004 = vunpack.c.l.b16 %v473
      %v1005 = vunpack.c.l.b16 %v474
      %v1006 = vunpack.c.l.b16 %v475
      %v1007 = vunpack.c.l.b16 %v476
      %v1008 = vpack.c.b16 %v993, %v992
      %v1009 = vpack.c.b16 %v995, %v994
      %v1010 = vpack.c.b16 %v997, %v996
      %v1011 = vpack.c.b16 %v999, %v998
      %v1012 = vpack.c.b16 %v1001, %v1000
      %v1013 = vpack.c.b16 %v1003, %v1002
      %v1014 = vpack.c.b16 %v1005, %v1004
      %v1015 = vpack.c.b16 %v1007, %v1006
      %1024 = vmatpush.bf16.msra.mxu0 %v1015
      %1025 = vmatpush.bf16.msra.mxu0 %v1014
      %1026 = vmatpush.bf16.msra.mxu0 %v1013
      %1027 = vmatpush.bf16.msra.mxu0 %v1012
      %1028 = vmatpush.bf16.msra.mxu0 %v1011
      %1029 = vmatpush.bf16.msra.mxu0 %v1010
      %1030 = vmatpush.bf16.msra.mxu0 %v1009
      %1031 = vmatpush.bf16.msra.mxu0 %v1008
      %1032 = vmatmul.bf16.gmra.mxu0 %v975
      %v1033 = vpop.f32.mrf.mxu0
      %v1034 = vadd.f32 0.0, %v1033
      %v1035 = vpop.f32.mrf.mxu0
      %v1036 = vadd.f32 0.0, %v1035
      %1037 = vdwg.mxu0
      %v1038 = vadd.f32 %v429, %v877
      %v1039 = vadd.f32 %v430, %v879
      %v1040 = vadd.f32 %v1038, %v1034
      %v1041 = vadd.f32 %v1039, %v1036
      %1042 = vst.msk [vmem:[%s427] sm:$0xff] %vm477, %v1040
      %1043 = vst.msk [vmem:[%s427 + $0x8] sm:$0x1] %vm481, %v1041
      %p1044 = scmp.lt.s32.totalorder %s23, 1
      %s1045 = scalar_select %p1044, %s23, 1
      %s1046 = smul.addr %s1045, 2
      %s1047 = smul.addr %s1046, 8
      %s1048 = scalar_lea.vmem %s12, %s1047
      // Predicated region
      $region69: #{fwd.4} parent=67 // pred_check
        %p1049 = pneg %p303
      $region70: #{fwd.4} parent=67 // pred_check_branch
        %1051 = sbr.rel (%p1049) target = $region72
      $region71: #{fwd.4} parent=67 // pred_region
        _
      $region72: #{fwd.4} parent=67 // pred_fallthru
        _
    $region68: #{fwd.4} parent=5 // pred_fallthru
      _
    %p1052 = scmp.le.s32.totalorder 2, %s18
    // Predicated region
    $region73: #{fwd.4} parent=5 // pred_check
      %p1053 = pneg %p1052
    $region74: #{fwd.4} parent=5 // pred_check_branch
      %1055 = sbr.rel (%p1053) target = $region76
    $region75: #{fwd.4} parent=5 // pred_region
      %s1056 = ssub.s32 %s18, 2
      // Predicated region
      $region77: #{fwd.4} parent=75 // pred_check
        %p1057 = pneg %p309
      $region78: #{fwd.4} parent=75 // pred_check_branch
        %1059 = sbr.rel (%p1057) target = $region80
      $region79: #{fwd.4} parent=75 // pred_region
        %p1060 = scmp.lt.s32.totalorder %s24, 1
        %s1061 = scalar_select %p1060, %s24, 1
        %s1062 = smul.addr %s1061, 2
        %s1063 = smul.addr %s1062, 8
        %s1064 = scalar_lea.vmem %s12, %s1063
      $region80: #{fwd.4} parent=75 // pred_fallthru
        _
    $region76: #{fwd.4} parent=5 // pred_fallthru
      _
  $region6: #{fwd.4} parent=0 // loop_footer
    %s22 = sadd.s32 1, %s18
  $region7: #{fwd.4} parent=0 // loop_footer_branch
    %17 = sbr.rel target = $region3
  $region8: #{fwd.4} parent=0 // loop_exit
    _

// kernel: fwd.6
$region0: #{fwd.6}
  #allocation0 [shape = 'u32[]', space=smem, size = 0x4, offset = 0x4, fixed_abs, tag = 'smem constant byte address 0x4 - core index']
  #allocation1 [shape = 'u32[72,128]{1,0:T(1,128)}', space=vmem, size = 0x9000, scoped, tag = 'internal scratch']
  %s0 = inlined_call_operand.vmem [shape: f32[2,8,32], index: 0, kind: input, shape index: {}]
  %s1 = inlined_call_operand.vmem [shape: f32[2,7,32], index: 1, kind: input, shape index: {}]
  %s2 = inlined_call_operand.vmem [shape: f32[8,16], index: 2, kind: input, shape index: {}]
  %s3 = inlined_call_operand.vmem [shape: f32[8,16], index: 3, kind: input, shape index: {}]
  %s4 = inlined_call_operand.vmem [shape: f32[1,32], index: 4, kind: input, shape index: {}]
  %s5 = inlined_call_operand.vmem [shape: bf16[32,32], index: 5, kind: input, shape index: {}]
  %s6 = inlined_call_operand.vmem [shape: bf16[32,16], index: 6, kind: input, shape index: {}]
  %s7 = inlined_call_operand.vmem [shape: bf16[32,16], index: 7, kind: input, shape index: {}]
  %s8 = inlined_call_operand.vmem [shape: bf16[32,128], index: 8, kind: input, shape index: {}]
  %s9 = inlined_call_operand.vmem [shape: bf16[32,128], index: 9, kind: input, shape index: {}]
  %s10 = inlined_call_operand.vmem [shape: bf16[32,32], index: 10, kind: input, shape index: {}]
  %s11 = inlined_call_operand.vmem [shape: bf16[128,32], index: 11, kind: input, shape index: {}]
  %s12 = inlined_call_operand.vmem [shape: f32[1,32], index: 12, kind: input, shape index: {}]
  %s13 = inlined_call_operand.vmem [shape: bf16[32,32], index: 13, kind: input, shape index: {}]
  %s14 = inlined_call_operand.vmem [shape: bf16[32,16], index: 14, kind: input, shape index: {}]
  %s15 = inlined_call_operand.vmem [shape: bf16[32,16], index: 15, kind: input, shape index: {}]
  %s16 = inlined_call_operand.vmem [shape: bf16[32,32], index: 16, kind: input, shape index: {}]
  %s17 = inlined_call_operand.vmem [shape: bf16[32,128], index: 17, kind: input, shape index: {}]
  %s18 = inlined_call_operand.vmem [shape: bf16[32,128], index: 18, kind: input, shape index: {}]
  %s19 = inlined_call_operand.vmem [shape: bf16[128,32], index: 19, kind: input, shape index: {}]
  %s20 = inlined_call_operand.vmem [shape: f32[2,8,32], index: 20, kind: output, shape index: {}]
  %s21 = sld [smem:[#allocation0]]
  $region113: #{fwd.6} parent=0
    _
  %s23 = ssub.s32 1, %s21
  %s24 = scalar_select 0, %s23, %s21
  loop: start=0, step=1, limit=4
  $region2: #{fwd.6} parent=0 // loop_pre_header
    _
  $region3: #{fwd.6} parent=0 // loop_header
    %s26 = sphi 0, %s30
    %p27 = scmp.ge.s32.totalorder %s26, 4
    %s36 = sphi 0, %s38
    %s39 = sphi 0, %s36
    %s40 = sphi 0, %s39
    %s56 = sphi 0, %s40
    %s62 = sphi 0, %s64
    %s65 = sphi 0, %s62
    %s66 = sphi 0, %s65
    %s82 = sphi 0, %s66
    %s86 = sphi 0, %s86
    %s88 = sphi 0, %s86
    %s89 = sphi 0, %s88
    %s103 = sphi 0, %s89
    %s107 = sphi 0, %s107
    %s109 = sphi 0, %s107
    %s110 = sphi 0, %s109
    %s124 = sphi 0, %s110
    %s128 = sphi 0, %s128
    %s130 = sphi 0, %s128
    %s131 = sphi 0, %s130
    %s145 = sphi 0, %s131
    %s149 = sphi 0, %s149
    %s151 = sphi 0, %s149
    %s152 = sphi 0, %s151
    %s166 = sphi 0, %s152
    %s170 = sphi 0, %s170
    %s172 = sphi 0, %s170
    %s173 = sphi 0, %s172
    %s187 = sphi 0, %s173
    %s191 = sphi 0, %s191
    %s193 = sphi 0, %s191
    %s194 = sphi 0, %s193
    %s208 = sphi 0, %s194
    %s212 = sphi 0, %s212
    %s214 = sphi 0, %s212
    %s215 = sphi 0, %s214
    %s229 = sphi 0, %s215
    %s233 = sphi 0, %s233
    %s235 = sphi 0, %s233
    %s236 = sphi 0, %s235
    %s250 = sphi 0, %s236
    %s254 = sphi 0, %s254
    %s256 = sphi 0, %s254
    %s257 = sphi 0, %s256
    %s271 = sphi 0, %s257
    %s275 = sphi 0, %s275
    %s277 = sphi 0, %s275
    %s278 = sphi 0, %s277
    %s292 = sphi 0, %s278
    %s296 = sphi 0, %s296
    %s298 = sphi 0, %s296
    %s299 = sphi 0, %s298
    %s313 = sphi 0, %s299
    %s317 = sphi 0, %s317
    %s319 = sphi 0, %s317
    %s320 = sphi 0, %s319
    %s334 = sphi 0, %s320
    %s338 = sphi 0, %s338
    %s340 = sphi 0, %s338
    %s341 = sphi 0, %s340
    %s355 = sphi 0, %s341
    %s359 = sphi 0, %s359
    %s361 = sphi 0, %s359
    %s362 = sphi 0, %s361
    %s376 = sphi 0, %s362
    %s380 = sphi 0, %s380
    %s382 = sphi 0, %s380
    %s383 = sphi 0, %s382
    %s397 = sphi 0, %s383
    %s401 = sphi 0, %s401
    %s403 = sphi 0, %s401
    %s404 = sphi 0, %s403
    %s418 = sphi 0, %s404
    %s422 = sphi 0, %s422
    %s424 = sphi 0, %s422
    %s425 = sphi 0, %s424
    %s439 = sphi 0, %s425
    %s443 = sphi 0, %s443
    %s445 = sphi 0, %s443
    %s446 = sphi 0, %s445
    %s460 = sphi 0, %s446
    %s466 = sphi 0, %s468
    %s469 = sphi 0, %s466
    %s470 = sphi 0, %s469
    %s486 = sphi 0, %s470
  $region4: #{fwd.6} parent=0 // loop_header_branch
    %29 = sbr.rel (%p27) target = $region8
  $region5: #{fwd.6} parent=0 // loop_body
    %s31 = ssub.s32 %s26, 1
    %s32 = ssub.s32 %s26, 2
    %s33 = sadd.s32 %s26, 1
    %s34 = ssub.s32 %s26, %s33
    %p35 = scmp.eq.s32.totalorder %s34, 0
    %s37 = sadd.s32 %s36, 1
    %s38 = scalar_select %p35, %s36, %s37
    %p41 = pneg %p35
    %p42 = scmp.eq.s32.totalorder %s26, 1
    %p43 = por %p41, %p42
    %p44 = scmp.ne.s32.totalorder %s36, %s39
    %p45 = scmp.eq.s32.totalorder %s26, 0
    %p46 = por %p44, %p45
    %p47 = scmp.ne.s32.totalorder %s36, %s39
    %p48 = scmp.eq.s32.totalorder %s31, 1
    %p49 = por %p47, %p48
    %p50 = scmp.ne.s32.totalorder %s39, %s40
    %p51 = scmp.eq.s32.totalorder %s31, 0
    %p52 = por %p50, %p51
    %p53 = scmp.ne.s32.totalorder %s39, %s40
    %p54 = scmp.eq.s32.totalorder %s32, 1
    %p55 = por %p53, %p54
    %p57 = scmp.ne.s32.totalorder %s40, %s56
    %p58 = scmp.eq.s32.totalorder %s32, 0
    %p59 = por %p57, %p58
    %s60 = ssub.s32 %s26, %s33
    %p61 = scmp.eq.s32.totalorder %s60, 0
    %s63 = sadd.s32 %s62, 1
    %s64 = scalar_select %p61, %s62, %s63
    %p67 = pneg %p61
    %p68 = scmp.eq.s32.totalorder %s26, 1
    %p69 = por %p67, %p68
    %p70 = scmp.ne.s32.totalorder %s62, %s65
    %p71 = scmp.eq.s32.totalorder %s26, 0
    %p72 = por %p70, %p71
    %p73 = scmp.ne.s32.totalorder %s62, %s65
    %p74 = scmp.eq.s32.totalorder %s31, 1
    %p75 = por %p73, %p74
    %p76 = scmp.ne.s32.totalorder %s65, %s66
    %p77 = scmp.eq.s32.totalorder %s31, 0
    %p78 = por %p76, %p77
    %p79 = scmp.ne.s32.totalorder %s65, %s66
    %p80 = scmp.eq.s32.totalorder %s32, 1
    %p81 = por %p79, %p80
    %p83 = scmp.ne.s32.totalorder %s66, %s82
    %p84 = scmp.eq.s32.totalorder %s32, 0
    %p85 = por %p83, %p84
    %s87 = sadd.s32 %s86, 1
    %p90 = scmp.eq.s32.totalorder %s26, 1
    %p91 = scmp.ne.s32.totalorder %s86, %s88
    %p92 = scmp.eq.s32.totalorder %s26, 0
    %p93 = por %p91, %p92
    %p94 = scmp.ne.s32.totalorder %s86, %s88
    %p95 = scmp.eq.s32.totalorder %s31, 1
    %p96 = por %p94, %p95
    %p97 = scmp.ne.s32.totalorder %s88, %s89
    %p98 = scmp.eq.s32.totalorder %s31, 0
    %p99 = por %p97, %p98
    %p100 = scmp.ne.s32.totalorder %s88, %s89
    %p101 = scmp.eq.s32.totalorder %s32, 1
    %p102 = por %p100, %p101
    %p104 = scmp.ne.s32.totalorder %s89, %s103
    %p105 = scmp.eq.s32.totalorder %s32, 0
    %p106 = por %p104, %p105
    %s108 = sadd.s32 %s107, 1
    %p111 = scmp.eq.s32.totalorder %s26, 1
    %p112 = scmp.ne.s32.totalorder %s107, %s109
    %p113 = scmp.eq.s32.totalorder %s26, 0
    %p114 = por %p112, %p113
    %p115 = scmp.ne.s32.totalorder %s107, %s109
    %p116 = scmp.eq.s32.totalorder %s31, 1
    %p117 = por %p115, %p116
    %p118 = scmp.ne.s32.totalorder %s109, %s110
    %p119 = scmp.eq.s32.totalorder %s31, 0
    %p120 = por %p118, %p119
    %p121 = scmp.ne.s32.totalorder %s109, %s110
    %p122 = scmp.eq.s32.totalorder %s32, 1
    %p123 = por %p121, %p122
    %p125 = scmp.ne.s32.totalorder %s110, %s124
    %p126 = scmp.eq.s32.totalorder %s32, 0
    %p127 = por %p125, %p126
    %s129 = sadd.s32 %s128, 1
    %p132 = scmp.eq.s32.totalorder %s26, 1
    %p133 = scmp.ne.s32.totalorder %s128, %s130
    %p134 = scmp.eq.s32.totalorder %s26, 0
    %p135 = por %p133, %p134
    %p136 = scmp.ne.s32.totalorder %s128, %s130
    %p137 = scmp.eq.s32.totalorder %s31, 1
    %p138 = por %p136, %p137
    %p139 = scmp.ne.s32.totalorder %s130, %s131
    %p140 = scmp.eq.s32.totalorder %s31, 0
    %p141 = por %p139, %p140
    %p142 = scmp.ne.s32.totalorder %s130, %s131
    %p143 = scmp.eq.s32.totalorder %s32, 1
    %p144 = por %p142, %p143
    %p146 = scmp.ne.s32.totalorder %s131, %s145
    %p147 = scmp.eq.s32.totalorder %s32, 0
    %p148 = por %p146, %p147
    %s150 = sadd.s32 %s149, 1
    %p153 = scmp.eq.s32.totalorder %s26, 1
    %p154 = scmp.ne.s32.totalorder %s149, %s151
    %p155 = scmp.eq.s32.totalorder %s26, 0
    %p156 = por %p154, %p155
    %p157 = scmp.ne.s32.totalorder %s149, %s151
    %p158 = scmp.eq.s32.totalorder %s31, 1
    %p159 = por %p157, %p158
    %p160 = scmp.ne.s32.totalorder %s151, %s152
    %p161 = scmp.eq.s32.totalorder %s31, 0
    %p162 = por %p160, %p161
    %p163 = scmp.ne.s32.totalorder %s151, %s152
    %p164 = scmp.eq.s32.totalorder %s32, 1
    %p165 = por %p163, %p164
    %p167 = scmp.ne.s32.totalorder %s152, %s166
    %p168 = scmp.eq.s32.totalorder %s32, 0
    %p169 = por %p167, %p168
    %s171 = sadd.s32 %s170, 1
    %p174 = scmp.eq.s32.totalorder %s26, 1
    %p175 = scmp.ne.s32.totalorder %s170, %s172
    %p176 = scmp.eq.s32.totalorder %s26, 0
    %p177 = por %p175, %p176
    %p178 = scmp.ne.s32.totalorder %s170, %s172
    %p179 = scmp.eq.s32.totalorder %s31, 1
    %p180 = por %p178, %p179
    %p181 = scmp.ne.s32.totalorder %s172, %s173
    %p182 = scmp.eq.s32.totalorder %s31, 0
    %p183 = por %p181, %p182
    %p184 = scmp.ne.s32.totalorder %s172, %s173
    %p185 = scmp.eq.s32.totalorder %s32, 1
    %p186 = por %p184, %p185
    %p188 = scmp.ne.s32.totalorder %s173, %s187
    %p189 = scmp.eq.s32.totalorder %s32, 0
    %p190 = por %p188, %p189
    %s192 = sadd.s32 %s191, 1
    %p195 = scmp.eq.s32.totalorder %s26, 1
    %p196 = scmp.ne.s32.totalorder %s191, %s193
    %p197 = scmp.eq.s32.totalorder %s26, 0
    %p198 = por %p196, %p197
    %p199 = scmp.ne.s32.totalorder %s191, %s193
    %p200 = scmp.eq.s32.totalorder %s31, 1
    %p201 = por %p199, %p200
    %p202 = scmp.ne.s32.totalorder %s193, %s194
    %p203 = scmp.eq.s32.totalorder %s31, 0
    %p204 = por %p202, %p203
    %p205 = scmp.ne.s32.totalorder %s193, %s194
    %p206 = scmp.eq.s32.totalorder %s32, 1
    %p207 = por %p205, %p206
    %p209 = scmp.ne.s32.totalorder %s194, %s208
    %p210 = scmp.eq.s32.totalorder %s32, 0
    %p211 = por %p209, %p210
    %s213 = sadd.s32 %s212, 1
    %p216 = scmp.eq.s32.totalorder %s26, 1
    %p217 = scmp.ne.s32.totalorder %s212, %s214
    %p218 = scmp.eq.s32.totalorder %s26, 0
    %p219 = por %p217, %p218
    %p220 = scmp.ne.s32.totalorder %s212, %s214
    %p221 = scmp.eq.s32.totalorder %s31, 1
    %p222 = por %p220, %p221
    %p223 = scmp.ne.s32.totalorder %s214, %s215
    %p224 = scmp.eq.s32.totalorder %s31, 0
    %p225 = por %p223, %p224
    %p226 = scmp.ne.s32.totalorder %s214, %s215
    %p227 = scmp.eq.s32.totalorder %s32, 1
    %p228 = por %p226, %p227
    %p230 = scmp.ne.s32.totalorder %s215, %s229
    %p231 = scmp.eq.s32.totalorder %s32, 0
    %p232 = por %p230, %p231
    %s234 = sadd.s32 %s233, 1
    %p237 = scmp.eq.s32.totalorder %s26, 1
    %p238 = scmp.ne.s32.totalorder %s233, %s235
    %p239 = scmp.eq.s32.totalorder %s26, 0
    %p240 = por %p238, %p239
    %p241 = scmp.ne.s32.totalorder %s233, %s235
    %p242 = scmp.eq.s32.totalorder %s31, 1
    %p243 = por %p241, %p242
    %p244 = scmp.ne.s32.totalorder %s235, %s236
    %p245 = scmp.eq.s32.totalorder %s31, 0
    %p246 = por %p244, %p245
    %p247 = scmp.ne.s32.totalorder %s235, %s236
    %p248 = scmp.eq.s32.totalorder %s32, 1
    %p249 = por %p247, %p248
    %p251 = scmp.ne.s32.totalorder %s236, %s250
    %p252 = scmp.eq.s32.totalorder %s32, 0
    %p253 = por %p251, %p252
    %s255 = sadd.s32 %s254, 1
    %p258 = scmp.eq.s32.totalorder %s26, 1
    %p259 = scmp.ne.s32.totalorder %s254, %s256
    %p260 = scmp.eq.s32.totalorder %s26, 0
    %p261 = por %p259, %p260
    %p262 = scmp.ne.s32.totalorder %s254, %s256
    %p263 = scmp.eq.s32.totalorder %s31, 1
    %p264 = por %p262, %p263
    %p265 = scmp.ne.s32.totalorder %s256, %s257
    %p266 = scmp.eq.s32.totalorder %s31, 0
    %p267 = por %p265, %p266
    %p268 = scmp.ne.s32.totalorder %s256, %s257
    %p269 = scmp.eq.s32.totalorder %s32, 1
    %p270 = por %p268, %p269
    %p272 = scmp.ne.s32.totalorder %s257, %s271
    %p273 = scmp.eq.s32.totalorder %s32, 0
    %p274 = por %p272, %p273
    %s276 = sadd.s32 %s275, 1
    %p279 = scmp.eq.s32.totalorder %s26, 1
    %p280 = scmp.ne.s32.totalorder %s275, %s277
    %p281 = scmp.eq.s32.totalorder %s26, 0
    %p282 = por %p280, %p281
    %p283 = scmp.ne.s32.totalorder %s275, %s277
    %p284 = scmp.eq.s32.totalorder %s31, 1
    %p285 = por %p283, %p284
    %p286 = scmp.ne.s32.totalorder %s277, %s278
    %p287 = scmp.eq.s32.totalorder %s31, 0
    %p288 = por %p286, %p287
    %p289 = scmp.ne.s32.totalorder %s277, %s278
    %p290 = scmp.eq.s32.totalorder %s32, 1
    %p291 = por %p289, %p290
    %p293 = scmp.ne.s32.totalorder %s278, %s292
    %p294 = scmp.eq.s32.totalorder %s32, 0
    %p295 = por %p293, %p294
    %s297 = sadd.s32 %s296, 1
    %p300 = scmp.eq.s32.totalorder %s26, 1
    %p301 = scmp.ne.s32.totalorder %s296, %s298
    %p302 = scmp.eq.s32.totalorder %s26, 0
    %p303 = por %p301, %p302
    %p304 = scmp.ne.s32.totalorder %s296, %s298
    %p305 = scmp.eq.s32.totalorder %s31, 1
    %p306 = por %p304, %p305
    %p307 = scmp.ne.s32.totalorder %s298, %s299
    %p308 = scmp.eq.s32.totalorder %s31, 0
    %p309 = por %p307, %p308
    %p310 = scmp.ne.s32.totalorder %s298, %s299
    %p311 = scmp.eq.s32.totalorder %s32, 1
    %p312 = por %p310, %p311
    %p314 = scmp.ne.s32.totalorder %s299, %s313
    %p315 = scmp.eq.s32.totalorder %s32, 0
    %p316 = por %p314, %p315
    %s318 = sadd.s32 %s317, 1
    %p321 = scmp.eq.s32.totalorder %s26, 1
    %p322 = scmp.ne.s32.totalorder %s317, %s319
    %p323 = scmp.eq.s32.totalorder %s26, 0
    %p324 = por %p322, %p323
    %p325 = scmp.ne.s32.totalorder %s317, %s319
    %p326 = scmp.eq.s32.totalorder %s31, 1
    %p327 = por %p325, %p326
    %p328 = scmp.ne.s32.totalorder %s319, %s320
    %p329 = scmp.eq.s32.totalorder %s31, 0
    %p330 = por %p328, %p329
    %p331 = scmp.ne.s32.totalorder %s319, %s320
    %p332 = scmp.eq.s32.totalorder %s32, 1
    %p333 = por %p331, %p332
    %p335 = scmp.ne.s32.totalorder %s320, %s334
    %p336 = scmp.eq.s32.totalorder %s32, 0
    %p337 = por %p335, %p336
    %s339 = sadd.s32 %s338, 1
    %p342 = scmp.eq.s32.totalorder %s26, 1
    %p343 = scmp.ne.s32.totalorder %s338, %s340
    %p344 = scmp.eq.s32.totalorder %s26, 0
    %p345 = por %p343, %p344
    %p346 = scmp.ne.s32.totalorder %s338, %s340
    %p347 = scmp.eq.s32.totalorder %s31, 1
    %p348 = por %p346, %p347
    %p349 = scmp.ne.s32.totalorder %s340, %s341
    %p350 = scmp.eq.s32.totalorder %s31, 0
    %p351 = por %p349, %p350
    %p352 = scmp.ne.s32.totalorder %s340, %s341
    %p353 = scmp.eq.s32.totalorder %s32, 1
    %p354 = por %p352, %p353
    %p356 = scmp.ne.s32.totalorder %s341, %s355
    %p357 = scmp.eq.s32.totalorder %s32, 0
    %p358 = por %p356, %p357
    %s360 = sadd.s32 %s359, 1
    %p363 = scmp.eq.s32.totalorder %s26, 1
    %p364 = scmp.ne.s32.totalorder %s359, %s361
    %p365 = scmp.eq.s32.totalorder %s26, 0
    %p366 = por %p364, %p365
    %p367 = scmp.ne.s32.totalorder %s359, %s361
    %p368 = scmp.eq.s32.totalorder %s31, 1
    %p369 = por %p367, %p368
    %p370 = scmp.ne.s32.totalorder %s361, %s362
    %p371 = scmp.eq.s32.totalorder %s31, 0
    %p372 = por %p370, %p371
    %p373 = scmp.ne.s32.totalorder %s361, %s362
    %p374 = scmp.eq.s32.totalorder %s32, 1
    %p375 = por %p373, %p374
    %p377 = scmp.ne.s32.totalorder %s362, %s376
    %p378 = scmp.eq.s32.totalorder %s32, 0
    %p379 = por %p377, %p378
    %s381 = sadd.s32 %s380, 1
    %p384 = scmp.eq.s32.totalorder %s26, 1
    %p385 = scmp.ne.s32.totalorder %s380, %s382
    %p386 = scmp.eq.s32.totalorder %s26, 0
    %p387 = por %p385, %p386
    %p388 = scmp.ne.s32.totalorder %s380, %s382
    %p389 = scmp.eq.s32.totalorder %s31, 1
    %p390 = por %p388, %p389
    %p391 = scmp.ne.s32.totalorder %s382, %s383
    %p392 = scmp.eq.s32.totalorder %s31, 0
    %p393 = por %p391, %p392
    %p394 = scmp.ne.s32.totalorder %s382, %s383
    %p395 = scmp.eq.s32.totalorder %s32, 1
    %p396 = por %p394, %p395
    %p398 = scmp.ne.s32.totalorder %s383, %s397
    %p399 = scmp.eq.s32.totalorder %s32, 0
    %p400 = por %p398, %p399
    %s402 = sadd.s32 %s401, 1
    %p405 = scmp.eq.s32.totalorder %s26, 1
    %p406 = scmp.ne.s32.totalorder %s401, %s403
    %p407 = scmp.eq.s32.totalorder %s26, 0
    %p408 = por %p406, %p407
    %p409 = scmp.ne.s32.totalorder %s401, %s403
    %p410 = scmp.eq.s32.totalorder %s31, 1
    %p411 = por %p409, %p410
    %p412 = scmp.ne.s32.totalorder %s403, %s404
    %p413 = scmp.eq.s32.totalorder %s31, 0
    %p414 = por %p412, %p413
    %p415 = scmp.ne.s32.totalorder %s403, %s404
    %p416 = scmp.eq.s32.totalorder %s32, 1
    %p417 = por %p415, %p416
    %p419 = scmp.ne.s32.totalorder %s404, %s418
    %p420 = scmp.eq.s32.totalorder %s32, 0
    %p421 = por %p419, %p420
    %s423 = sadd.s32 %s422, 1
    %p426 = scmp.eq.s32.totalorder %s26, 1
    %p427 = scmp.ne.s32.totalorder %s422, %s424
    %p428 = scmp.eq.s32.totalorder %s26, 0
    %p429 = por %p427, %p428
    %p430 = scmp.ne.s32.totalorder %s422, %s424
    %p431 = scmp.eq.s32.totalorder %s31, 1
    %p432 = por %p430, %p431
    %p433 = scmp.ne.s32.totalorder %s424, %s425
    %p434 = scmp.eq.s32.totalorder %s31, 0
    %p435 = por %p433, %p434
    %p436 = scmp.ne.s32.totalorder %s424, %s425
    %p437 = scmp.eq.s32.totalorder %s32, 1
    %p438 = por %p436, %p437
    %p440 = scmp.ne.s32.totalorder %s425, %s439
    %p441 = scmp.eq.s32.totalorder %s32, 0
    %p442 = por %p440, %p441
    %s444 = sadd.s32 %s443, 1
    %p447 = scmp.eq.s32.totalorder %s26, 1
    %p448 = scmp.ne.s32.totalorder %s443, %s445
    %p449 = scmp.eq.s32.totalorder %s26, 0
    %p450 = por %p448, %p449
    %p451 = scmp.ne.s32.totalorder %s443, %s445
    %p452 = scmp.eq.s32.totalorder %s31, 1
    %p453 = por %p451, %p452
    %p454 = scmp.ne.s32.totalorder %s445, %s446
    %p455 = scmp.eq.s32.totalorder %s31, 0
    %p456 = por %p454, %p455
    %p457 = scmp.ne.s32.totalorder %s445, %s446
    %p458 = scmp.eq.s32.totalorder %s32, 1
    %p459 = por %p457, %p458
    %p461 = scmp.ne.s32.totalorder %s446, %s460
    %p462 = scmp.eq.s32.totalorder %s32, 0
    %p463 = por %p461, %p462
    %s464 = ssub.s32 %s26, %s33
    %p465 = scmp.eq.s32.totalorder %s464, 0
    %s467 = sadd.s32 %s466, 1
    %s468 = scalar_select %p465, %s466, %s467
    %p471 = pneg %p465
    %p472 = scmp.eq.s32.totalorder %s26, 1
    %p473 = por %p471, %p472
    %p474 = scmp.ne.s32.totalorder %s466, %s469
    %p475 = scmp.eq.s32.totalorder %s26, 0
    %p476 = por %p474, %p475
    %p477 = scmp.ne.s32.totalorder %s466, %s469
    %p478 = scmp.eq.s32.totalorder %s31, 1
    %p479 = por %p477, %p478
    %p480 = scmp.ne.s32.totalorder %s469, %s470
    %p481 = scmp.eq.s32.totalorder %s31, 0
    %p482 = por %p480, %p481
    %p483 = scmp.ne.s32.totalorder %s469, %s470
    %p484 = scmp.eq.s32.totalorder %s32, 1
    %p485 = por %p483, %p484
    %p487 = scmp.ne.s32.totalorder %s470, %s486
    %p488 = scmp.eq.s32.totalorder %s32, 0
    %p489 = por %p487, %p488
    %p490 = scmp.le.s32.totalorder 1, %s26
    %p491 = scmp.lt.s32.totalorder %s26, 3
    %p492 = pnand %p490, %p491
    %p493 = pneg %p492
    // Predicated region
    $region9: #{fwd.6} parent=5 // pred_check
      _
    $region10: #{fwd.6} parent=5 // pred_check_branch
      %495 = sbr.rel (%p492) target = $region12
    $region11: #{fwd.6} parent=5 // pred_region
      %s496 = ssub.s32 %s26, 1
      // Predicated region
      $region13: #{fwd.6} parent=11 // pred_check
        %p497 = pneg %p99
      $region14: #{fwd.6} parent=11 // pred_check_branch
        %499 = sbr.rel (%p497) target = $region16
      $region15: #{fwd.6} parent=11 // pred_region
        _
      $region16: #{fwd.6} parent=11 // pred_fallthru
        _
      // Predicated region
      $region17: #{fwd.6} parent=11 // pred_check
        %p500 = pneg %p120
      $region18: #{fwd.6} parent=11 // pred_check_branch
        %502 = sbr.rel (%p500) target = $region20
      $region19: #{fwd.6} parent=11 // pred_region
        _
      $region20: #{fwd.6} parent=11 // pred_fallthru
        _
      // Predicated region
      $region21: #{fwd.6} parent=11 // pred_check
        %p503 = pneg %p141
      $region22: #{fwd.6} parent=11 // pred_check_branch
        %505 = sbr.rel (%p503) target = $region24
      $region23: #{fwd.6} parent=11 // pred_region
        _
      $region24: #{fwd.6} parent=11 // pred_fallthru
        _
      // Predicated region
      $region25: #{fwd.6} parent=11 // pred_check
        %p506 = pneg %p162
      $region26: #{fwd.6} parent=11 // pred_check_branch
        %508 = sbr.rel (%p506) target = $region28
      $region27: #{fwd.6} parent=11 // pred_region
        _
      $region28: #{fwd.6} parent=11 // pred_fallthru
        _
      // Predicated region
      $region29: #{fwd.6} parent=11 // pred_check
        %p509 = pneg %p183
      $region30: #{fwd.6} parent=11 // pred_check_branch
        %511 = sbr.rel (%p509) target = $region32
      $region31: #{fwd.6} parent=11 // pred_region
        _
      $region32: #{fwd.6} parent=11 // pred_fallthru
        _
      // Predicated region
      $region33: #{fwd.6} parent=11 // pred_check
        %p512 = pneg %p204
      $region34: #{fwd.6} parent=11 // pred_check_branch
        %514 = sbr.rel (%p512) target = $region36
      $region35: #{fwd.6} parent=11 // pred_region
        _
      $region36: #{fwd.6} parent=11 // pred_fallthru
        _
      // Predicated region
      $region37: #{fwd.6} parent=11 // pred_check
        %p515 = pneg %p225
      $region38: #{fwd.6} parent=11 // pred_check_branch
        %517 = sbr.rel (%p515) target = $region40
      $region39: #{fwd.6} parent=11 // pred_region
        _
      $region40: #{fwd.6} parent=11 // pred_fallthru
        _
      // Predicated region
      $region41: #{fwd.6} parent=11 // pred_check
        %p518 = pneg %p246
      $region42: #{fwd.6} parent=11 // pred_check_branch
        %520 = sbr.rel (%p518) target = $region44
      $region43: #{fwd.6} parent=11 // pred_region
        _
      $region44: #{fwd.6} parent=11 // pred_fallthru
        _
      // Predicated region
      $region45: #{fwd.6} parent=11 // pred_check
        %p521 = pneg %p267
      $region46: #{fwd.6} parent=11 // pred_check_branch
        %523 = sbr.rel (%p521) target = $region48
      $region47: #{fwd.6} parent=11 // pred_region
        _
      $region48: #{fwd.6} parent=11 // pred_fallthru
        _
      // Predicated region
      $region49: #{fwd.6} parent=11 // pred_check
        %p524 = pneg %p288
      $region50: #{fwd.6} parent=11 // pred_check_branch
        %526 = sbr.rel (%p524) target = $region52
      $region51: #{fwd.6} parent=11 // pred_region
        _
      $region52: #{fwd.6} parent=11 // pred_fallthru
        _
      // Predicated region
      $region53: #{fwd.6} parent=11 // pred_check
        %p527 = pneg %p309
      $region54: #{fwd.6} parent=11 // pred_check_branch
        %529 = sbr.rel (%p527) target = $region56
      $region55: #{fwd.6} parent=11 // pred_region
        _
      $region56: #{fwd.6} parent=11 // pred_fallthru
        _
      // Predicated region
      $region57: #{fwd.6} parent=11 // pred_check
        %p530 = pneg %p330
      $region58: #{fwd.6} parent=11 // pred_check_branch
        %532 = sbr.rel (%p530) target = $region60
      $region59: #{fwd.6} parent=11 // pred_region
        _
      $region60: #{fwd.6} parent=11 // pred_fallthru
        _
      // Predicated region
      $region61: #{fwd.6} parent=11 // pred_check
        %p533 = pneg %p351
      $region62: #{fwd.6} parent=11 // pred_check_branch
        %535 = sbr.rel (%p533) target = $region64
      $region63: #{fwd.6} parent=11 // pred_region
        _
      $region64: #{fwd.6} parent=11 // pred_fallthru
        _
      // Predicated region
      $region65: #{fwd.6} parent=11 // pred_check
        %p536 = pneg %p372
      $region66: #{fwd.6} parent=11 // pred_check_branch
        %538 = sbr.rel (%p536) target = $region68
      $region67: #{fwd.6} parent=11 // pred_region
        _
      $region68: #{fwd.6} parent=11 // pred_fallthru
        _
      // Predicated region
      $region69: #{fwd.6} parent=11 // pred_check
        %p539 = pneg %p393
      $region70: #{fwd.6} parent=11 // pred_check_branch
        %541 = sbr.rel (%p539) target = $region72
      $region71: #{fwd.6} parent=11 // pred_region
        _
      $region72: #{fwd.6} parent=11 // pred_fallthru
        _
      // Predicated region
      $region73: #{fwd.6} parent=11 // pred_check
        %p542 = pneg %p414
      $region74: #{fwd.6} parent=11 // pred_check_branch
        %544 = sbr.rel (%p542) target = $region76
      $region75: #{fwd.6} parent=11 // pred_region
        _
      $region76: #{fwd.6} parent=11 // pred_fallthru
        _
      // Predicated region
      $region77: #{fwd.6} parent=11 // pred_check
        %p545 = pneg %p435
      $region78: #{fwd.6} parent=11 // pred_check_branch
        %547 = sbr.rel (%p545) target = $region80
      $region79: #{fwd.6} parent=11 // pred_region
        _
      $region80: #{fwd.6} parent=11 // pred_fallthru
        _
      // Predicated region
      $region81: #{fwd.6} parent=11 // pred_check
        %p548 = pneg %p456
      $region82: #{fwd.6} parent=11 // pred_check_branch
        %550 = sbr.rel (%p548) target = $region84
      $region83: #{fwd.6} parent=11 // pred_region
        _
      $region84: #{fwd.6} parent=11 // pred_fallthru
        _
    $region12: #{fwd.6} parent=5 // pred_fallthru
      _
    %p551 = scmp.lt.s32.totalorder %s26, 2
    // Predicated region
    $region85: #{fwd.6} parent=5 // pred_check
      %p552 = pneg %p551
    $region86: #{fwd.6} parent=5 // pred_check_branch
      %554 = sbr.rel (%p552) target = $region88
    $region87: #{fwd.6} parent=5 // pred_region
      // Predicated region
      $region89: #{fwd.6} parent=87 // pred_check
        %p555 = pneg %p46
      $region90: #{fwd.6} parent=87 // pred_check_branch
        %557 = sbr.rel (%p555) target = $region92
      $region91: #{fwd.6} parent=87 // pred_region
        %p558 = scmp.lt.s32.totalorder %s26, 1
        %s559 = scalar_select %p558, %s26, 1
        %s560 = smul.addr %s559, 8
        %s561 = scalar_lea.vmem %s0, %s560
      $region92: #{fwd.6} parent=87 // pred_fallthru
        _
      // Predicated region
      $region93: #{fwd.6} parent=87 // pred_check
        %p562 = pneg %p72
      $region94: #{fwd.6} parent=87 // pred_check_branch
        %564 = sbr.rel (%p562) target = $region96
      $region95: #{fwd.6} parent=87 // pred_region
        %p565 = scmp.lt.s32.totalorder %s26, 1
        %s566 = scalar_select %p565, %s26, 1
        %s567 = smul.addr %s566, 8
        %s568 = scalar_lea.vmem %s1, %s567
      $region96: #{fwd.6} parent=87 // pred_fallthru
        _
    $region88: #{fwd.6} parent=5 // pred_fallthru
      _
    %p569 = scmp.le.s32.totalorder 1, %s26
    %p570 = scmp.lt.s32.totalorder %s26, 3
    %p571 = pnand %p569, %p570
    %p572 = pneg %p571
    // Predicated region
    $region97: #{fwd.6} parent=5 // pred_check
      _
    $region98: #{fwd.6} parent=5 // pred_check_branch
      %574 = sbr.rel (%p571) target = $region100
    $region99: #{fwd.6} parent=5 // pred_region
      %s575 = ssub.s32 %s26, 1
      %p576 = scmp.lt.s32.totalorder %s31, 1
      %s577 = scalar_select %p576, %s31, 1
      %s578 = smul.addr %s577, 8
      %s579 = scalar_lea.vmem %s0, %s578
      %p580 = pneg %p52
      %p581 = pneg %p49
      %p582 = scmp.lt.s32.totalorder %s31, 1
      %s583 = scalar_select %p582, %s31, 1
      %s584 = smul.addr %s583, 8
      %s585 = scalar_lea.vmem %s1, %s584
      %p586 = pneg %p78
      %p587 = pneg %p75
      %p588 = pneg %p99
      %p589 = pneg %p96
      %p590 = pneg %p120
      %p591 = pneg %p117
      %p592 = pneg %p141
      %p593 = pneg %p138
      %p594 = pneg %p162
      %p595 = pneg %p159
      %p596 = pneg %p183
      %p597 = pneg %p180
      %p598 = pneg %p204
      %p599 = pneg %p201
      %p600 = pneg %p225
      %p601 = pneg %p222
      %p602 = pneg %p246
      %p603 = pneg %p243
      %p604 = pneg %p267
      %p605 = pneg %p264
      %p606 = pneg %p288
      %p607 = pneg %p285
      %p608 = pneg %p309
      %p609 = pneg %p306
      %p610 = pneg %p330
      %p611 = pneg %p327
      %p612 = pneg %p351
      %p613 = pneg %p348
      %p614 = pneg %p372
      %p615 = pneg %p369
      %p616 = pneg %p393
      %p617 = pneg %p390
      %p618 = pneg %p414
      %p619 = pneg %p411
      %p620 = pneg %p435
      %p621 = pneg %p432
      %p622 = pneg %p456
      %p623 = pneg %p453
      %p624 = pneg %p482
      %p625 = pneg %p479
      %p626 = scmp.lt.s32.totalorder %s31, 1
      %s627 = scalar_select %p626, %s31, 1
      %s628 = smul.addr %s627, 8
      %s629 = scalar_lea.vmem %s20, %s628
      %p630 = scmp.lt.s32.totalorder %s31, 1
      %s631 = scalar_select %p630, %s31, 1
      %s632 = smul.addr %s631, 8
      %s633 = scalar_lea.vmem %s0, %s632
      %p634 = scmp.lt.s32.totalorder %s31, 1
      %s635 = scalar_select %p634, %s31, 1
      %s636 = smul.addr %s635, 8
      %s637 = scalar_lea.vmem %s1, %s636
      %p638 = scmp.lt.s32.totalorder %s31, 1
      %s639 = scalar_select %p638, %s31, 1
      %s640 = smul.addr %s639, 8
      %s641 = scalar_lea.vmem %s20, %s640
      %v643 = vld [vmem:[%s633] sm:$0xff]
      %v644 = vld [vmem:[%s2] sm:$0xff]
      %v645 = vld [vmem:[%s3] sm:$0xff]
      %v646 = vld [vmem:[%s4] sm:$0x1]
      %v647 = vld [vmem:[%s5] sm:$0xf]
      %v648 = vld [vmem:[%s5 + $0x4] sm:$0xf]
      %v649 = vld [vmem:[%s5 + $0x8] sm:$0xf]
      %v650 = vld [vmem:[%s5 + $0xc] sm:$0xf]
      %v651 = vld [vmem:[%s6] sm:$0xf]
      %v652 = vld [vmem:[%s6 + $0x4] sm:$0xf]
      %v653 = vld [vmem:[%s6 + $0x8] sm:$0xf]
      %v654 = vld [vmem:[%s6 + $0xc] sm:$0xf]
      %v655 = vld [vmem:[%s7] sm:$0xf]
      %v656 = vld [vmem:[%s7 + $0x4] sm:$0xf]
      %v657 = vld [vmem:[%s7 + $0x8] sm:$0xf]
      %v658 = vld [vmem:[%s7 + $0xc] sm:$0xf]
      %v659 = vld [vmem:[%s8] sm:$0xf]
      %v660 = vld [vmem:[%s8 + $0x4] sm:$0xf]
      %v661 = vld [vmem:[%s8 + $0x8] sm:$0xf]
      %v662 = vld [vmem:[%s8 + $0xc] sm:$0xf]
      %v663 = vld [vmem:[%s9] sm:$0xf]
      %v664 = vld [vmem:[%s9 + $0x4] sm:$0xf]
      %v665 = vld [vmem:[%s9 + $0x8] sm:$0xf]
      %v666 = vld [vmem:[%s9 + $0xc] sm:$0xf]
      %v667 = vld [vmem:[%s10] sm:$0xf]
      %v668 = vld [vmem:[%s10 + $0x4] sm:$0xf]
      %v669 = vld [vmem:[%s10 + $0x8] sm:$0xf]
      %v670 = vld [vmem:[%s10 + $0xc] sm:$0xf]
      %v671 = vld [vmem:[%s11] sm:$0xf]
      %v672 = vld [vmem:[%s11 + $0x4] sm:$0xf]
      %v673 = vld [vmem:[%s11 + $0x8] sm:$0xf]
      %v674 = vld [vmem:[%s11 + $0xc] sm:$0xf]
      %v675 = vld [vmem:[%s11 + $0x10] sm:$0xf]
      %v676 = vld [vmem:[%s11 + $0x14] sm:$0xf]
      %v677 = vld [vmem:[%s11 + $0x18] sm:$0xf]
      %v678 = vld [vmem:[%s11 + $0x1c] sm:$0xf]
      %v679 = vld [vmem:[%s11 + $0x20] sm:$0xf]
      %v680 = vld [vmem:[%s11 + $0x24] sm:$0xf]
      %v681 = vld [vmem:[%s11 + $0x28] sm:$0xf]
      %v682 = vld [vmem:[%s11 + $0x2c] sm:$0xf]
      %v683 = vld [vmem:[%s11 + $0x30] sm:$0xf]
      %v684 = vld [vmem:[%s11 + $0x34] sm:$0xf]
      %v685 = vld [vmem:[%s11 + $0x38] sm:$0xf]
      %v686 = vld [vmem:[%s11 + $0x3c] sm:$0xf]
      %vm687 = vcmask 261120
      %v688 = vsel %vm687, %v643, 0.0
      %689 = vadd.xlane.f32.xlu0 %v688
      %v690 = vpop.xlane.xlu0 %689
      %v691 = vrcp.pop 32.0
      %v692 = vmul.f32 32.0, %v691
      %v693 = vsub.f32 1.0, %v692
      %v694 = vmul.f32 %v691, %v693
      %v695 = vadd.f32 %v691, %v694
      %vm696 = vweird.f32 %v691
      %v697 = vsel %vm696, %v691, %v695
      %v698 = vmul.f32 %v690, %v697
      %v699 = vsub.f32 %v643, %v698
      %v700 = vmul.f32 %v699, %v699
      %v701 = vsel %vm687, %v700, 0.0
      %702 = vadd.xlane.f32.xlu0 %v701
      %v703 = vpop.xlane.xlu0 %702
      %v704 = vmul.f32 %v703, %v697
      %v705 = vadd.f32 %v704, 1e-05
      %v706 = vrsqrt.pop %v705
      %v707 = vmul.f32 %v706, %v705
      %v708 = vmul.f32 %v707, %v706
      %v709 = vmul.f32 0.5, %v708
      %v710 = vsub.f32 1.5, %v709
      %v711 = vmul.f32 %v706, %v710
      %vm712 = vweird.f32 %v705
      %vm713 = vweird.f32 %v706
      %vm714 = vmor %vm712, %vm713
      %v715 = vsel %vm714, %v706, %v711
      %v716 = vmul.f32 %v699, %v715
      %v718 = vperm.slane %v646, 0
      %v720 = vmul.f32 %v716, %v718
      %v721 = vpack.c.bf16 %v720, %v720
      %v726 = vunpack.c.l.b16 %v651
      %v727 = vunpack.c.l.b16 %v652
      %v728 = vunpack.c.l.b16 %v653
      %v729 = vunpack.c.l.b16 %v654
      %v730 = vpack.c.b16 %v727, %v726
      %v731 = vpack.c.b16 %v729, %v728
      %v735 = vsel %vm687, %v721, 0
      %737 = vmatpush.bf16.msra.mxu0 0
      %738 = vmatpush.bf16.msra.mxu0 0
      %739 = vmatpush.bf16.msra.mxu0 0
      %740 = vmatpush.bf16.msra.mxu0 0
      %741 = vmatpush.bf16.msra.mxu0 0
      %742 = vmatpush.bf16.msra.mxu0 0
      %743 = vmatpush.bf16.msra.mxu0 %v731
      %744 = vmatpush.bf16.msra.mxu0 %v730
      %745 = vmatmul.bf16.gmra.mxu0 %v735
      %v746 = vpop.f32.mrf.mxu0
      %v747 = vadd.f32 0.0, %v746
      %v748 = vpop.f32.mrf.mxu0
      %749 = vdwg.mxu0
      %v750 = vsub.f32 0.0, %v747
      %752 = vrot.lane.b32.xlu0 %v750, 120
      %v753 = vpop.permute.xlu0 %752
      %756 = vrot.lane.b32.xlu0 %v747, 8
      %v757 = vpop.permute.xlu0 %756
      %vm759 = vcmask 64512
      %v760 = vsel %vm759, %v753, %v757
      %v761 = vmul.f32 %v747, %v644
      %v762 = vmul.f32 %v760, %v645
      %v763 = vadd.f32 %v761, %v762
      %v768 = vunpack.c.l.b16 %v655
      %v769 = vunpack.c.l.b16 %v656
      %v770 = vunpack.c.l.b16 %v657
      %v771 = vunpack.c.l.b16 %v658
      %v772 = vpack.c.b16 %v769, %v768
      %v773 = vpack.c.b16 %v771, %v770
      %776 = vmatpush.bf16.msra.mxu0 0
      %777 = vmatpush.bf16.msra.mxu0 0
      %778 = vmatpush.bf16.msra.mxu0 0
      %779 = vmatpush.bf16.msra.mxu0 0
      %780 = vmatpush.bf16.msra.mxu0 0
      %781 = vmatpush.bf16.msra.mxu0 0
      %782 = vmatpush.bf16.msra.mxu0 %v773
      %783 = vmatpush.bf16.msra.mxu0 %v772
      %784 = vmatmul.bf16.gmra.mxu0 %v735
      %v785 = vpop.f32.mrf.mxu0
      %v786 = vadd.f32 0.0, %v785
      %v787 = vpop.f32.mrf.mxu0
      %788 = vdwg.mxu0
      %v789 = vlaneseq
      %v790 = vshrl.u32 %v789, 7
      %v791 = vlaneseq
      %v792 = vand.u32 %v791, 127
      %vm793 = vcmp.le.s32.totalorder %v792, %v790
      %v794 = vsel %vm793, 0.0, -1e+30
      %v799 = vunpack.c.l.b16 %v647
      %v800 = vunpack.c.l.b16 %v648
      %v801 = vunpack.c.l.b16 %v649
      %v802 = vunpack.c.l.b16 %v650
      %v803 = vpack.c.b16 %v800, %v799
      %v804 = vpack.c.b16 %v802, %v801
      %807 = vmatpush.bf16.msra.mxu0 0
      %808 = vmatpush.bf16.msra.mxu0 0
      %809 = vmatpush.bf16.msra.mxu0 0
      %810 = vmatpush.bf16.msra.mxu0 0
      %811 = vmatpush.bf16.msra.mxu0 0
      %812 = vmatpush.bf16.msra.mxu0 0
      %813 = vmatpush.bf16.msra.mxu0 %v804
      %814 = vmatpush.bf16.msra.mxu0 %v803
      %815 = vmatmul.bf16.gmra.mxu0 %v735
      %v816 = vpop.f32.mrf.mxu0
      %v817 = vadd.f32 0.0, %v816
      %v818 = vpop.f32.mrf.mxu0
      %819 = vdwg.mxu0
      %821 = vrot.lane.b32.xlu0 %v817, 112
      %v822 = vpop.permute.xlu0 %821
      %v824 = vsub.f32 0.0, %v817
      %v825 = vsub.f32 0.0, %v822
      %828 = vrot.lane.b32.xlu0 %v824, 120
      %v829 = vpop.permute.xlu0 %828
      %830 = vrot.lane.b32.xlu0 %v825, 120
      %v831 = vpop.permute.xlu0 %830
      %834 = vrot.lane.b32.xlu0 %v817, 8
      %v835 = vpop.permute.xlu0 %834
      %836 = vrot.lane.b32.xlu0 %v822, 8
      %v837 = vpop.permute.xlu0 %836
      %v840 = vsel %vm759, %v829, %v835
      %v841 = vsel %vm759, %v831, %v837
      %v842 = vmul.f32 %v817, %v644
      %v843 = vmul.f32 %v822, %v644
      %v844 = vmul.f32 %v840, %v645
      %v845 = vmul.f32 %v841, %v645
      %v846 = vadd.f32 %v842, %v844
      %v847 = vadd.f32 %v843, %v845
      %v848 = vpack.c.bf16 %v847, %v846
      %v849 = vpack.c.bf16 %v763, %v763
      %vm850 = vcmask 130048
      %v852 = vsel %vm850, %v848, 0
      %v855 = vsel %vm850, %v849, 0
      %857 = vmatpush.bf16.xpose.msra.mxu0 0
      %858 = vmatpush.bf16.xpose.msra.mxu0 0
      %859 = vmatpush.bf16.xpose.msra.mxu0 0
      %860 = vmatpush.bf16.xpose.msra.mxu0 0
      %861 = vmatpush.bf16.xpose.msra.mxu0 0
      %862 = vmatpush.bf16.xpose.msra.mxu0 0
      %863 = vmatpush.bf16.xpose.msra.mxu0 0
      %864 = vmatpush.bf16.xpose.msra.mxu0 %v855
      %865 = vmatmul.bf16.gmra.mxu0 %v852
      %v866 = vpop.f32.mrf.mxu0
      %v867 = vadd.f32 %v794, %v866
      %v868 = vpop.f32.mrf.mxu0
      %v869 = vadd.f32 %v794, %v868
      %870 = vdwg.mxu0
      %v871 = vsel %vm759, %v867, -inf
      %872 = vmax.xlane.f32.xlu0 %v871
      %v873 = vpop.xlane.xlu0 %872
      %v874 = vsel %vm759, %v869, -inf
      %875 = vmax.xlane.f32.xlu0 %v874
      %v876 = vpop.xlane.xlu0 %875
      %v877 = vsub.f32 %v867, %v873
      %v878 = vsub.f32 %v869, %v876
      %v879 = vmul.f32 %v877, 1.442695
      %v880 = vpow.pop %v879
      %v881 = vmul.f32 %v878, 1.442695
      %v882 = vpow.pop %v881
      %v883 = vsel %vm759, %v880, 0.0
      %884 = vadd.xlane.f32.xlu0 %v883
      %v885 = vpop.xlane.xlu0 %884
      %v886 = vsel %vm759, %v882, 0.0
      %887 = vadd.xlane.f32.xlu0 %v886
      %v888 = vpop.xlane.xlu0 %887
      %v889 = vrcp.pop %v885
      %v890 = vrcp.pop %v888
      %v891 = vmul.f32 %v880, %v889
      %v892 = vmul.f32 %v882, %v890
      %v893 = vpack.c.bf16 %v892, %v891
      %v894 = vpack.c.bf16 %v786, %v786
      %v896 = vsel %vm759, %v893, 0
      %vm898 = vcmask 1043456
      %v900 = vsel %vm898, %v894, 0
      %902 = vmatpush.bf16.msra.mxu0 0
      %903 = vmatpush.bf16.msra.mxu0 0
      %904 = vmatpush.bf16.msra.mxu0 0
      %905 = vmatpush.bf16.msra.mxu0 0
      %906 = vmatpush.bf16.msra.mxu0 0
      %907 = vmatpush.bf16.msra.mxu0 0
      %908 = vmatpush.bf16.msra.mxu0 0
      %909 = vmatpush.bf16.msra.mxu0 %v900
      %910 = vmatmul.bf16.gmra.mxu0 %v896
      %v911 = vpop.f32.mrf.mxu0
      %v912 = vadd.f32 0.0, %v911
      %v913 = vpop.f32.mrf.mxu0
      %v914 = vadd.f32 0.0, %v913
      %915 = vdwg.mxu0
      %917 = vrot.lane.b32.xlu0 %v914, 16
      %v918 = vpop.permute.xlu0 %917
      %v920 = vsel %vm850, %v912, %v918
      %v921 = vpack.c.bf16 %v920, %v920
      %v926 = vunpack.c.l.b16 %v667
      %v927 = vunpack.c.l.b16 %v668
      %v928 = vunpack.c.l.b16 %v669
      %v929 = vunpack.c.l.b16 %v670
      %v930 = vpack.c.b16 %v927, %v926
      %v931 = vpack.c.b16 %v929, %v928
      %v935 = vsel %vm687, %v921, 0
      %937 = vmatpush.bf16.msra.mxu0 0
      %938 = vmatpush.bf16.msra.mxu0 0
      %939 = vmatpush.bf16.msra.mxu0 0
      %940 = vmatpush.bf16.msra.mxu0 0
      %941 = vmatpush.bf16.msra.mxu0 0
      %942 = vmatpush.bf16.msra.mxu0 0
      %943 = vmatpush.bf16.msra.mxu0 %v931
      %944 = vmatpush.bf16.msra.mxu0 %v930
      %945 = vmatmul.bf16.gmra.mxu0 %v935
      %v946 = vpop.f32.mrf.mxu0
      %v947 = vadd.f32 0.0, %v946
      %v948 = vpop.f32.mrf.mxu0
      %949 = vdwg.mxu0
      %v954 = vunpack.c.l.b16 %v659
      %v955 = vunpack.c.l.b16 %v660
      %v956 = vunpack.c.l.b16 %v661
      %v957 = vunpack.c.l.b16 %v662
      %v958 = vpack.c.b16 %v955, %v954
      %v959 = vpack.c.b16 %v957, %v956
      %962 = vmatpush.bf16.msra.mxu0 0
      %963 = vmatpush.bf16.msra.mxu0 0
      %964 = vmatpush.bf16.msra.mxu0 0
      %965 = vmatpush.bf16.msra.mxu0 0
      %966 = vmatpush.bf16.msra.mxu0 0
      %967 = vmatpush.bf16.msra.mxu0 0
      %968 = vmatpush.bf16.msra.mxu0 %v959
      %969 = vmatpush.bf16.msra.mxu0 %v958
      %970 = vmatmul.bf16.gmra.mxu0 %v735
      %v971 = vpop.f32.mrf.mxu0
      %v972 = vadd.f32 0.0, %v971
      %v973 = vpop.f32.mrf.mxu0
      %974 = vdwg.mxu0
      %v979 = vunpack.c.l.b16 %v663
      %v980 = vunpack.c.l.b16 %v664
      %v981 = vunpack.c.l.b16 %v665
      %v982 = vunpack.c.l.b16 %v666
      %v983 = vpack.c.b16 %v980, %v979
      %v984 = vpack.c.b16 %v982, %v981
      %987 = vmatpush.bf16.msra.mxu0 0
      %988 = vmatpush.bf16.msra.mxu0 0
      %989 = vmatpush.bf16.msra.mxu0 0
      %990 = vmatpush.bf16.msra.mxu0 0
      %991 = vmatpush.bf16.msra.mxu0 0
      %992 = vmatpush.bf16.msra.mxu0 0
      %993 = vmatpush.bf16.msra.mxu0 %v984
      %994 = vmatpush.bf16.msra.mxu0 %v983
      %995 = vmatmul.bf16.gmra.mxu0 %v735
      %v996 = vpop.f32.mrf.mxu0
      %v997 = vadd.f32 0.0, %v996
      %v998 = vpop.f32.mrf.mxu0
      %999 = vdwg.mxu0
      %v1000 = vxor.u32 %v997, 2147483648
      %v1001 = vmul.f32 %v1000, 1.442695
      %v1002 = vpow.pop %v1001
      %v1003 = vadd.f32 %v1002, 1.0
      %v1004 = vrcp.pop %v1003
      %v1005 = vmul.f32 %v1003, %v1004
      %v1006 = vsub.f32 1.0, %v1005
      %v1007 = vmul.f32 %v1004, %v1006
      %v1008 = vadd.f32 %v1004, %v1007
      %vm1009 = vweird.f32 %v1003
      %vm1010 = vweird.f32 %v1004
      %vm1011 = vmor %vm1009, %vm1010
      %v1012 = vsel %vm1011, %v1004, %v1008
      %v1013 = vand.u32 2147483647, %v1003
      %vm1014 = vcmp.eq.f32.partialorder %v1013, 8.507059e+37
      %v1015 = vand.u32 %v1003, 2147483648
      %v1016 = vor.u32 1.1754944e-38, %v1015
      %v1017 = vsel %vm1014, %v1016, %v1012
      %v1018 = vmul.f32 1.0, %v1017
      %v1019 = vmul.f32 %v997, %v1018
      %v1020 = vmul.f32 %v1019, %v972
      %v1021 = vpack.c.bf16 %v1020, %v1020
      %v1038 = vunpack.c.l.b16 %v671
      %v1039 = vunpack.c.l.b16 %v672
      %v1040 = vunpack.c.l.b16 %v673
      %v1041 = vunpack.c.l.b16 %v674
      %v1042 = vunpack.c.l.b16 %v675
      %v1043 = vunpack.c.l.b16 %v676
      %v1044 = vunpack.c.l.b16 %v677
      %v1045 = vunpack.c.l.b16 %v678
      %v1046 = vunpack.c.l.b16 %v679
      %v1047 = vunpack.c.l.b16 %v680
      %v1048 = vunpack.c.l.b16 %v681
      %v1049 = vunpack.c.l.b16 %v682
      %v1050 = vunpack.c.l.b16 %v683
      %v1051 = vunpack.c.l.b16 %v684
      %v1052 = vunpack.c.l.b16 %v685
      %v1053 = vunpack.c.l.b16 %v686
      %v1054 = vpack.c.b16 %v1039, %v1038
      %v1055 = vpack.c.b16 %v1041, %v1040
      %v1056 = vpack.c.b16 %v1043, %v1042
      %v1057 = vpack.c.b16 %v1045, %v1044
      %v1058 = vpack.c.b16 %v1047, %v1046
      %v1059 = vpack.c.b16 %v1049, %v1048
      %v1060 = vpack.c.b16 %v1051, %v1050
      %v1061 = vpack.c.b16 %v1053, %v1052
      %1070 = vmatpush.bf16.msra.mxu0 %v1061
      %1071 = vmatpush.bf16.msra.mxu0 %v1060
      %1072 = vmatpush.bf16.msra.mxu0 %v1059
      %1073 = vmatpush.bf16.msra.mxu0 %v1058
      %1074 = vmatpush.bf16.msra.mxu0 %v1057
      %1075 = vmatpush.bf16.msra.mxu0 %v1056
      %1076 = vmatpush.bf16.msra.mxu0 %v1055
      %1077 = vmatpush.bf16.msra.mxu0 %v1054
      %1078 = vmatmul.bf16.gmra.mxu0 %v1021
      %v1079 = vpop.f32.mrf.mxu0
      %v1080 = vadd.f32 0.0, %v1079
      %v1081 = vpop.f32.mrf.mxu0
      %1082 = vdwg.mxu0
      %v1083 = vadd.f32 %v643, %v947
      %v1084 = vadd.f32 %v1083, %v1080
      %v1085 = vld [vmem:[%s637] sm:$0x7f]
      %v1086 = vld [vmem:[%s12] sm:$0x1]
      %v1087 = vld [vmem:[%s13] sm:$0xf]
      %v1088 = vld [vmem:[%s13 + $0x4] sm:$0xf]
      %v1089 = vld [vmem:[%s13 + $0x8] sm:$0xf]
      %v1090 = vld [vmem:[%s13 + $0xc] sm:$0xf]
      %v1091 = vld [vmem:[%s14] sm:$0xf]
      %v1092 = vld [vmem:[%s14 + $0x4] sm:$0xf]
      %v1093 = vld [vmem:[%s14 + $0x8] sm:$0xf]
      %v1094 = vld [vmem:[%s14 + $0xc] sm:$0xf]
      %v1095 = vld [vmem:[%s15] sm:$0xf]
      %v1096 = vld [vmem:[%s15 + $0x4] sm:$0xf]
      %v1097 = vld [vmem:[%s15 + $0x8] sm:$0xf]
      %v1098 = vld [vmem:[%s15 + $0xc] sm:$0xf]
      %v1099 = vld [vmem:[%s16] sm:$0xf]
      %v1100 = vld [vmem:[%s16 + $0x4] sm:$0xf]
      %v1101 = vld [vmem:[%s16 + $0x8] sm:$0xf]
      %v1102 = vld [vmem:[%s16 + $0xc] sm:$0xf]
      %v1103 = vld [vmem:[%s17] sm:$0xf]
      %v1104 = vld [vmem:[%s17 + $0x4] sm:$0xf]
      %v1105 = vld [vmem:[%s17 + $0x8] sm:$0xf]
      %v1106 = vld [vmem:[%s17 + $0xc] sm:$0xf]
      %v1107 = vld [vmem:[%s18] sm:$0xf]
      %v1108 = vld [vmem:[%s18 + $0x4] sm:$0xf]
      %v1109 = vld [vmem:[%s18 + $0x8] sm:$0xf]
      %v1110 = vld [vmem:[%s18 + $0xc] sm:$0xf]
      %v1111 = vld [vmem:[%s19] sm:$0xf]
      %v1112 = vld [vmem:[%s19 + $0x4] sm:$0xf]
      %v1113 = vld [vmem:[%s19 + $0x8] sm:$0xf]
      %v1114 = vld [vmem:[%s19 + $0xc] sm:$0xf]
      %v1115 = vld [vmem:[%s19 + $0x10] sm:$0xf]
      %v1116 = vld [vmem:[%s19 + $0x14] sm:$0xf]
      %v1117 = vld [vmem:[%s19 + $0x18] sm:$0xf]
      %v1118 = vld [vmem:[%s19 + $0x1c] sm:$0xf]
      %v1119 = vld [vmem:[%s19 + $0x20] sm:$0xf]
      %v1120 = vld [vmem:[%s19 + $0x24] sm:$0xf]
      %v1121 = vld [vmem:[%s19 + $0x28] sm:$0xf]
      %v1122 = vld [vmem:[%s19 + $0x2c] sm:$0xf]
      %v1123 = vld [vmem:[%s19 + $0x30] sm:$0xf]
      %v1124 = vld [vmem:[%s19 + $0x34] sm:$0xf]
      %v1125 = vld [vmem:[%s19 + $0x38] sm:$0xf]
      %v1126 = vld [vmem:[%s19 + $0x3c] sm:$0xf]
      %v1127 = vsel %vm687, %v1084, 0.0
      %1128 = vadd.xlane.f32.xlu0 %v1127
      %v1129 = vpop.xlane.xlu0 %1128
      %v1130 = vmul.f32 %v1129, %v697
      %v1131 = vsub.f32 %v1084, %v1130
      %v1132 = vmul.f32 %v1131, %v1131
      %v1133 = vsel %vm687, %v1132, 0.0
      %1134 = vadd.xlane.f32.xlu0 %v1133
      %v1135 = vpop.xlane.xlu0 %1134
      %v1136 = vmul.f32 %v1135, %v697
      %v1137 = vadd.f32 %v1136, 1e-05
      %v1138 = vrsqrt.pop %v1137
      %v1139 = vmul.f32 %v1138, %v1137
      %v1140 = vmul.f32 %v1139, %v1138
      %v1141 = vmul.f32 0.5, %v1140
      %v1142 = vsub.f32 1.5, %v1141
      %v1143 = vmul.f32 %v1138, %v1142
      %vm1144 = vweird.f32 %v1137
      %vm1145 = vweird.f32 %v1138
      %vm1146 = vmor %vm1144, %vm1145
      %v1147 = vsel %vm1146, %v1138, %v1143
      %v1148 = vmul.f32 %v1131, %v1147
      %v1150 = vperm.slane %v1086, 0
      %v1152 = vmul.f32 %v1148, %v1150
      %v1153 = vpack.c.bf16 %v1152, %v1152
      %v1154 = vpack.c.bf16 %v1085, %v1085
      %v1159 = vunpack.c.l.b16 %v1091
      %v1160 = vunpack.c.l.b16 %v1092
      %v1161 = vunpack.c.l.b16 %v1093
      %v1162 = vunpack.c.l.b16 %v1094
      %v1163 = vpack.c.b16 %v1160, %v1159
      %v1164 = vpack.c.b16 %v1162, %v1161
      %v1168 = vsel %vm687, %v1154, 0
      %1170 = vmatpush.bf16.msra.mxu0 0
      %1171 = vmatpush.bf16.msra.mxu0 0
      %1172 = vmatpush.bf16.msra.mxu0 0
      %1173 = vmatpush.bf16.msra.mxu0 0
      %1174 = vmatpush.bf16.msra.mxu0 0
      %1175 = vmatpush.bf16.msra.mxu0 0
      %1176 = vmatpush.bf16.msra.mxu0 %v1164
      %1177 = vmatpush.bf16.msra.mxu0 %v1163
      %1178 = vmatmul.bf16.gmra.mxu0 %v1168
      %v1179 = vpop.f32.mrf.mxu0
      %v1180 = vadd.f32 0.0, %v1179
      %v1181 = vpop.f32.mrf.mxu0
      %1182 = vdwg.mxu0
      %v1187 = vunpack.c.l.b16 %v1095
      %v1188 = vunpack.c.l.b16 %v1096
      %v1189 = vunpack.c.l.b16 %v1097
      %v1190 = vunpack.c.l.b16 %v1098
      %v1191 = vpack.c.b16 %v1188, %v1187
      %v1192 = vpack.c.b16 %v1190, %v1189
      %1195 = vmatpush.bf16.msra.mxu0 0
      %1196 = vmatpush.bf16.msra.mxu0 0
      %1197 = vmatpush.bf16.msra.mxu0 0
      %1198 = vmatpush.bf16.msra.mxu0 0
      %1199 = vmatpush.bf16.msra.mxu0 0
      %1200 = vmatpush.bf16.msra.mxu0 0
      %1201 = vmatpush.bf16.msra.mxu0 %v1192
      %1202 = vmatpush.bf16.msra.mxu0 %v1191
      %1203 = vmatmul.bf16.gmra.mxu0 %v1168
      %v1204 = vpop.f32.mrf.mxu0
      %v1205 = vadd.f32 0.0, %v1204
      %v1206 = vpop.f32.mrf.mxu0
      %1207 = vdwg.mxu0
      %v1212 = vunpack.c.l.b16 %v1087
      %v1213 = vunpack.c.l.b16 %v1088
      %v1214 = vunpack.c.l.b16 %v1089
      %v1215 = vunpack.c.l.b16 %v1090
      %v1216 = vpack.c.b16 %v1213, %v1212
      %v1217 = vpack.c.b16 %v1215, %v1214
      %v1221 = vsel %vm687, %v1153, 0
      %1223 = vmatpush.bf16.msra.mxu0 0
      %1224 = vmatpush.bf16.msra.mxu0 0
      %1225 = vmatpush.bf16.msra.mxu0 0
      %1226 = vmatpush.bf16.msra.mxu0 0
      %1227 = vmatpush.bf16.msra.mxu0 0
      %1228 = vmatpush.bf16.msra.mxu0 0
      %1229 = vmatpush.bf16.msra.mxu0 %v1217
      %1230 = vmatpush.bf16.msra.mxu0 %v1216
      %1231 = vmatmul.bf16.gmra.mxu0 %v1221
      %v1232 = vpop.f32.mrf.mxu0
      %v1233 = vadd.f32 0.0, %v1232
      %v1234 = vpop.f32.mrf.mxu0
      %1235 = vdwg.mxu0
      %1237 = vrot.lane.b32.xlu0 %v1233, 112
      %v1238 = vpop.permute.xlu0 %1237
      %v1240 = vpack.c.bf16 %v1238, %v1233
      %v1241 = vpack.c.bf16 %v1180, %v1180
      %v1243 = vsel %vm850, %v1240, 0
      %v1246 = vsel %vm850, %v1241, 0
      %1248 = vmatpush.bf16.xpose.msra.mxu0 0
      %1249 = vmatpush.bf16.xpose.msra.mxu0 0
      %1250 = vmatpush.bf16.xpose.msra.mxu0 0
      %1251 = vmatpush.bf16.xpose.msra.mxu0 0
      %1252 = vmatpush.bf16.xpose.msra.mxu0 0
      %1253 = vmatpush.bf16.xpose.msra.mxu0 0
      %1254 = vmatpush.bf16.xpose.msra.mxu0 0
      %1255 = vmatpush.bf16.xpose.msra.mxu0 %v1246
      %1256 = vmatmul.bf16.gmra.mxu0 %v1243
      %v1257 = vpop.f32.mrf.mxu0
      %v1258 = vadd.f32 0.0, %v1257
      %v1259 = vpop.f32.mrf.mxu0
      %v1260 = vadd.f32 0.0, %v1259
      %1261 = vdwg.mxu0
      %vm1262 = vcmask 56320
      %v1263 = vsel %vm1262, %v1258, -inf
      %1264 = vmax.xlane.f32.xlu0 %v1263
      %v1265 = vpop.xlane.xlu0 %1264
      %v1266 = vsel %vm1262, %v1260, -inf
      %1267 = vmax.xlane.f32.xlu0 %v1266
      %v1268 = vpop.xlane.xlu0 %1267
      %v1269 = vsub.f32 %v1258, %v1265
      %v1270 = vsub.f32 %v1260, %v1268
      %v1271 = vmul.f32 %v1269, 1.442695
      %v1272 = vpow.pop %v1271
      %v1273 = vmul.f32 %v1270, 1.442695
      %v1274 = vpow.pop %v1273
      %v1275 = vsel %vm1262, %v1272, 0.0
      %1276 = vadd.xlane.f32.xlu0 %v1275
      %v1277 = vpop.xlane.xlu0 %1276
      %v1278 = vsel %vm1262, %v1274, 0.0
      %1279 = vadd.xlane.f32.xlu0 %v1278
      %v1280 = vpop.xlane.xlu0 %1279
      %v1281 = vrcp.pop %v1277
      %v1282 = vrcp.pop %v1280
      %v1283 = vmul.f32 %v1272, %v1281
      %v1284 = vmul.f32 %v1274, %v1282
      %v1285 = vpack.c.bf16 %v1284, %v1283
      %v1286 = vpack.c.bf16 %v1205, %v1205
      %v1288 = vsel %vm1262, %v1285, 0
      %vm1290 = vcmask 1042432
      %v1291 = vsel %vm1290, 4294967295, 65535
      %v1292 = vsel %vm898, %v1291, 0
      %v1294 = vand.u32 %v1286, %v1292
      %1296 = vmatpush.bf16.msra.mxu0 0
      %1297 = vmatpush.bf16.msra.mxu0 0
      %1298 = vmatpush.bf16.msra.mxu0 0
      %1299 = vmatpush.bf16.msra.mxu0 0
      %1300 = vmatpush.bf16.msra.mxu0 0
      %1301 = vmatpush.bf16.msra.mxu0 0
      %1302 = vmatpush.bf16.msra.mxu0 0
      %1303 = vmatpush.bf16.msra.mxu0 %v1294
      %1304 = vmatmul.bf16.gmra.mxu0 %v1288
      %v1305 = vpop.f32.mrf.mxu0
      %v1306 = vadd.f32 0.0, %v1305
      %v1307 = vpop.f32.mrf.mxu0
      %v1308 = vadd.f32 0.0, %v1307
      %1309 = vdwg.mxu0
      %1311 = vrot.lane.b32.xlu0 %v1308, 16
      %v1312 = vpop.permute.xlu0 %1311
      %v1314 = vsel %vm850, %v1306, %v1312
      %v1315 = vpack.c.bf16 %v1314, %v1314
      %v1320 = vunpack.c.l.b16 %v1103
      %v1321 = vunpack.c.l.b16 %v1104
      %v1322 = vunpack.c.l.b16 %v1105
      %v1323 = vunpack.c.l.b16 %v1106
      %v1324 = vpack.c.b16 %v1321, %v1320
      %v1325 = vpack.c.b16 %v1323, %v1322
      %1328 = vmatpush.bf16.msra.mxu0 0
      %1329 = vmatpush.bf16.msra.mxu0 0
      %1330 = vmatpush.bf16.msra.mxu0 0
      %1331 = vmatpush.bf16.msra.mxu0 0
      %1332 = vmatpush.bf16.msra.mxu0 0
      %1333 = vmatpush.bf16.msra.mxu0 0
      %1334 = vmatpush.bf16.msra.mxu0 %v1325
      %1335 = vmatpush.bf16.msra.mxu0 %v1324
      %1336 = vmatmul.bf16.gmra.mxu0 %v1221
      %v1337 = vpop.f32.mrf.mxu0
      %v1338 = vadd.f32 0.0, %v1337
      %v1339 = vpop.f32.mrf.mxu0
      %1340 = vdwg.mxu0
      %v1345 = vunpack.c.l.b16 %v1107
      %v1346 = vunpack.c.l.b16 %v1108
      %v1347 = vunpack.c.l.b16 %v1109
      %v1348 = vunpack.c.l.b16 %v1110
      %v1349 = vpack.c.b16 %v1346, %v1345
      %v1350 = vpack.c.b16 %v1348, %v1347
      %1353 = vmatpush.bf16.msra.mxu0 0
      %1354 = vmatpush.bf16.msra.mxu0 0
      %1355 = vmatpush.bf16.msra.mxu0 0
      %1356 = vmatpush.bf16.msra.mxu0 0
      %1357 = vmatpush.bf16.msra.mxu0 0
      %1358 = vmatpush.bf16.msra.mxu0 0
      %1359 = vmatpush.bf16.msra.mxu0 %v1350
      %1360 = vmatpush.bf16.msra.mxu0 %v1349
      %1361 = vmatmul.bf16.gmra.mxu0 %v1221
      %v1362 = vpop.f32.mrf.mxu0
      %v1363 = vadd.f32 0.0, %v1362
      %v1364 = vpop.f32.mrf.mxu0
      %1365 = vdwg.mxu0
      %v1366 = vxor.u32 %v1363, 2147483648
      %v1367 = vmul.f32 %v1366, 1.442695
      %v1368 = vpow.pop %v1367
      %v1369 = vadd.f32 %v1368, 1.0
      %v1370 = vrcp.pop %v1369
      %v1371 = vmul.f32 %v1369, %v1370
      %v1372 = vsub.f32 1.0, %v1371
      %v1373 = vmul.f32 %v1370, %v1372
      %v1374 = vadd.f32 %v1370, %v1373
      %vm1375 = vweird.f32 %v1369
      %vm1376 = vweird.f32 %v1370
      %vm1377 = vmor %vm1375, %vm1376
      %v1378 = vsel %vm1377, %v1370, %v1374
      %v1379 = vand.u32 2147483647, %v1369
      %vm1380 = vcmp.eq.f32.partialorder %v1379, 8.507059e+37
      %v1381 = vand.u32 %v1369, 2147483648
      %v1382 = vor.u32 1.1754944e-38, %v1381
      %v1383 = vsel %vm1380, %v1382, %v1378
      %v1384 = vmul.f32 1.0, %v1383
      %v1385 = vmul.f32 %v1363, %v1384
      %v1386 = vmul.f32 %v1385, %v1338
      %v1387 = vpack.c.bf16 %v1386, %v1386
      %v1404 = vunpack.c.l.b16 %v1111
      %v1405 = vunpack.c.l.b16 %v1112
      %v1406 = vunpack.c.l.b16 %v1113
      %v1407 = vunpack.c.l.b16 %v1114
      %v1408 = vunpack.c.l.b16 %v1115
      %v1409 = vunpack.c.l.b16 %v1116
      %v1410 = vunpack.c.l.b16 %v1117
      %v1411 = vunpack.c.l.b16 %v1118
      %v1412 = vunpack.c.l.b16 %v1119
      %v1413 = vunpack.c.l.b16 %v1120
      %v1414 = vunpack.c.l.b16 %v1121
      %v1415 = vunpack.c.l.b16 %v1122
      %v1416 = vunpack.c.l.b16 %v1123
      %v1417 = vunpack.c.l.b16 %v1124
      %v1418 = vunpack.c.l.b16 %v1125
      %v1419 = vunpack.c.l.b16 %v1126
      %v1420 = vpack.c.b16 %v1405, %v1404
      %v1421 = vpack.c.b16 %v1407, %v1406
      %v1422 = vpack.c.b16 %v1409, %v1408
      %v1423 = vpack.c.b16 %v1411, %v1410
      %v1424 = vpack.c.b16 %v1413, %v1412
      %v1425 = vpack.c.b16 %v1415, %v1414
      %v1426 = vpack.c.b16 %v1417, %v1416
      %v1427 = vpack.c.b16 %v1419, %v1418
      %1436 = vmatpush.bf16.msra.mxu0 %v1427
      %1437 = vmatpush.bf16.msra.mxu0 %v1426
      %1438 = vmatpush.bf16.msra.mxu0 %v1425
      %1439 = vmatpush.bf16.msra.mxu0 %v1424
      %1440 = vmatpush.bf16.msra.mxu0 %v1423
      %1441 = vmatpush.bf16.msra.mxu0 %v1422
      %1442 = vmatpush.bf16.msra.mxu0 %v1421
      %1443 = vmatpush.bf16.msra.mxu0 %v1420
      %1444 = vmatmul.bf16.gmra.mxu0 %v1387
      %v1445 = vpop.f32.mrf.mxu0
      %v1446 = vadd.f32 0.0, %v1445
      %v1447 = vpop.f32.mrf.mxu0
      %1448 = vdwg.mxu0
      %v1453 = vunpack.c.l.b16 %v1099
      %v1454 = vunpack.c.l.b16 %v1100
      %v1455 = vunpack.c.l.b16 %v1101
      %v1456 = vunpack.c.l.b16 %v1102
      %v1457 = vpack.c.b16 %v1454, %v1453
      %v1458 = vpack.c.b16 %v1456, %v1455
      %v1462 = vsel %vm687, %v1315, 0
      %1464 = vmatpush.bf16.msra.mxu0 0
      %1465 = vmatpush.bf16.msra.mxu0 0
      %1466 = vmatpush.bf16.msra.mxu0 0
      %1467 = vmatpush.bf16.msra.mxu0 0
      %1468 = vmatpush.bf16.msra.mxu0 0
      %1469 = vmatpush.bf16.msra.mxu0 0
      %1470 = vmatpush.bf16.msra.mxu0 %v1458
      %1471 = vmatpush.bf16.msra.mxu0 %v1457
      %1472 = vmatmul.bf16.gmra.mxu0 %v1462
      %v1473 = vpop.f32.mrf.mxu0
      %v1474 = vadd.f32 %v1446, %v1473
      %v1475 = vpop.f32.mrf.mxu0
      %1476 = vdwg.mxu0
      %v1477 = vadd.f32 %v1474, %v1084
      %1478 = vst.msk [vmem:[%s641] sm:$0xff] %vm687, %v1477
      %p1479 = scmp.lt.s32.totalorder %s31, 1
      %s1480 = scalar_select %p1479, %s31, 1
      %s1481 = smul.addr %s1480, 8
      %s1482 = scalar_lea.vmem %s20, %s1481
      // Predicated region
      $region101: #{fwd.6} parent=99 // pred_check
        %p1483 = pneg %p479
      $region102: #{fwd.6} parent=99 // pred_check_branch
        %1485 = sbr.rel (%p1483) target = $region104
      $region103: #{fwd.6} parent=99 // pred_region
        _
      $region104: #{fwd.6} parent=99 // pred_fallthru
        _
    $region100: #{fwd.6} parent=5 // pred_fallthru
      _
    %p1486 = scmp.le.s32.totalorder 2, %s26
    // Predicated region
    $region105: #{fwd.6} parent=5 // pred_check
      %p1487 = pneg %p1486
    $region106: #{fwd.6} parent=5 // pred_check_branch
      %1489 = sbr.rel (%p1487) target = $region108
    $region107: #{fwd.6} parent=5 // pred_region
      %s1490 = ssub.s32 %s26, 2
      // Predicated region
      $region109: #{fwd.6} parent=107 // pred_check
        %p1491 = pneg %p485
      $region110: #{fwd.6} parent=107 // pred_check_branch
        %1493 = sbr.rel (%p1491) target = $region112
      $region111: #{fwd.6} parent=107 // pred_region
        %p1494 = scmp.lt.s32.totalorder %s32, 1
        %s1495 = scalar_select %p1494, %s32, 1
        %s1496 = smul.addr %s1495, 8
        %s1497 = scalar_lea.vmem %s20, %s1496
      $region112: #{fwd.6} parent=107 // pred_fallthru
        _
    $region108: #{fwd.6} parent=5 // pred_fallthru
      _
  $region6: #{fwd.6} parent=0 // loop_footer
    %s30 = sadd.s32 1, %s26
  $region7: #{fwd.6} parent=0 // loop_footer_branch
    %25 = sbr.rel target = $region3
  $region8: #{fwd.6} parent=0 // loop_exit
    _

</llo_original>
